<compile_context>
chip_gen: v7x
topology: tpu7x:2x2x1
jax: 0.10.0
libtpu: 0.0.40
codegen_flags: <defaults>
</compile_context>

<pallas_src>
import functools

import jax
import jax.numpy as jnp
import numpy as np
from jax.experimental import pallas as pl
from jax.experimental.pallas import tpu as pltpu


def _attention_pool_kernel(tok_ref, offm_ref, pkv_ref, wf_ref, wc_ref, bc_ref,
                           hs_ref, hbt_ref, o_ref, *, num_heads, hw_real):
    """One grid step == TB batch elements.

    tok_ref : (TB, HWp, C) f32   spatial tokens, sequence-major (HW padded to 8)
    offm_ref: (1, 3C)      f32   pos[0] @ [Wk|Wv|Wq]^T + [bk|bv|bq]
    pkv_ref : (HWp, 2C)    f32   pos[1:] @ [Wk|Wv]^T + [bk|bv]
    wf_ref  : (C, 3C)      bf16  fused [Wk^T | Wv^T | Wq^T]
    wc_ref  : (C, ODp)     bf16  output projection (lane-padded)
    bc_ref  : (1, ODp)     f32
    hs_ref  : (C, H)       bf16  0/1 head-sum matrix (score reduction)
    hbt_ref : (H, C)       bf16  0/1 head-broadcast matrix (prob expansion)
    o_ref   : (TB, ODp)    f32   dense, lane-aligned output block
    """
    TB, HWp, C = tok_ref.shape
    H = num_heads
    D = C // H
    scale = 1.0 / float(D) ** 0.5
    bf16 = jnp.bfloat16
    f32 = jnp.float32

    tok = tok_ref[...]                                    # (TB, HWp, C) f32
    tok_flat = tok.reshape(TB * HWp, C)                   # free (HWp % 8 == 0)

    # Mean/query token (padded rows are zero; divide by the real HW).
    mean_tok = jnp.sum(tok, axis=1) * (1.0 / hw_real)     # (TB, C)

    wf = wf_ref[...]                                      # (C, 3C) bf16

    # Fused k/v/q projection of the mean row (biases + pos folded into offm).
    mean_p = (jnp.dot(mean_tok.astype(bf16), wf, preferred_element_type=f32)
              + offm_ref[...])                            # (TB, 3C)
    k_mean = mean_p[:, :C]
    v_mean = mean_p[:, C:2 * C]
    q = mean_p[:, 2 * C:] * scale                         # (TB, C)

    # Fused k/v projection of the token rows (big-M MXU op, N = 2C).
    kv = (jnp.dot(tok_flat.astype(bf16), wf[:, :2 * C], preferred_element_type=f32)
          .reshape(TB, HWp, 2 * C) + pkv_ref[...][None, :, :])
    k_tok = kv[:, :, :C]                                  # (TB, HWp, C)
    v_tok = kv[:, :, C:]                                  # (TB, HWp, C)

    # Per-head scores: reduce each head's D lanes with the (C, H) 0/1 matmul.
    kq = (k_tok * q[:, None, :]).reshape(TB * HWp, C)
    s_tok = jnp.dot(kq.astype(bf16), hs_ref[...],
                    preferred_element_type=f32).reshape(TB, HWp, H)
    s_mean = jnp.dot((k_mean * q).astype(bf16), hs_ref[...],
                     preferred_element_type=f32)          # (TB, H)

    if HWp != hw_real:
        # Statically-known spatial padding: mask the padded keys out.
        row = jax.lax.broadcasted_iota(jnp.int32, (TB, HWp, H), 1)
        s_tok = jnp.where(row < hw_real, s_tok, -jnp.inf)

    # Softmax over the L = HW + 1 keys ({mean row} U {token rows}), f32.
    m = jnp.maximum(jnp.max(s_tok, axis=1), s_mean)       # (TB, H)
    p_tok = jnp.exp(s_tok - m[:, None, :])                # (TB, HWp, H)
    p_mean = jnp.exp(s_mean - m)                          # (TB, H)
    inv = 1.0 / (jnp.sum(p_tok, axis=1) + p_mean)         # exact, tiny tensor
    p_tok = p_tok * inv[:, None, :]
    p_mean = p_mean * inv

    # Broadcast normalized probabilities back to the C value lanes.
    pe_tok = jnp.dot(p_tok.reshape(TB * HWp, H).astype(bf16), hbt_ref[...],
                     preferred_element_type=f32).reshape(TB, HWp, C)
    pe_mean = jnp.dot(p_mean.astype(bf16), hbt_ref[...],
                      preferred_element_type=f32)         # (TB, C)

    # Weighted value sum + output projection.
    attn = jnp.sum(pe_tok * v_tok, axis=1) + pe_mean * v_mean     # (TB, C)
    o_ref[...] = (jnp.dot(attn.astype(bf16), wc_ref[...],
                          preferred_element_type=f32) + bc_ref[...])


def attention_pool2d(x, pos_emb, wq, bq, wk, bk, wv, bv, wc, bc, *,
                     num_heads, batch_tile=8):
    """x: (N, C, H, W) float32 -> (N, output_dim) float32."""
    N, C, H_sp, W_sp = x.shape
    HW = H_sp * W_sp
    L = HW + 1
    out_dim = wc.shape[0]
    assert pos_emb.shape == (L, C)
    assert C % num_heads == 0
    f32, bf16 = jnp.float32, jnp.bfloat16

    # NCHW -> (N, HW, C) once in XLA so the kernel never transposes (the
    # vxpose slot would otherwise contend with vmatmul).
    tok = jnp.transpose(x.reshape(N, C, HW), (0, 2, 1)).astype(f32)

    # Pad the spatial axis to a sublane multiple (free reshapes in-kernel);
    # padded keys are masked inside the kernel (e.g. CLIP HW=49 -> 56).
    HWp = ((HW + 7) // 8) * 8
    if HWp != HW:
        tok = jnp.pad(tok, ((0, 0), (0, HWp - HW), (0, 0)))

    # Batch tiling.  Keep >= 2 grid steps when possible (v7x megacore) and the
    # output block sublane-aligned when the grid has more than one step.
    TB = max(1, min(batch_tile, N))
    if TB < N:
        TB = ((TB + 7) // 8) * 8
    num_tiles = pl.cdiv(N, TB)
    Np = num_tiles * TB
    if Np != N:
        tok = jnp.pad(tok, ((0, Np - N), (0, 0), (0, 0)))

    # Fused weights [Wk^T | Wv^T | Wq^T] (in, out), bf16 for the MXU.
    wf = jnp.concatenate([wk.T, wv.T, wq.T], axis=1).astype(bf16)      # (C, 3C)

    # Positional embedding + biases folded into additive offsets (f32).
    pos0 = pos_emb[0:1, :].astype(f32)      # (1, C)   mean/query token
    pos_t = pos_emb[1:, :].astype(f32)      # (HW, C)  spatial tokens
    offm = jnp.concatenate([pos0 @ wk.T + bk[None, :],
                            pos0 @ wv.T + bv[None, :],
                            pos0 @ wq.T + bq[None, :]], axis=1)        # (1, 3C)
    pkv = jnp.concatenate([pos_t @ wk.T + bk[None, :],
                           pos_t @ wv.T + bv[None, :]], axis=1)        # (HW, 2C)
    if HWp != HW:
        pkv = jnp.pad(pkv, ((0, HWp - HW), (0, 0)))

    # Output projection lane-padded to a multiple of 128 -> unmasked stores.
    ODp = max(128, ((out_dim + 127) // 128) * 128)
    wc_t = wc.T.astype(bf16)                                           # (C, out)
    bc2 = bc.reshape(1, out_dim).astype(f32)
    if ODp != out_dim:
        wc_t = jnp.pad(wc_t, ((0, 0), (0, ODp - out_dim)))
        bc2 = jnp.pad(bc2, ((0, 0), (0, ODp - out_dim)))

    # 0/1 head reduce / broadcast matrices (exact in bf16).
    Hh = num_heads
    head_idx = jnp.arange(C, dtype=jnp.int32) // (C // Hh)
    hs = (head_idx[:, None] == jnp.arange(Hh, dtype=jnp.int32)[None, :]
          ).astype(bf16)                                               # (C, H)
    hbt = hs.T                                                         # (H, C)

    # VMEM budget: ~85% of reported per-core capacity, capped at 110 MiB
    # (v5e/v6e ~108 MiB, v7x ~54 MiB).
    try:
        cap = int(pltpu.get_tpu_info().vmem_capacity_bytes)
    except Exception:
        cap = 64 * 1024 * 1024
    vmem_limit = max(32 * 1024 * 1024, min(int(cap * 0.85), 110 * 1024 * 1024))

    kernel = functools.partial(_attention_pool_kernel, num_heads=Hh, hw_real=HW)
    inv_map = lambda b: (0, 0)        # grid-invariant 2-D blocks
    single = pl.Buffered(1)           # single-buffer invariant operands

    out = pl.pallas_call(
        kernel,
        out_shape=jax.ShapeDtypeStruct((Np, ODp), f32),
        grid_spec=pltpu.PrefetchScalarGridSpec(
            num_scalar_prefetch=0,
            grid=(num_tiles,),
            in_specs=[
                pl.BlockSpec((TB, HWp, C), lambda b: (b, 0, 0)),   # tokens
                pl.BlockSpec((1, 3 * C), inv_map, pipeline_mode=single),    # offm
                pl.BlockSpec((HWp, 2 * C), inv_map, pipeline_mode=single),  # pkv
                pl.BlockSpec((C, 3 * C), inv_map, pipeline_mode=single),    # Wkvq
                pl.BlockSpec((C, ODp), inv_map, pipeline_mode=single),      # Wc
                pl.BlockSpec((1, ODp), inv_map, pipeline_mode=single),      # bc
                pl.BlockSpec((C, Hh), inv_map, pipeline_mode=single),       # head sum
                pl.BlockSpec((Hh, C), inv_map, pipeline_mode=single),       # head bcast
            ],
            out_specs=pl.BlockSpec((TB, ODp), lambda b: (b, 0)),
        ),
        compiler_params=pltpu.CompilerParams(
            dimension_semantics=("parallel",),
            vmem_limit_bytes=vmem_limit,
        ),
    )(tok, offm, pkv, wf, wc_t, bc2, hs, hbt)
    return out[:N, :out_dim]


def _reference(x, pos_emb, wq, bq, wk, bk, wv, bv, wc, bc, *, num_heads):
    """Plain-JAX f32 replica of the PyTorch forward (for verification)."""
    N, C, H, W = x.shape
    HW = H * W
    L = HW + 1
    D = C // num_heads
    t = jnp.transpose(x.reshape(N, C, HW), (2, 0, 1))            # (HW, N, C)
    t = jnp.concatenate([t.mean(axis=0, keepdims=True), t], 0)   # (L, N, C)
    t = t + pos_emb[:, None, :]
    q = t @ wq.T + bq
    k = t @ wk.T + bk
    v = t @ wv.T + bv
    q = q * (D ** -0.5)
    qh = q.reshape(L, N, num_heads, D)
    kh = k.reshape(L, N, num_heads, D)
    vh = v.reshape(L, N, num_heads, D)
    s = jnp.einsum('lnhd,mnhd->nhlm', qh, kh)
    p = jax.nn.softmax(s, axis=-1)
    o = jnp.einsum('nhlm,mnhd->lnhd', p, vh).reshape(L, N, C)
    o = o @ wc.T + bc
    return o[0]


if __name__ == "__main__":
    # Module hyper-parameters (small, attention-friendly).
    spacial_dim = 8            # H = W = 8  -> HW = 64, seq = 65
    embed_dim = 64
    num_heads = 4
    output_dim = 32
    batch = 16                 # -> 2 grid steps at batch_tile=8 (megacore)

    key = jax.random.PRNGKey(0)
    ks = jax.random.split(key, 10)

    L = spacial_dim ** 2 + 1
    x = jax.random.normal(ks[0], (batch, embed_dim, spacial_dim, spacial_dim),
                          dtype=jnp.float32)
    pos_emb = (jax.random.normal(ks[1], (L, embed_dim), dtype=jnp.float32)
               / (embed_dim ** 0.5))
    # Deterministic synthetic weights (PyTorch Linear shapes: (out, in)).
    wq = 0.05 * jax.random.normal(ks[2], (embed_dim, embed_dim), jnp.float32)
    bq = 0.01 * jax.random.normal(ks[3], (embed_dim,), jnp.float32)
    wk = 0.05 * jax.random.normal(ks[4], (embed_dim, embed_dim), jnp.float32)
    bk = 0.01 * jax.random.normal(ks[5], (embed_dim,), jnp.float32)
    wv = 0.05 * jax.random.normal(ks[6], (embed_dim, embed_dim), jnp.float32)
    bv = 0.01 * jax.random.normal(ks[7], (embed_dim,), jnp.float32)
    wc = 0.05 * jax.random.normal(ks[8], (output_dim, embed_dim), jnp.float32)
    bc = 0.01 * jax.random.normal(ks[9], (output_dim,), jnp.float32)

    out = attention_pool2d(x, pos_emb, wq, bq, wk, bk, wv, bv, wc, bc,
                           num_heads=num_heads)
    out = jax.block_until_ready(out)

    ref = _reference(x, pos_emb, wq, bq, wk, bk, wv, bv, wc, bc,
                     num_heads=num_heads)
    # Tolerance 2e-2: MXU matmuls now use bf16 operands (f32 accumulation);
    # measured error is well below this, headroom keeps the check non-flaky.
    np.testing.assert_allclose(np.asarray(out), np.asarray(ref),
                               rtol=2e-2, atol=2e-2)
    print("KERNEL_OK")
</pallas_src>

<mosaic_0001>
module attributes {stable_mosaic.version = 11 : i64} {
  func.func @_attention_pool_kernel(%arg0: i32, %arg1: memref<8x64x64xf32, #tpu.memory_space<vmem>>, %arg2: memref<1x192xf32, #tpu.memory_space<vmem>>, %arg3: memref<64x128xf32, #tpu.memory_space<vmem>>, %arg4: memref<64x192xbf16, #tpu.memory_space<vmem>>, %arg5: memref<64x128xbf16, #tpu.memory_space<vmem>>, %arg6: memref<1x128xf32, #tpu.memory_space<vmem>>, %arg7: memref<64x4xbf16, #tpu.memory_space<vmem>>, %arg8: memref<4x64xbf16, #tpu.memory_space<vmem>>, %arg9: memref<8x128xf32, #tpu.memory_space<vmem>>) attributes {dimension_semantics = [#tpu.dimension_semantics<parallel>], iteration_bounds = array<i64: 2>, scalar_prefetch = 0 : i64, scratch_operands = 0 : i64, tpu.core_type = #tpu.core_type<tc>, window_params = [{transform_indices = @transform_0, window_bounds = array<i64: 8, 64, 64>}, {pipeline_mode = #tpu.pipeline_mode<synchronous>, transform_indices = @transform_1, window_bounds = array<i64: 1, 192>}, {pipeline_mode = #tpu.pipeline_mode<synchronous>, transform_indices = @transform_2, window_bounds = array<i64: 64, 128>}, {pipeline_mode = #tpu.pipeline_mode<synchronous>, transform_indices = @transform_3, window_bounds = array<i64: 64, 192>}, {pipeline_mode = #tpu.pipeline_mode<synchronous>, transform_indices = @transform_4, window_bounds = array<i64: 64, 128>}, {pipeline_mode = #tpu.pipeline_mode<synchronous>, transform_indices = @transform_5, window_bounds = array<i64: 1, 128>}, {pipeline_mode = #tpu.pipeline_mode<synchronous>, transform_indices = @transform_6, window_bounds = array<i64: 64, 4>}, {pipeline_mode = #tpu.pipeline_mode<synchronous>, transform_indices = @transform_7, window_bounds = array<i64: 4, 64>}, {transform_indices = @transform_8, window_bounds = array<i64: 8, 128>}]} {
    %c0 = arith.constant 0 : index
    %c0_0 = arith.constant 0 : index
    %c0_1 = arith.constant 0 : index
    %0 = vector.load %arg1[%c0, %c0_0, %c0_1] : memref<8x64x64xf32, #tpu.memory_space<vmem>>, vector<8x64x64xf32>
    %1 = vector.shape_cast %0 : vector<8x64x64xf32> to vector<512x64xf32>
    %cst = arith.constant dense<0.000000e+00> : vector<8x64xf32>
    %2 = vector.multi_reduction <add>, %0, %cst [1] : vector<8x64x64xf32> to vector<8x64xf32>
    %cst_2 = arith.constant 1.562500e-02 : f32
    %3 = vector.broadcast %cst_2 : f32 to vector<8x64xf32>
    %4 = arith.mulf %2, %3 : vector<8x64xf32>
    %c0_3 = arith.constant 0 : index
    %c0_4 = arith.constant 0 : index
    %5 = vector.load %arg4[%c0_3, %c0_4] : memref<64x192xbf16, #tpu.memory_space<vmem>>, vector<64x192xbf16>
    %6 = arith.truncf %4 : vector<8x64xf32> to vector<8x64xbf16>
    %cst_5 = arith.constant dense<0.000000e+00> : vector<8x192xf32>
    %7 = tpu.matmul %6, %5, %cst_5 {dimension_numbers = #tpu.dot_dimension_numbers<[1], [0], [0], [1], [0, 0, 1, 1], [], []>} : vector<8x64xbf16>, vector<64x192xbf16>, vector<8x192xf32> -> vector<8x192xf32>
    %c0_6 = arith.constant 0 : index
    %c0_7 = arith.constant 0 : index
    %8 = vector.load %arg2[%c0_6, %c0_7] : memref<1x192xf32, #tpu.memory_space<vmem>>, vector<1x192xf32>
    %9 = vector.broadcast %8 : vector<1x192xf32> to vector<8x192xf32>
    %10 = arith.addf %7, %9 : vector<8x192xf32>
    %11 = vector.extract_strided_slice %10 {offsets = [0, 0], sizes = [8, 64], strides = [1, 1]} : vector<8x192xf32> to vector<8x64xf32>
    %12 = vector.extract_strided_slice %10 {offsets = [0, 64], sizes = [8, 64], strides = [1, 1]} : vector<8x192xf32> to vector<8x64xf32>
    %13 = vector.extract_strided_slice %10 {offsets = [0, 128], sizes = [8, 64], strides = [1, 1]} : vector<8x192xf32> to vector<8x64xf32>
    %cst_8 = arith.constant 2.500000e-01 : f32
    %14 = vector.broadcast %cst_8 : f32 to vector<8x64xf32>
    %15 = arith.mulf %13, %14 : vector<8x64xf32>
    %16 = arith.truncf %1 : vector<512x64xf32> to vector<512x64xbf16>
    %17 = vector.extract_strided_slice %5 {offsets = [0, 0], sizes = [64, 128], strides = [1, 1]} : vector<64x192xbf16> to vector<64x128xbf16>
    %cst_9 = arith.constant dense<0.000000e+00> : vector<512x128xf32>
    %18 = tpu.matmul %16, %17, %cst_9 {dimension_numbers = #tpu.dot_dimension_numbers<[1], [0], [0], [1], [0, 0, 1, 1], [], []>} : vector<512x64xbf16>, vector<64x128xbf16>, vector<512x128xf32> -> vector<512x128xf32>
    %19 = vector.shape_cast %18 : vector<512x128xf32> to vector<8x64x128xf32>
    %c0_10 = arith.constant 0 : index
    %c0_11 = arith.constant 0 : index
    %20 = vector.load %arg3[%c0_10, %c0_11] : memref<64x128xf32, #tpu.memory_space<vmem>>, vector<64x128xf32>
    %21 = vector.shape_cast %20 : vector<64x128xf32> to vector<1x64x128xf32>
    %22 = vector.broadcast %21 : vector<1x64x128xf32> to vector<8x64x128xf32>
    %23 = arith.addf %19, %22 : vector<8x64x128xf32>
    %24 = vector.extract_strided_slice %23 {offsets = [0, 0, 0], sizes = [8, 64, 64], strides = [1, 1, 1]} : vector<8x64x128xf32> to vector<8x64x64xf32>
    %25 = vector.extract_strided_slice %23 {offsets = [0, 0, 64], sizes = [8, 64, 64], strides = [1, 1, 1]} : vector<8x64x128xf32> to vector<8x64x64xf32>
    %26 = vector.shape_cast %15 : vector<8x64xf32> to vector<8x1x64xf32>
    %27 = vector.broadcast %26 : vector<8x1x64xf32> to vector<8x64x64xf32>
    %28 = arith.mulf %24, %27 : vector<8x64x64xf32>
    %29 = vector.shape_cast %28 : vector<8x64x64xf32> to vector<512x64xf32>
    %30 = arith.truncf %29 : vector<512x64xf32> to vector<512x64xbf16>
    %c0_12 = arith.constant 0 : index
    %c0_13 = arith.constant 0 : index
    %31 = vector.load %arg7[%c0_12, %c0_13] : memref<64x4xbf16, #tpu.memory_space<vmem>>, vector<64x4xbf16>
    %cst_14 = arith.constant dense<0.000000e+00> : vector<512x4xf32>
    %32 = tpu.matmul %30, %31, %cst_14 {dimension_numbers = #tpu.dot_dimension_numbers<[1], [0], [0], [1], [0, 0, 1, 1], [], []>} : vector<512x64xbf16>, vector<64x4xbf16>, vector<512x4xf32> -> vector<512x4xf32>
    %33 = vector.shape_cast %32 : vector<512x4xf32> to vector<8x64x4xf32>
    %34 = arith.mulf %11, %15 : vector<8x64xf32>
    %35 = arith.truncf %34 : vector<8x64xf32> to vector<8x64xbf16>
    %c0_15 = arith.constant 0 : index
    %c0_16 = arith.constant 0 : index
    %36 = vector.load %arg7[%c0_15, %c0_16] : memref<64x4xbf16, #tpu.memory_space<vmem>>, vector<64x4xbf16>
    %cst_17 = arith.constant dense<0.000000e+00> : vector<8x4xf32>
    %37 = tpu.matmul %35, %36, %cst_17 {dimension_numbers = #tpu.dot_dimension_numbers<[1], [0], [0], [1], [0, 0, 1, 1], [], []>} : vector<8x64xbf16>, vector<64x4xbf16>, vector<8x4xf32> -> vector<8x4xf32>
    %cst_18 = arith.constant dense<0xFF800000> : vector<8x4xf32>
    %38 = vector.multi_reduction <maximumf>, %33, %cst_18 [1] : vector<8x64x4xf32> to vector<8x4xf32>
    %39 = arith.maximumf %38, %37 : vector<8x4xf32>
    %40 = vector.shape_cast %39 : vector<8x4xf32> to vector<8x1x4xf32>
    %41 = vector.broadcast %40 : vector<8x1x4xf32> to vector<8x64x4xf32>
    %42 = arith.subf %33, %41 : vector<8x64x4xf32>
    %43 = math.exp %42 : vector<8x64x4xf32>
    %44 = arith.subf %37, %39 : vector<8x4xf32>
    %45 = math.exp %44 : vector<8x4xf32>
    %cst_19 = arith.constant dense<0.000000e+00> : vector<8x4xf32>
    %46 = vector.multi_reduction <add>, %43, %cst_19 [1] : vector<8x64x4xf32> to vector<8x4xf32>
    %47 = arith.addf %46, %45 : vector<8x4xf32>
    %cst_20 = arith.constant 1.000000e+00 : f32
    %48 = vector.broadcast %cst_20 : f32 to vector<8x4xf32>
    %49 = arith.divf %48, %47 : vector<8x4xf32>
    %50 = vector.shape_cast %49 : vector<8x4xf32> to vector<8x1x4xf32>
    %51 = vector.broadcast %50 : vector<8x1x4xf32> to vector<8x64x4xf32>
    %52 = arith.mulf %43, %51 : vector<8x64x4xf32>
    %53 = arith.mulf %45, %49 : vector<8x4xf32>
    %54 = vector.shape_cast %52 : vector<8x64x4xf32> to vector<512x4xf32>
    %55 = arith.truncf %54 : vector<512x4xf32> to vector<512x4xbf16>
    %c0_21 = arith.constant 0 : index
    %c0_22 = arith.constant 0 : index
    %56 = vector.load %arg8[%c0_21, %c0_22] : memref<4x64xbf16, #tpu.memory_space<vmem>>, vector<4x64xbf16>
    %cst_23 = arith.constant dense<0.000000e+00> : vector<512x64xf32>
    %57 = tpu.matmul %55, %56, %cst_23 {dimension_numbers = #tpu.dot_dimension_numbers<[1], [0], [0], [1], [0, 0, 1, 1], [], []>} : vector<512x4xbf16>, vector<4x64xbf16>, vector<512x64xf32> -> vector<512x64xf32>
    %58 = vector.shape_cast %57 : vector<512x64xf32> to vector<8x64x64xf32>
    %59 = arith.truncf %53 : vector<8x4xf32> to vector<8x4xbf16>
    %c0_24 = arith.constant 0 : index
    %c0_25 = arith.constant 0 : index
    %60 = vector.load %arg8[%c0_24, %c0_25] : memref<4x64xbf16, #tpu.memory_space<vmem>>, vector<4x64xbf16>
    %cst_26 = arith.constant dense<0.000000e+00> : vector<8x64xf32>
    %61 = tpu.matmul %59, %60, %cst_26 {dimension_numbers = #tpu.dot_dimension_numbers<[1], [0], [0], [1], [0, 0, 1, 1], [], []>} : vector<8x4xbf16>, vector<4x64xbf16>, vector<8x64xf32> -> vector<8x64xf32>
    %62 = arith.mulf %58, %25 : vector<8x64x64xf32>
    %cst_27 = arith.constant dense<0.000000e+00> : vector<8x64xf32>
    %63 = vector.multi_reduction <add>, %62, %cst_27 [1] : vector<8x64x64xf32> to vector<8x64xf32>
    %64 = arith.mulf %61, %12 : vector<8x64xf32>
    %65 = arith.addf %63, %64 : vector<8x64xf32>
    %66 = arith.truncf %65 : vector<8x64xf32> to vector<8x64xbf16>
    %c0_28 = arith.constant 0 : index
    %c0_29 = arith.constant 0 : index
    %67 = vector.load %arg5[%c0_28, %c0_29] : memref<64x128xbf16, #tpu.memory_space<vmem>>, vector<64x128xbf16>
    %cst_30 = arith.constant dense<0.000000e+00> : vector<8x128xf32>
    %68 = tpu.matmul %66, %67, %cst_30 {dimension_numbers = #tpu.dot_dimension_numbers<[1], [0], [0], [1], [0, 0, 1, 1], [], []>} : vector<8x64xbf16>, vector<64x128xbf16>, vector<8x128xf32> -> vector<8x128xf32>
    %c0_31 = arith.constant 0 : index
    %c0_32 = arith.constant 0 : index
    %69 = vector.load %arg6[%c0_31, %c0_32] : memref<1x128xf32, #tpu.memory_space<vmem>>, vector<1x128xf32>
    %70 = vector.broadcast %69 : vector<1x128xf32> to vector<8x128xf32>
    %71 = arith.addf %68, %70 : vector<8x128xf32>
    %c0_33 = arith.constant 0 : index
    %c0_34 = arith.constant 0 : index
    %72 = vector.load %arg9[%c0_33, %c0_34] : memref<8x128xf32, #tpu.memory_space<vmem>>, vector<8x128xf32>
    tpu.vector_store %arg9[%c0_33, %c0_34], %71 {strides = array<i32>} : memref<8x128xf32, #tpu.memory_space<vmem>>, vector<8x128xf32>,
    return
  }
  func.func @transform_0(%arg0: i32) -> (i32, i32, i32) {
    %c0_i32 = arith.constant 0 : i32
    %c0_i32_0 = arith.constant 0 : i32
    %c0_i32_1 = arith.constant 0 : i32
    return %arg0, %c0_i32, %c0_i32_0 : i32, i32, i32
  }
  func.func @transform_1(%arg0: i32) -> (i32, i32) {
    %c0_i32 = arith.constant 0 : i32
    %c0_i32_0 = arith.constant 0 : i32
    %c0_i32_1 = arith.constant 0 : i32
    return %c0_i32, %c0_i32_0 : i32, i32
  }
  func.func @transform_2(%arg0: i32) -> (i32, i32) {
    %c0_i32 = arith.constant 0 : i32
    %c0_i32_0 = arith.constant 0 : i32
    %c0_i32_1 = arith.constant 0 : i32
    return %c0_i32, %c0_i32_0 : i32, i32
  }
  func.func @transform_3(%arg0: i32) -> (i32, i32) {
    %c0_i32 = arith.constant 0 : i32
    %c0_i32_0 = arith.constant 0 : i32
    %c0_i32_1 = arith.constant 0 : i32
    return %c0_i32, %c0_i32_0 : i32, i32
  }
  func.func @transform_4(%arg0: i32) -> (i32, i32) {
    %c0_i32 = arith.constant 0 : i32
    %c0_i32_0 = arith.constant 0 : i32
    %c0_i32_1 = arith.constant 0 : i32
    return %c0_i32, %c0_i32_0 : i32, i32
  }
  func.func @transform_5(%arg0: i32) -> (i32, i32) {
    %c0_i32 = arith.constant 0 : i32
    %c0_i32_0 = arith.constant 0 : i32
    %c0_i32_1 = arith.constant 0 : i32
    return %c0_i32, %c0_i32_0 : i32, i32
  }
  func.func @transform_6(%arg0: i32) -> (i32, i32) {
    %c0_i32 = arith.constant 0 : i32
    %c0_i32_0 = arith.constant 0 : i32
    %c0_i32_1 = arith.constant 0 : i32
    return %c0_i32, %c0_i32_0 : i32, i32
  }
  func.func @transform_7(%arg0: i32) -> (i32, i32) {
    %c0_i32 = arith.constant 0 : i32
    %c0_i32_0 = arith.constant 0 : i32
    %c0_i32_1 = arith.constant 0 : i32
    return %c0_i32, %c0_i32_0 : i32, i32
  }
  func.func @transform_8(%arg0: i32) -> (i32, i32) {
    %c0_i32 = arith.constant 0 : i32
    %c0_i32_0 = arith.constant 0 : i32
    return %arg0, %c0_i32 : i32, i32
  }
}

</mosaic_0001>

<llo_original>
// kernel: tpu_custom_call.1
$region0: #{tpu_custom_call.1}
  #allocation0 [shape = 'u32[]', space=smem, size = 0x4, offset = 0x4, fixed_abs, tag = 'smem constant byte address 0x4 - core index']
  #allocation1 [shape = 'u32[144,128]{1,0:T(1,128)}', space=vmem, size = 0x12000, scoped, tag = 'internal scratch']
  %s0 = inlined_call_operand.hbm [shape: f32[16,64,64], index: 0, kind: input, shape index: {}]
  %s1 = inlined_call_operand.vmem [shape: f32[1,192], index: 1, kind: input, shape index: {}]
  %s2 = inlined_call_operand.hbm [shape: f32[64,128], index: 2, kind: input, shape index: {}]
  %s3 = inlined_call_operand.hbm [shape: bf16[64,192], index: 3, kind: input, shape index: {}]
  %s4 = inlined_call_operand.vmem [shape: bf16[64,128], index: 4, kind: input, shape index: {}]
  %s5 = inlined_call_operand.vmem [shape: f32[1,128], index: 5, kind: input, shape index: {}]
  %s6 = inlined_call_operand.vmem [shape: bf16[64,4], index: 6, kind: input, shape index: {}]
  %s7 = inlined_call_operand.vmem [shape: bf16[4,64], index: 7, kind: input, shape index: {}]
  %s8 = inlined_call_operand.hbm [shape: f32[16,128], index: 8, kind: output, shape index: {}]
  %s9 = sld [smem:[#allocation0]]
  $region77: #{tpu_custom_call.1} parent=0
    _
  %s11 = ssub.s32 1, %s9
  %s12 = scalar_select 0, %s11, %s9
  $region1: #{tpu_custom_call.1} parent=0
    #allocation2 [shape = 'u8[524288]{0}', space=vmem, size = 0x80000, scoped, tag = 'input window, operand 0']
    #allocation3 [shape = 's32[2]{0}', space=sflag, size = 0x8, scoped, tag = 'scoped memory for tpu_custom_call.1']
    #allocation4 [shape = 's32[2]{0}', space=sflag, size = 0x8, scoped, tag = 'scoped memory for tpu_custom_call.1']
    #allocation5 [shape = 'u8[32768]{0}', space=vmem, size = 0x8000, scoped, tag = 'input window, operand 2, single buffered']
    #allocation6 [shape = 's32[1]{0}', space=sflag, size = 0x4, scoped, tag = 'scoped memory for tpu_custom_call.1']
    #allocation7 [shape = 'u8[32768]{0}', space=vmem, size = 0x8000, scoped, tag = 'input window, operand 3, single buffered']
    #allocation8 [shape = 'u8[8192]{0}', space=vmem, size = 0x2000, scoped, tag = 'output window, operand 0']
    %13 = vsyncpa [#allocation3], 0
    %s14 = scalar_lea.sflag [#allocation3], 1
    %15 = vsyncpa %s14, 0
    %16 = vsyncpa [#allocation6], 0
    %17 = vsyncpa [#allocation4], 0
    %s18 = scalar_lea.sflag [#allocation4], 1
    %19 = vsyncpa %s18, 0
    loop: start=0, step=1, limit=4
    $region2: #{tpu_custom_call.1} parent=1 // loop_pre_header
      _
    $region3: #{tpu_custom_call.1} parent=1 // loop_header
      %s21 = sphi 0, %s25
      %p22 = scmp.ge.s32.totalorder %s21, 4
      %s31 = sphi 0, %s33
      %s34 = sphi 0, %s31
      %s35 = sphi 0, %s34
      %s51 = sphi 0, %s35
      %s55 = sphi 0, %s55
      %s57 = sphi 0, %s55
      %s58 = sphi 0, %s57
      %s72 = sphi 0, %s58
      %s76 = sphi 0, %s76
      %s78 = sphi 0, %s76
      %s79 = sphi 0, %s78
      %s93 = sphi 0, %s79
      %s97 = sphi 0, %s97
      %s99 = sphi 0, %s97
      %s100 = sphi 0, %s99
      %s114 = sphi 0, %s100
      %s118 = sphi 0, %s118
      %s120 = sphi 0, %s118
      %s121 = sphi 0, %s120
      %s135 = sphi 0, %s121
      %s139 = sphi 0, %s139
      %s141 = sphi 0, %s139
      %s142 = sphi 0, %s141
      %s156 = sphi 0, %s142
      %s160 = sphi 0, %s160
      %s162 = sphi 0, %s160
      %s163 = sphi 0, %s162
      %s177 = sphi 0, %s163
      %s181 = sphi 0, %s181
      %s183 = sphi 0, %s181
      %s184 = sphi 0, %s183
      %s198 = sphi 0, %s184
      %s204 = sphi 0, %s206
      %s207 = sphi 0, %s204
      %s208 = sphi 0, %s207
      %s224 = sphi 0, %s208
    $region4: #{tpu_custom_call.1} parent=1 // loop_header_branch
      %24 = sbr.rel (%p22) target = $region8
    $region5: #{tpu_custom_call.1} parent=1 // loop_body
      %s26 = ssub.s32 %s21, 1
      %s27 = ssub.s32 %s21, 2
      %s28 = sadd.s32 %s21, 1
      %s29 = ssub.s32 %s21, %s28
      %p30 = scmp.eq.s32.totalorder %s29, 0
      %s32 = sadd.s32 %s31, 1
      %s33 = scalar_select %p30, %s31, %s32
      %p36 = pneg %p30
      %p37 = scmp.eq.s32.totalorder %s21, 1
      %p38 = por %p36, %p37
      %p39 = scmp.ne.s32.totalorder %s31, %s34
      %p40 = scmp.eq.s32.totalorder %s21, 0
      %p41 = por %p39, %p40
      %p42 = scmp.ne.s32.totalorder %s31, %s34
      %p43 = scmp.eq.s32.totalorder %s26, 1
      %p44 = por %p42, %p43
      %p45 = scmp.ne.s32.totalorder %s34, %s35
      %p46 = scmp.eq.s32.totalorder %s26, 0
      %p47 = por %p45, %p46
      %p48 = scmp.ne.s32.totalorder %s34, %s35
      %p49 = scmp.eq.s32.totalorder %s27, 1
      %p50 = por %p48, %p49
      %p52 = scmp.ne.s32.totalorder %s35, %s51
      %p53 = scmp.eq.s32.totalorder %s27, 0
      %p54 = por %p52, %p53
      %s56 = sadd.s32 %s55, 1
      %p59 = scmp.eq.s32.totalorder %s21, 1
      %p60 = scmp.ne.s32.totalorder %s55, %s57
      %p61 = scmp.eq.s32.totalorder %s21, 0
      %p62 = por %p60, %p61
      %p63 = scmp.ne.s32.totalorder %s55, %s57
      %p64 = scmp.eq.s32.totalorder %s26, 1
      %p65 = por %p63, %p64
      %p66 = scmp.ne.s32.totalorder %s57, %s58
      %p67 = scmp.eq.s32.totalorder %s26, 0
      %p68 = por %p66, %p67
      %p69 = scmp.ne.s32.totalorder %s57, %s58
      %p70 = scmp.eq.s32.totalorder %s27, 1
      %p71 = por %p69, %p70
      %p73 = scmp.ne.s32.totalorder %s58, %s72
      %p74 = scmp.eq.s32.totalorder %s27, 0
      %p75 = por %p73, %p74
      %s77 = sadd.s32 %s76, 1
      %p80 = scmp.eq.s32.totalorder %s21, 1
      %p81 = scmp.ne.s32.totalorder %s76, %s78
      %p82 = scmp.eq.s32.totalorder %s21, 0
      %p83 = por %p81, %p82
      %p84 = scmp.ne.s32.totalorder %s76, %s78
      %p85 = scmp.eq.s32.totalorder %s26, 1
      %p86 = por %p84, %p85
      %p87 = scmp.ne.s32.totalorder %s78, %s79
      %p88 = scmp.eq.s32.totalorder %s26, 0
      %p89 = por %p87, %p88
      %p90 = scmp.ne.s32.totalorder %s78, %s79
      %p91 = scmp.eq.s32.totalorder %s27, 1
      %p92 = por %p90, %p91
      %p94 = scmp.ne.s32.totalorder %s79, %s93
      %p95 = scmp.eq.s32.totalorder %s27, 0
      %p96 = por %p94, %p95
      %s98 = sadd.s32 %s97, 1
      %p101 = scmp.eq.s32.totalorder %s21, 1
      %p102 = scmp.ne.s32.totalorder %s97, %s99
      %p103 = scmp.eq.s32.totalorder %s21, 0
      %p104 = por %p102, %p103
      %p105 = scmp.ne.s32.totalorder %s97, %s99
      %p106 = scmp.eq.s32.totalorder %s26, 1
      %p107 = por %p105, %p106
      %p108 = scmp.ne.s32.totalorder %s99, %s100
      %p109 = scmp.eq.s32.totalorder %s26, 0
      %p110 = por %p108, %p109
      %p111 = scmp.ne.s32.totalorder %s99, %s100
      %p112 = scmp.eq.s32.totalorder %s27, 1
      %p113 = por %p111, %p112
      %p115 = scmp.ne.s32.totalorder %s100, %s114
      %p116 = scmp.eq.s32.totalorder %s27, 0
      %p117 = por %p115, %p116
      %s119 = sadd.s32 %s118, 1
      %p122 = scmp.eq.s32.totalorder %s21, 1
      %p123 = scmp.ne.s32.totalorder %s118, %s120
      %p124 = scmp.eq.s32.totalorder %s21, 0
      %p125 = por %p123, %p124
      %p126 = scmp.ne.s32.totalorder %s118, %s120
      %p127 = scmp.eq.s32.totalorder %s26, 1
      %p128 = por %p126, %p127
      %p129 = scmp.ne.s32.totalorder %s120, %s121
      %p130 = scmp.eq.s32.totalorder %s26, 0
      %p131 = por %p129, %p130
      %p132 = scmp.ne.s32.totalorder %s120, %s121
      %p133 = scmp.eq.s32.totalorder %s27, 1
      %p134 = por %p132, %p133
      %p136 = scmp.ne.s32.totalorder %s121, %s135
      %p137 = scmp.eq.s32.totalorder %s27, 0
      %p138 = por %p136, %p137
      %s140 = sadd.s32 %s139, 1
      %p143 = scmp.eq.s32.totalorder %s21, 1
      %p144 = scmp.ne.s32.totalorder %s139, %s141
      %p145 = scmp.eq.s32.totalorder %s21, 0
      %p146 = por %p144, %p145
      %p147 = scmp.ne.s32.totalorder %s139, %s141
      %p148 = scmp.eq.s32.totalorder %s26, 1
      %p149 = por %p147, %p148
      %p150 = scmp.ne.s32.totalorder %s141, %s142
      %p151 = scmp.eq.s32.totalorder %s26, 0
      %p152 = por %p150, %p151
      %p153 = scmp.ne.s32.totalorder %s141, %s142
      %p154 = scmp.eq.s32.totalorder %s27, 1
      %p155 = por %p153, %p154
      %p157 = scmp.ne.s32.totalorder %s142, %s156
      %p158 = scmp.eq.s32.totalorder %s27, 0
      %p159 = por %p157, %p158
      %s161 = sadd.s32 %s160, 1
      %p164 = scmp.eq.s32.totalorder %s21, 1
      %p165 = scmp.ne.s32.totalorder %s160, %s162
      %p166 = scmp.eq.s32.totalorder %s21, 0
      %p167 = por %p165, %p166
      %p168 = scmp.ne.s32.totalorder %s160, %s162
      %p169 = scmp.eq.s32.totalorder %s26, 1
      %p170 = por %p168, %p169
      %p171 = scmp.ne.s32.totalorder %s162, %s163
      %p172 = scmp.eq.s32.totalorder %s26, 0
      %p173 = por %p171, %p172
      %p174 = scmp.ne.s32.totalorder %s162, %s163
      %p175 = scmp.eq.s32.totalorder %s27, 1
      %p176 = por %p174, %p175
      %p178 = scmp.ne.s32.totalorder %s163, %s177
      %p179 = scmp.eq.s32.totalorder %s27, 0
      %p180 = por %p178, %p179
      %s182 = sadd.s32 %s181, 1
      %p185 = scmp.eq.s32.totalorder %s21, 1
      %p186 = scmp.ne.s32.totalorder %s181, %s183
      %p187 = scmp.eq.s32.totalorder %s21, 0
      %p188 = por %p186, %p187
      %p189 = scmp.ne.s32.totalorder %s181, %s183
      %p190 = scmp.eq.s32.totalorder %s26, 1
      %p191 = por %p189, %p190
      %p192 = scmp.ne.s32.totalorder %s183, %s184
      %p193 = scmp.eq.s32.totalorder %s26, 0
      %p194 = por %p192, %p193
      %p195 = scmp.ne.s32.totalorder %s183, %s184
      %p196 = scmp.eq.s32.totalorder %s27, 1
      %p197 = por %p195, %p196
      %p199 = scmp.ne.s32.totalorder %s184, %s198
      %p200 = scmp.eq.s32.totalorder %s27, 0
      %p201 = por %p199, %p200
      %s202 = ssub.s32 %s21, %s28
      %p203 = scmp.eq.s32.totalorder %s202, 0
      %s205 = sadd.s32 %s204, 1
      %s206 = scalar_select %p203, %s204, %s205
      %p209 = pneg %p203
      %p210 = scmp.eq.s32.totalorder %s21, 1
      %p211 = por %p209, %p210
      %p212 = scmp.ne.s32.totalorder %s204, %s207
      %p213 = scmp.eq.s32.totalorder %s21, 0
      %p214 = por %p212, %p213
      %p215 = scmp.ne.s32.totalorder %s204, %s207
      %p216 = scmp.eq.s32.totalorder %s26, 1
      %p217 = por %p215, %p216
      %p218 = scmp.ne.s32.totalorder %s207, %s208
      %p219 = scmp.eq.s32.totalorder %s26, 0
      %p220 = por %p218, %p219
      %p221 = scmp.ne.s32.totalorder %s207, %s208
      %p222 = scmp.eq.s32.totalorder %s27, 1
      %p223 = por %p221, %p222
      %p225 = scmp.ne.s32.totalorder %s208, %s224
      %p226 = scmp.eq.s32.totalorder %s27, 0
      %p227 = por %p225, %p226
      %p228 = scmp.le.s32.totalorder 1, %s21
      %p229 = scmp.lt.s32.totalorder %s21, 3
      %p230 = pnand %p228, %p229
      %p231 = pneg %p230
      // Predicated region
      $region9: #{tpu_custom_call.1} parent=5 // pred_check
        _
      $region10: #{tpu_custom_call.1} parent=5 // pred_check_branch
        %233 = sbr.rel (%p230) target = $region12
      $region11: #{tpu_custom_call.1} parent=5 // pred_region
        %s234 = ssub.s32 %s21, 1
        // Predicated region
        $region13: #{tpu_custom_call.1} parent=11 // pred_check
          %p235 = pneg %p68
        $region14: #{tpu_custom_call.1} parent=11 // pred_check_branch
          %237 = sbr.rel (%p235) target = $region16
        $region15: #{tpu_custom_call.1} parent=11 // pred_region
          _
        $region16: #{tpu_custom_call.1} parent=11 // pred_fallthru
          _
        // Predicated region
        $region17: #{tpu_custom_call.1} parent=11 // pred_check
          %p238 = pneg %p89
        $region18: #{tpu_custom_call.1} parent=11 // pred_check_branch
          %240 = sbr.rel (%p238) target = $region20
        $region19: #{tpu_custom_call.1} parent=11 // pred_region
          %s242 = ssub.s32 1024, 1024
          %243 = vsyncadd [#allocation6], %s242
          %s244 = sshll.u32 [#allocation5], 4
          %s245 = int_to_ptr.vmem [resolvable:$true] %s244
          %250 = dma.hbm_to_vmem [thread:$0]  %s2, 1024, %s245, [#allocation6], 128, 128, 8
        $region20: #{tpu_custom_call.1} parent=11 // pred_fallthru
          _
        // Predicated region
        $region21: #{tpu_custom_call.1} parent=11 // pred_check
          %p251 = pneg %p110
        $region22: #{tpu_custom_call.1} parent=11 // pred_check_branch
          %253 = sbr.rel (%p251) target = $region24
        $region23: #{tpu_custom_call.1} parent=11 // pred_region
          %s255 = ssub.s32 1024, 1024
          %256 = vsyncadd [#allocation6], %s255
          %s257 = sshll.u32 [#allocation7], 4
          %s258 = int_to_ptr.vmem [resolvable:$true] %s257
          %263 = dma.hbm_to_vmem [thread:$0]  %s3, 1024, %s258, [#allocation6], 128, 128, 8
        $region24: #{tpu_custom_call.1} parent=11 // pred_fallthru
          _
        // Predicated region
        $region25: #{tpu_custom_call.1} parent=11 // pred_check
          %p264 = pneg %p131
        $region26: #{tpu_custom_call.1} parent=11 // pred_check_branch
          %266 = sbr.rel (%p264) target = $region28
        $region27: #{tpu_custom_call.1} parent=11 // pred_region
          _
        $region28: #{tpu_custom_call.1} parent=11 // pred_fallthru
          _
        // Predicated region
        $region29: #{tpu_custom_call.1} parent=11 // pred_check
          %p267 = pneg %p152
        $region30: #{tpu_custom_call.1} parent=11 // pred_check_branch
          %269 = sbr.rel (%p267) target = $region32
        $region31: #{tpu_custom_call.1} parent=11 // pred_region
          _
        $region32: #{tpu_custom_call.1} parent=11 // pred_fallthru
          _
        // Predicated region
        $region33: #{tpu_custom_call.1} parent=11 // pred_check
          %p270 = pneg %p173
        $region34: #{tpu_custom_call.1} parent=11 // pred_check_branch
          %272 = sbr.rel (%p270) target = $region36
        $region35: #{tpu_custom_call.1} parent=11 // pred_region
          _
        $region36: #{tpu_custom_call.1} parent=11 // pred_fallthru
          _
        // Predicated region
        $region37: #{tpu_custom_call.1} parent=11 // pred_check
          %p273 = pneg %p194
        $region38: #{tpu_custom_call.1} parent=11 // pred_check_branch
          %275 = sbr.rel (%p273) target = $region40
        $region39: #{tpu_custom_call.1} parent=11 // pred_region
          _
        $region40: #{tpu_custom_call.1} parent=11 // pred_fallthru
          _
      $region12: #{tpu_custom_call.1} parent=5 // pred_fallthru
        _
      %p276 = scmp.lt.s32.totalorder %s21, 2
      // Predicated region
      $region41: #{tpu_custom_call.1} parent=5 // pred_check
        %p277 = pneg %p276
      $region42: #{tpu_custom_call.1} parent=5 // pred_check_branch
        %279 = sbr.rel (%p277) target = $region44
      $region43: #{tpu_custom_call.1} parent=5 // pred_region
        // Predicated region
        $region45: #{tpu_custom_call.1} parent=43 // pred_check
          %p280 = pneg %p41
        $region46: #{tpu_custom_call.1} parent=43 // pred_check_branch
          %282 = sbr.rel (%p280) target = $region48
        $region47: #{tpu_custom_call.1} parent=43 // pred_region
          %s283 = sand.u32 %s31, 1
          %s284 = scalar_lea.sflag [#allocation3], %s283
          %s285 = sand.u32 %s31, 1
          %s286 = smul.addr %s285, 512
          %s287 = scalar_lea.vmem [#allocation2], %s286
          %s288 = smul.u32 8, %s21
          %s290 = ssub.s32 8192, 8192
          %291 = vsyncadd %s284, %s290
          %s292 = smul.addr %s288, 8
          %s293 = smul.addr %s292, 128
          %s294 = scalar_lea.hbm %s0, %s293
          %s295 = sshll.u32 %s287, 4
          %s296 = int_to_ptr.vmem [resolvable:$true] %s295
          %301 = dma.hbm_to_vmem [thread:$0]  %s294, 8192, %s296, %s284, 128, 128, 8
        $region48: #{tpu_custom_call.1} parent=43 // pred_fallthru
          _
      $region44: #{tpu_custom_call.1} parent=5 // pred_fallthru
        _
      %p302 = scmp.le.s32.totalorder 1, %s21
      %p303 = scmp.lt.s32.totalorder %s21, 3
      %p304 = pnand %p302, %p303
      %p305 = pneg %p304
      // Predicated region
      $region49: #{tpu_custom_call.1} parent=5 // pred_check
        _
      $region50: #{tpu_custom_call.1} parent=5 // pred_check_branch
        %307 = sbr.rel (%p304) target = $region52
      $region51: #{tpu_custom_call.1} parent=5 // pred_region
        %s308 = ssub.s32 %s21, 1
        %s309 = sand.u32 %s34, 1
        %s310 = scalar_lea.sflag [#allocation3], %s309
        %s311 = sand.u32 %s34, 1
        %s312 = smul.addr %s311, 512
        %s313 = scalar_lea.vmem [#allocation2], %s312
        // Predicated region
        $region53: #{tpu_custom_call.1} parent=51 // pred_check
          %p314 = pneg %p47
        $region54: #{tpu_custom_call.1} parent=51 // pred_check_branch
          %316 = sbr.rel (%p314) target = $region56
        $region55: #{tpu_custom_call.1} parent=51 // pred_region
          %317 = dma.done %s310, 8192
        $region56: #{tpu_custom_call.1} parent=51 // pred_fallthru
          _
        // Predicated region
        $region57: #{tpu_custom_call.1} parent=51 // pred_check
          %p318 = pneg %p89
        $region58: #{tpu_custom_call.1} parent=51 // pred_check_branch
          %320 = sbr.rel (%p318) target = $region60
        $region59: #{tpu_custom_call.1} parent=51 // pred_region
          %321 = dma.done [#allocation6], 1024
        $region60: #{tpu_custom_call.1} parent=51 // pred_fallthru
          _
        // Predicated region
        $region61: #{tpu_custom_call.1} parent=51 // pred_check
          %p322 = pneg %p110
        $region62: #{tpu_custom_call.1} parent=51 // pred_check_branch
          %324 = sbr.rel (%p322) target = $region64
        $region63: #{tpu_custom_call.1} parent=51 // pred_region
          %325 = dma.done [#allocation6], 1024
        $region64: #{tpu_custom_call.1} parent=51 // pred_fallthru
          _
        %s326 = sand.u32 %s34, 1
        %s327 = scalar_lea.sflag [#allocation3], %s326
        %s328 = sand.u32 %s34, 1
        %s329 = smul.addr %s328, 512
        %s330 = scalar_lea.vmem [#allocation2], %s329
        %p331 = pneg %p47
        %p332 = pneg %p44
        %p333 = pneg %p68
        %p334 = pneg %p65
        %p335 = pneg %p89
        %p336 = pneg %p86
        %p337 = pneg %p110
        %p338 = pneg %p107
        %p339 = pneg %p131
        %p340 = pneg %p128
        %p341 = pneg %p152
        %p342 = pneg %p149
        %p343 = pneg %p173
        %p344 = pneg %p170
        %p345 = pneg %p194
        %p346 = pneg %p191
        %p347 = pneg %p220
        %p348 = pneg %p217
        %s349 = sand.u32 %s207, 1
        %s350 = scalar_lea.sflag [#allocation4], %s349
        %s351 = sand.u32 %s207, 1
        %s352 = smul.addr %s351, 8
        %s353 = scalar_lea.vmem [#allocation8], %s352
        %s354 = smul.u32 8, %s26
        %v356 = vld [vmem:[%s313] sm:$0xff]
        %v357 = vld [vmem:[%s313 + $0x8] sm:$0xff]
        %v358 = vld [vmem:[%s313 + $0x10] sm:$0xff]
        %v359 = vld [vmem:[%s313 + $0x18] sm:$0xff]
        %v360 = vld [vmem:[%s313 + $0x20] sm:$0xff]
        %v361 = vld [vmem:[%s313 + $0x28] sm:$0xff]
        %v362 = vld [vmem:[%s313 + $0x30] sm:$0xff]
        %v363 = vld [vmem:[%s313 + $0x38] sm:$0xff]
        %v364 = vld [vmem:[%s313 + $0x40] sm:$0xff]
        %v365 = vld [vmem:[%s313 + $0x48] sm:$0xff]
        %v366 = vld [vmem:[%s313 + $0x50] sm:$0xff]
        %v367 = vld [vmem:[%s313 + $0x58] sm:$0xff]
        %v368 = vld [vmem:[%s313 + $0x60] sm:$0xff]
        %v369 = vld [vmem:[%s313 + $0x68] sm:$0xff]
        %v370 = vld [vmem:[%s313 + $0x70] sm:$0xff]
        %v371 = vld [vmem:[%s313 + $0x78] sm:$0xff]
        %v372 = vld [vmem:[%s313 + $0x80] sm:$0xff]
        %v373 = vld [vmem:[%s313 + $0x88] sm:$0xff]
        %v374 = vld [vmem:[%s313 + $0x90] sm:$0xff]
        %v375 = vld [vmem:[%s313 + $0x98] sm:$0xff]
        %v376 = vld [vmem:[%s313 + $0xa0] sm:$0xff]
        %v377 = vld [vmem:[%s313 + $0xa8] sm:$0xff]
        %v378 = vld [vmem:[%s313 + $0xb0] sm:$0xff]
        %v379 = vld [vmem:[%s313 + $0xb8] sm:$0xff]
        %v380 = vld [vmem:[%s313 + $0xc0] sm:$0xff]
        %v381 = vld [vmem:[%s313 + $0xc8] sm:$0xff]
        %v382 = vld [vmem:[%s313 + $0xd0] sm:$0xff]
        %v383 = vld [vmem:[%s313 + $0xd8] sm:$0xff]
        %v384 = vld [vmem:[%s313 + $0xe0] sm:$0xff]
        %v385 = vld [vmem:[%s313 + $0xe8] sm:$0xff]
        %v386 = vld [vmem:[%s313 + $0xf0] sm:$0xff]
        %v387 = vld [vmem:[%s313 + $0xf8] sm:$0xff]
        %v388 = vld [vmem:[%s313 + $0x100] sm:$0xff]
        %v389 = vld [vmem:[%s313 + $0x108] sm:$0xff]
        %v390 = vld [vmem:[%s313 + $0x110] sm:$0xff]
        %v391 = vld [vmem:[%s313 + $0x118] sm:$0xff]
        %v392 = vld [vmem:[%s313 + $0x120] sm:$0xff]
        %v393 = vld [vmem:[%s313 + $0x128] sm:$0xff]
        %v394 = vld [vmem:[%s313 + $0x130] sm:$0xff]
        %v395 = vld [vmem:[%s313 + $0x138] sm:$0xff]
        %v396 = vld [vmem:[%s313 + $0x140] sm:$0xff]
        %v397 = vld [vmem:[%s313 + $0x148] sm:$0xff]
        %v398 = vld [vmem:[%s313 + $0x150] sm:$0xff]
        %v399 = vld [vmem:[%s313 + $0x158] sm:$0xff]
        %v400 = vld [vmem:[%s313 + $0x160] sm:$0xff]
        %v401 = vld [vmem:[%s313 + $0x168] sm:$0xff]
        %v402 = vld [vmem:[%s313 + $0x170] sm:$0xff]
        %v403 = vld [vmem:[%s313 + $0x178] sm:$0xff]
        %v404 = vld [vmem:[%s313 + $0x180] sm:$0xff]
        %v405 = vld [vmem:[%s313 + $0x188] sm:$0xff]
        %v406 = vld [vmem:[%s313 + $0x190] sm:$0xff]
        %v407 = vld [vmem:[%s313 + $0x198] sm:$0xff]
        %v408 = vld [vmem:[%s313 + $0x1a0] sm:$0xff]
        %v409 = vld [vmem:[%s313 + $0x1a8] sm:$0xff]
        %v410 = vld [vmem:[%s313 + $0x1b0] sm:$0xff]
        %v411 = vld [vmem:[%s313 + $0x1b8] sm:$0xff]
        %v412 = vld [vmem:[%s313 + $0x1c0] sm:$0xff]
        %v413 = vld [vmem:[%s313 + $0x1c8] sm:$0xff]
        %v414 = vld [vmem:[%s313 + $0x1d0] sm:$0xff]
        %v415 = vld [vmem:[%s313 + $0x1d8] sm:$0xff]
        %v416 = vld [vmem:[%s313 + $0x1e0] sm:$0xff]
        %v417 = vld [vmem:[%s313 + $0x1e8] sm:$0xff]
        %v418 = vld [vmem:[%s313 + $0x1f0] sm:$0xff]
        %v419 = vld [vmem:[%s313 + $0x1f8] sm:$0xff]
        %vm420 = vcmask 523264
        %v421 = vsel %vm420, %v356, 0.0
        %v422 = vsel %vm420, %v357, 0.0
        %v423 = vadd.f32 %v421, %v422
        %v424 = vsel %vm420, %v358, 0.0
        %v425 = vadd.f32 %v423, %v424
        %v426 = vsel %vm420, %v359, 0.0
        %v427 = vadd.f32 %v425, %v426
        %v428 = vsel %vm420, %v360, 0.0
        %v429 = vadd.f32 %v427, %v428
        %v430 = vsel %vm420, %v361, 0.0
        %v431 = vadd.f32 %v429, %v430
        %v432 = vsel %vm420, %v362, 0.0
        %v433 = vadd.f32 %v431, %v432
        %v434 = vsel %vm420, %v363, 0.0
        %v435 = vadd.f32 %v433, %v434
        %v436 = vrot.slane %v435, 4
        %v437 = vadd.f32 %v435, %v436
        %v438 = vrot.slane %v437, 2
        %v439 = vadd.f32 %v437, %v438
        %v440 = vrot.slane %v439, 1
        %v441 = vadd.f32 %v439, %v440
        %v442 = vsel %vm420, %v364, 0.0
        %v443 = vsel %vm420, %v365, 0.0
        %v444 = vadd.f32 %v442, %v443
        %v445 = vsel %vm420, %v366, 0.0
        %v446 = vadd.f32 %v444, %v445
        %v447 = vsel %vm420, %v367, 0.0
        %v448 = vadd.f32 %v446, %v447
        %v449 = vsel %vm420, %v368, 0.0
        %v450 = vadd.f32 %v448, %v449
        %v451 = vsel %vm420, %v369, 0.0
        %v452 = vadd.f32 %v450, %v451
        %v453 = vsel %vm420, %v370, 0.0
        %v454 = vadd.f32 %v452, %v453
        %v455 = vsel %vm420, %v371, 0.0
        %v456 = vadd.f32 %v454, %v455
        %v457 = vrot.slane %v456, 4
        %v458 = vadd.f32 %v456, %v457
        %v459 = vrot.slane %v458, 2
        %v460 = vadd.f32 %v458, %v459
        %v461 = vrot.slane %v460, 1
        %v462 = vadd.f32 %v460, %v461
        %v463 = vsel %vm420, %v372, 0.0
        %v464 = vsel %vm420, %v373, 0.0
        %v465 = vadd.f32 %v463, %v464
        %v466 = vsel %vm420, %v374, 0.0
        %v467 = vadd.f32 %v465, %v466
        %v468 = vsel %vm420, %v375, 0.0
        %v469 = vadd.f32 %v467, %v468
        %v470 = vsel %vm420, %v376, 0.0
        %v471 = vadd.f32 %v469, %v470
        %v472 = vsel %vm420, %v377, 0.0
        %v473 = vadd.f32 %v471, %v472
        %v474 = vsel %vm420, %v378, 0.0
        %v475 = vadd.f32 %v473, %v474
        %v476 = vsel %vm420, %v379, 0.0
        %v477 = vadd.f32 %v475, %v476
        %v478 = vrot.slane %v477, 4
        %v479 = vadd.f32 %v477, %v478
        %v480 = vrot.slane %v479, 2
        %v481 = vadd.f32 %v479, %v480
        %v482 = vrot.slane %v481, 1
        %v483 = vadd.f32 %v481, %v482
        %v484 = vsel %vm420, %v380, 0.0
        %v485 = vsel %vm420, %v381, 0.0
        %v486 = vadd.f32 %v484, %v485
        %v487 = vsel %vm420, %v382, 0.0
        %v488 = vadd.f32 %v486, %v487
        %v489 = vsel %vm420, %v383, 0.0
        %v490 = vadd.f32 %v488, %v489
        %v491 = vsel %vm420, %v384, 0.0
        %v492 = vadd.f32 %v490, %v491
        %v493 = vsel %vm420, %v385, 0.0
        %v494 = vadd.f32 %v492, %v493
        %v495 = vsel %vm420, %v386, 0.0
        %v496 = vadd.f32 %v494, %v495
        %v497 = vsel %vm420, %v387, 0.0
        %v498 = vadd.f32 %v496, %v497
        %v499 = vrot.slane %v498, 4
        %v500 = vadd.f32 %v498, %v499
        %v501 = vrot.slane %v500, 2
        %v502 = vadd.f32 %v500, %v501
        %v503 = vrot.slane %v502, 1
        %v504 = vadd.f32 %v502, %v503
        %v505 = vsel %vm420, %v388, 0.0
        %v506 = vsel %vm420, %v389, 0.0
        %v507 = vadd.f32 %v505, %v506
        %v508 = vsel %vm420, %v390, 0.0
        %v509 = vadd.f32 %v507, %v508
        %v510 = vsel %vm420, %v391, 0.0
        %v511 = vadd.f32 %v509, %v510
        %v512 = vsel %vm420, %v392, 0.0
        %v513 = vadd.f32 %v511, %v512
        %v514 = vsel %vm420, %v393, 0.0
        %v515 = vadd.f32 %v513, %v514
        %v516 = vsel %vm420, %v394, 0.0
        %v517 = vadd.f32 %v515, %v516
        %v518 = vsel %vm420, %v395, 0.0
        %v519 = vadd.f32 %v517, %v518
        %v520 = vrot.slane %v519, 4
        %v521 = vadd.f32 %v519, %v520
        %v522 = vrot.slane %v521, 2
        %v523 = vadd.f32 %v521, %v522
        %v524 = vrot.slane %v523, 1
        %v525 = vadd.f32 %v523, %v524
        %v526 = vsel %vm420, %v396, 0.0
        %v527 = vsel %vm420, %v397, 0.0
        %v528 = vadd.f32 %v526, %v527
        %v529 = vsel %vm420, %v398, 0.0
        %v530 = vadd.f32 %v528, %v529
        %v531 = vsel %vm420, %v399, 0.0
        %v532 = vadd.f32 %v530, %v531
        %v533 = vsel %vm420, %v400, 0.0
        %v534 = vadd.f32 %v532, %v533
        %v535 = vsel %vm420, %v401, 0.0
        %v536 = vadd.f32 %v534, %v535
        %v537 = vsel %vm420, %v402, 0.0
        %v538 = vadd.f32 %v536, %v537
        %v539 = vsel %vm420, %v403, 0.0
        %v540 = vadd.f32 %v538, %v539
        %v541 = vrot.slane %v540, 4
        %v542 = vadd.f32 %v540, %v541
        %v543 = vrot.slane %v542, 2
        %v544 = vadd.f32 %v542, %v543
        %v545 = vrot.slane %v544, 1
        %v546 = vadd.f32 %v544, %v545
        %v547 = vsel %vm420, %v404, 0.0
        %v548 = vsel %vm420, %v405, 0.0
        %v549 = vadd.f32 %v547, %v548
        %v550 = vsel %vm420, %v406, 0.0
        %v551 = vadd.f32 %v549, %v550
        %v552 = vsel %vm420, %v407, 0.0
        %v553 = vadd.f32 %v551, %v552
        %v554 = vsel %vm420, %v408, 0.0
        %v555 = vadd.f32 %v553, %v554
        %v556 = vsel %vm420, %v409, 0.0
        %v557 = vadd.f32 %v555, %v556
        %v558 = vsel %vm420, %v410, 0.0
        %v559 = vadd.f32 %v557, %v558
        %v560 = vsel %vm420, %v411, 0.0
        %v561 = vadd.f32 %v559, %v560
        %v562 = vrot.slane %v561, 4
        %v563 = vadd.f32 %v561, %v562
        %v564 = vrot.slane %v563, 2
        %v565 = vadd.f32 %v563, %v564
        %v566 = vrot.slane %v565, 1
        %v567 = vadd.f32 %v565, %v566
        %v568 = vsel %vm420, %v412, 0.0
        %v569 = vsel %vm420, %v413, 0.0
        %v570 = vadd.f32 %v568, %v569
        %v571 = vsel %vm420, %v414, 0.0
        %v572 = vadd.f32 %v570, %v571
        %v573 = vsel %vm420, %v415, 0.0
        %v574 = vadd.f32 %v572, %v573
        %v575 = vsel %vm420, %v416, 0.0
        %v576 = vadd.f32 %v574, %v575
        %v577 = vsel %vm420, %v417, 0.0
        %v578 = vadd.f32 %v576, %v577
        %v579 = vsel %vm420, %v418, 0.0
        %v580 = vadd.f32 %v578, %v579
        %v581 = vsel %vm420, %v419, 0.0
        %v582 = vadd.f32 %v580, %v581
        %v583 = vrot.slane %v582, 4
        %v584 = vadd.f32 %v582, %v583
        %v585 = vrot.slane %v584, 2
        %v586 = vadd.f32 %v584, %v585
        %v587 = vrot.slane %v586, 1
        %v588 = vadd.f32 %v586, %v587
        %v589 = vmul.f32 %v441, 0.015625
        %v590 = vmul.f32 %v462, 0.015625
        %v591 = vmul.f32 %v483, 0.015625
        %v592 = vmul.f32 %v504, 0.015625
        %v593 = vmul.f32 %v525, 0.015625
        %v594 = vmul.f32 %v546, 0.015625
        %v595 = vmul.f32 %v567, 0.015625
        %v596 = vmul.f32 %v588, 0.015625
        %v597 = vld [vmem:[#allocation7] sm:$0xff]
        %v598 = vld [vmem:[#allocation7 + $0x8] sm:$0xff]
        %v599 = vld [vmem:[#allocation7 + $0x10] sm:$0xff]
        %v600 = vld [vmem:[#allocation7 + $0x18] sm:$0xff]
        %v601 = vld [vmem:[#allocation7 + $0x20] sm:$0xff]
        %v602 = vld [vmem:[#allocation7 + $0x28] sm:$0xff]
        %v603 = vld [vmem:[#allocation7 + $0x30] sm:$0xff]
        %v604 = vld [vmem:[#allocation7 + $0x38] sm:$0xff]
        %v605 = vpack.c.bf16 %v589, %v589
        %v606 = vpack.c.bf16 %v590, %v590
        %v607 = vpack.c.bf16 %v591, %v591
        %v608 = vpack.c.bf16 %v592, %v592
        %v609 = vpack.c.bf16 %v593, %v593
        %v610 = vpack.c.bf16 %v594, %v594
        %v611 = vpack.c.bf16 %v595, %v595
        %v612 = vpack.c.bf16 %v596, %v596
        %v613 = vld [vmem:[%s1] sm:$0x3]
        %v615 = vlaneseq
        %v616 = vshrl.u32 %v615, 7
        %v617 = vsub.s32 0, %v616
        %v618 = vrot.slane %v613, %v617
        %v619 = vlaneseq
        %v620 = vshrl.u32 %v619, 7
        %v621 = vsub.s32 1, %v620
        %v622 = vrot.slane %v613, %v621
        %v633 = vunpack.c.l.b16 %v605
        %v634 = vunpack.c.l.b16 %v606
        %v635 = vunpack.c.l.b16 %v607
        %v636 = vunpack.c.l.b16 %v608
        %v637 = vunpack.c.l.b16 %v609
        %v638 = vunpack.c.l.b16 %v610
        %v639 = vunpack.c.l.b16 %v611
        %v640 = vunpack.c.l.b16 %v612
        %vm641 = vcmask 1041409
        %v642 = vsel %vm641, %v634, %v633
        %vm643 = vcmask 1042434
        %v644 = vsel %vm643, %v635, %v642
        %vm645 = vcmask 1043459
        %v646 = vsel %vm645, %v636, %v644
        %vm647 = vcmask 1044484
        %v648 = vsel %vm647, %v637, %v646
        %vm649 = vcmask 1045509
        %v650 = vsel %vm649, %v638, %v648
        %vm651 = vcmask 1046534
        %v652 = vsel %vm651, %v639, %v650
        %vm653 = vcmask 1047559
        %v654 = vsel %vm653, %v640, %v652
        %v655 = vpack.c.b16 %v654, %v654
        %v664 = vunpack.c.l.b16 %v597
        %v665 = vunpack.c.h.b16 %v597
        %v666 = vunpack.c.l.b16 %v598
        %v667 = vunpack.c.h.b16 %v598
        %v668 = vunpack.c.l.b16 %v599
        %v669 = vunpack.c.h.b16 %v599
        %v670 = vunpack.c.l.b16 %v600
        %v671 = vunpack.c.h.b16 %v600
        %v672 = vunpack.c.l.b16 %v601
        %v673 = vunpack.c.h.b16 %v601
        %v674 = vunpack.c.l.b16 %v602
        %v675 = vunpack.c.h.b16 %v602
        %v676 = vunpack.c.l.b16 %v603
        %v677 = vunpack.c.h.b16 %v603
        %v678 = vunpack.c.l.b16 %v604
        %v679 = vunpack.c.h.b16 %v604
        %v680 = vpack.c.b16 %v666, %v664
        %v681 = vpack.c.b16 %v667, %v665
        %v682 = vpack.c.b16 %v670, %v668
        %v683 = vpack.c.b16 %v671, %v669
        %v684 = vpack.c.b16 %v674, %v672
        %v685 = vpack.c.b16 %v675, %v673
        %v686 = vpack.c.b16 %v678, %v676
        %v687 = vpack.c.b16 %v679, %v677
        %v697 = vsel %vm420, %v655, 0
        %699 = vmatprep.subr.bf16.mxu0 %v681
        %700 = vmatpush1.bf16.msra.mxu0 %v680
        %701 = vmatprep.subr.bf16.mxu0 %v683
        %702 = vmatpush1.bf16.msra.mxu0 %v682
        %703 = vmatprep.subr.bf16.mxu0 %v685
        %704 = vmatpush1.bf16.msra.mxu0 %v684
        %705 = vmatprep.subr.bf16.mxu0 %v687
        %706 = vmatpush1.bf16.msra.mxu0 %v686
        %707 = vmatprep.subr.bf16.mxu0 0
        %708 = vmatpush1.bf16.msra.mxu0 0
        %709 = vmatprep.subr.bf16.mxu0 0
        %710 = vmatpush1.bf16.msra.mxu0 0
        %711 = vmatprep.subr.bf16.mxu0 0
        %712 = vmatpush1.bf16.msra.mxu0 0
        %713 = vmatprep.subr.bf16.mxu0 0
        %714 = vmatpush1.bf16.msra.mxu0 0
        %715 = vmatprep.subr.bf16.mxu0 0
        %716 = vmatpush1.bf16.msra.mxu0 0
        %717 = vmatprep.subr.bf16.mxu0 0
        %718 = vmatpush1.bf16.msra.mxu0 0
        %719 = vmatprep.subr.bf16.mxu0 0
        %720 = vmatpush1.bf16.msra.mxu0 0
        %721 = vmatprep.subr.bf16.mxu0 0
        %722 = vmatpush1.bf16.msra.mxu0 0
        %723 = vmatprep.subr.bf16.mxu0 0
        %724 = vmatpush1.bf16.msra.mxu0 0
        %725 = vmatprep.subr.bf16.mxu0 0
        %726 = vmatpush1.bf16.msra.mxu0 0
        %727 = vmatprep.subr.bf16.mxu0 0
        %728 = vmatpush1.bf16.msra.mxu0 0
        %729 = vmatprep.subr.bf16.mxu0 0
        %730 = vmatpush1.bf16.msra.mxu0 0
        %731 = vmatprep.mubr.bf16.mxu0 0
        %732 = vmatmul.mubr.bf16.gmra.mrb[0].mxu0 %v697
        %v733 = vpop.f32.mrb[0].mxu0
        %v734 = vadd.f32 %v618, %v733
        %v735 = vpop.f32.mrb[0].mxu0
        %v736 = vadd.f32 %v622, %v735
        %v737 = vpop.f32.mrb[0].mxu0
        %v738 = vpop.f32.mrb[0].mxu0
        %739 = vdwg.mxu0
        %v740 = vmul.f32 %v736, 0.25
        %v741 = vpack.c.bf16 %v357, %v356
        %v742 = vpack.c.bf16 %v359, %v358
        %v743 = vpack.c.bf16 %v361, %v360
        %v744 = vpack.c.bf16 %v363, %v362
        %v745 = vpack.c.bf16 %v365, %v364
        %v746 = vpack.c.bf16 %v367, %v366
        %v747 = vpack.c.bf16 %v369, %v368
        %v748 = vpack.c.bf16 %v371, %v370
        %v749 = vpack.c.bf16 %v373, %v372
        %v750 = vpack.c.bf16 %v375, %v374
        %v751 = vpack.c.bf16 %v377, %v376
        %v752 = vpack.c.bf16 %v379, %v378
        %v753 = vpack.c.bf16 %v381, %v380
        %v754 = vpack.c.bf16 %v383, %v382
        %v755 = vpack.c.bf16 %v385, %v384
        %v756 = vpack.c.bf16 %v387, %v386
        %v757 = vpack.c.bf16 %v389, %v388
        %v758 = vpack.c.bf16 %v391, %v390
        %v759 = vpack.c.bf16 %v393, %v392
        %v760 = vpack.c.bf16 %v395, %v394
        %v761 = vpack.c.bf16 %v397, %v396
        %v762 = vpack.c.bf16 %v399, %v398
        %v763 = vpack.c.bf16 %v401, %v400
        %v764 = vpack.c.bf16 %v403, %v402
        %v765 = vpack.c.bf16 %v405, %v404
        %v766 = vpack.c.bf16 %v407, %v406
        %v767 = vpack.c.bf16 %v409, %v408
        %v768 = vpack.c.bf16 %v411, %v410
        %v769 = vpack.c.bf16 %v413, %v412
        %v770 = vpack.c.bf16 %v415, %v414
        %v771 = vpack.c.bf16 %v417, %v416
        %v772 = vpack.c.bf16 %v419, %v418
        %v774 = vsel %vm420, %v741, 0
        %v777 = vsel %vm420, %v742, 0
        %v780 = vsel %vm420, %v743, 0
        %v783 = vsel %vm420, %v744, 0
        %v786 = vsel %vm420, %v745, 0
        %v789 = vsel %vm420, %v746, 0
        %v792 = vsel %vm420, %v747, 0
        %v795 = vsel %vm420, %v748, 0
        %v798 = vsel %vm420, %v749, 0
        %v801 = vsel %vm420, %v750, 0
        %v804 = vsel %vm420, %v751, 0
        %v807 = vsel %vm420, %v752, 0
        %v810 = vsel %vm420, %v753, 0
        %v813 = vsel %vm420, %v754, 0
        %v816 = vsel %vm420, %v755, 0
        %v819 = vsel %vm420, %v756, 0
        %v822 = vsel %vm420, %v757, 0
        %v825 = vsel %vm420, %v758, 0
        %v828 = vsel %vm420, %v759, 0
        %v831 = vsel %vm420, %v760, 0
        %v834 = vsel %vm420, %v761, 0
        %v837 = vsel %vm420, %v762, 0
        %v840 = vsel %vm420, %v763, 0
        %v843 = vsel %vm420, %v764, 0
        %v846 = vsel %vm420, %v765, 0
        %v849 = vsel %vm420, %v766, 0
        %v852 = vsel %vm420, %v767, 0
        %v855 = vsel %vm420, %v768, 0
        %v858 = vsel %vm420, %v769, 0
        %v861 = vsel %vm420, %v770, 0
        %v864 = vsel %vm420, %v771, 0
        %v867 = vsel %vm420, %v772, 0
        %869 = vmatprep.subr.bf16.mxu0 0
        %870 = vmatpush1.bf16.msra.mxu0 %v680
        %871 = vmatprep.subr.bf16.mxu0 0
        %872 = vmatpush1.bf16.msra.mxu0 %v682
        %873 = vmatprep.subr.bf16.mxu0 0
        %874 = vmatpush1.bf16.msra.mxu0 %v684
        %875 = vmatprep.subr.bf16.mxu0 0
        %876 = vmatpush1.bf16.msra.mxu0 %v686
        %877 = vmatprep.subr.bf16.mxu0 0
        %878 = vmatpush1.bf16.msra.mxu0 0
        %879 = vmatprep.subr.bf16.mxu0 0
        %880 = vmatpush1.bf16.msra.mxu0 0
        %881 = vmatprep.subr.bf16.mxu0 0
        %882 = vmatpush1.bf16.msra.mxu0 0
        %883 = vmatprep.subr.bf16.mxu0 0
        %884 = vmatpush1.bf16.msra.mxu0 0
        %885 = vmatprep.subr.bf16.mxu0 0
        %886 = vmatpush1.bf16.msra.mxu0 0
        %887 = vmatprep.subr.bf16.mxu0 0
        %888 = vmatpush1.bf16.msra.mxu0 0
        %889 = vmatprep.subr.bf16.mxu0 0
        %890 = vmatpush1.bf16.msra.mxu0 0
        %891 = vmatprep.subr.bf16.mxu0 0
        %892 = vmatpush1.bf16.msra.mxu0 0
        %893 = vmatprep.subr.bf16.mxu0 0
        %894 = vmatpush1.bf16.msra.mxu0 0
        %895 = vmatprep.subr.bf16.mxu0 0
        %896 = vmatpush1.bf16.msra.mxu0 0
        %897 = vmatprep.subr.bf16.mxu0 0
        %898 = vmatpush1.bf16.msra.mxu0 0
        %899 = vmatprep.subr.bf16.mxu0 0
        %900 = vmatpush1.bf16.msra.mxu0 0
        %901 = vmatprep.mubr.bf16.mxu0 0
        %902 = vmatmul.mubr.bf16.gmra.mrb[0].mxu0 %v774
        %v903 = vpop.f32.mrb[0].mxu0
        %v904 = vadd.f32 0.0, %v903
        %v905 = vpop.f32.mrb[0].mxu0
        %v906 = vpop.f32.mrb[0].mxu0
        %v907 = vadd.f32 0.0, %v906
        %v908 = vpop.f32.mrb[0].mxu0
        %909 = vmatprep.mubr.bf16.mxu0 0
        %910 = vmatmul.mubr.bf16.gmra.mrb[0].mxu0 %v777
        %v911 = vpop.f32.mrb[0].mxu0
        %v912 = vadd.f32 0.0, %v911
        %v913 = vpop.f32.mrb[0].mxu0
        %v914 = vpop.f32.mrb[0].mxu0
        %v915 = vadd.f32 0.0, %v914
        %v916 = vpop.f32.mrb[0].mxu0
        %917 = vmatprep.mubr.bf16.mxu0 0
        %918 = vmatmul.mubr.bf16.gmra.mrb[0].mxu0 %v780
        %v919 = vpop.f32.mrb[0].mxu0
        %v920 = vadd.f32 0.0, %v919
        %v921 = vpop.f32.mrb[0].mxu0
        %v922 = vpop.f32.mrb[0].mxu0
        %v923 = vadd.f32 0.0, %v922
        %v924 = vpop.f32.mrb[0].mxu0
        %925 = vmatprep.mubr.bf16.mxu0 0
        %926 = vmatmul.mubr.bf16.gmra.mrb[0].mxu0 %v783
        %v927 = vpop.f32.mrb[0].mxu0
        %v928 = vadd.f32 0.0, %v927
        %v929 = vpop.f32.mrb[0].mxu0
        %v930 = vpop.f32.mrb[0].mxu0
        %v931 = vadd.f32 0.0, %v930
        %v932 = vpop.f32.mrb[0].mxu0
        %933 = vmatprep.mubr.bf16.mxu0 0
        %934 = vmatmul.mubr.bf16.gmra.mrb[0].mxu0 %v786
        %v935 = vpop.f32.mrb[0].mxu0
        %v936 = vadd.f32 0.0, %v935
        %v937 = vpop.f32.mrb[0].mxu0
        %v938 = vpop.f32.mrb[0].mxu0
        %v939 = vadd.f32 0.0, %v938
        %v940 = vpop.f32.mrb[0].mxu0
        %941 = vmatprep.mubr.bf16.mxu0 0
        %942 = vmatmul.mubr.bf16.gmra.mrb[0].mxu0 %v789
        %v943 = vpop.f32.mrb[0].mxu0
        %v944 = vadd.f32 0.0, %v943
        %v945 = vpop.f32.mrb[0].mxu0
        %v946 = vpop.f32.mrb[0].mxu0
        %v947 = vadd.f32 0.0, %v946
        %v948 = vpop.f32.mrb[0].mxu0
        %949 = vmatprep.mubr.bf16.mxu0 0
        %950 = vmatmul.mubr.bf16.gmra.mrb[0].mxu0 %v792
        %v951 = vpop.f32.mrb[0].mxu0
        %v952 = vadd.f32 0.0, %v951
        %v953 = vpop.f32.mrb[0].mxu0
        %v954 = vpop.f32.mrb[0].mxu0
        %v955 = vadd.f32 0.0, %v954
        %v956 = vpop.f32.mrb[0].mxu0
        %957 = vmatprep.mubr.bf16.mxu0 0
        %958 = vmatmul.mubr.bf16.gmra.mrb[0].mxu0 %v795
        %v959 = vpop.f32.mrb[0].mxu0
        %v960 = vadd.f32 0.0, %v959
        %v961 = vpop.f32.mrb[0].mxu0
        %v962 = vpop.f32.mrb[0].mxu0
        %v963 = vadd.f32 0.0, %v962
        %v964 = vpop.f32.mrb[0].mxu0
        %965 = vmatprep.mubr.bf16.mxu0 0
        %966 = vmatmul.mubr.bf16.gmra.mrb[0].mxu0 %v798
        %v967 = vpop.f32.mrb[0].mxu0
        %v968 = vadd.f32 0.0, %v967
        %v969 = vpop.f32.mrb[0].mxu0
        %v970 = vpop.f32.mrb[0].mxu0
        %v971 = vadd.f32 0.0, %v970
        %v972 = vpop.f32.mrb[0].mxu0
        %973 = vmatprep.mubr.bf16.mxu0 0
        %974 = vmatmul.mubr.bf16.gmra.mrb[0].mxu0 %v801
        %v975 = vpop.f32.mrb[0].mxu0
        %v976 = vadd.f32 0.0, %v975
        %v977 = vpop.f32.mrb[0].mxu0
        %v978 = vpop.f32.mrb[0].mxu0
        %v979 = vadd.f32 0.0, %v978
        %v980 = vpop.f32.mrb[0].mxu0
        %981 = vmatprep.mubr.bf16.mxu0 0
        %982 = vmatmul.mubr.bf16.gmra.mrb[0].mxu0 %v804
        %v983 = vpop.f32.mrb[0].mxu0
        %v984 = vadd.f32 0.0, %v983
        %v985 = vpop.f32.mrb[0].mxu0
        %v986 = vpop.f32.mrb[0].mxu0
        %v987 = vadd.f32 0.0, %v986
        %v988 = vpop.f32.mrb[0].mxu0
        %989 = vmatprep.mubr.bf16.mxu0 0
        %990 = vmatmul.mubr.bf16.gmra.mrb[0].mxu0 %v807
        %v991 = vpop.f32.mrb[0].mxu0
        %v992 = vadd.f32 0.0, %v991
        %v993 = vpop.f32.mrb[0].mxu0
        %v994 = vpop.f32.mrb[0].mxu0
        %v995 = vadd.f32 0.0, %v994
        %v996 = vpop.f32.mrb[0].mxu0
        %997 = vmatprep.mubr.bf16.mxu0 0
        %998 = vmatmul.mubr.bf16.gmra.mrb[0].mxu0 %v810
        %v999 = vpop.f32.mrb[0].mxu0
        %v1000 = vadd.f32 0.0, %v999
        %v1001 = vpop.f32.mrb[0].mxu0
        %v1002 = vpop.f32.mrb[0].mxu0
        %v1003 = vadd.f32 0.0, %v1002
        %v1004 = vpop.f32.mrb[0].mxu0
        %1005 = vmatprep.mubr.bf16.mxu0 0
        %1006 = vmatmul.mubr.bf16.gmra.mrb[0].mxu0 %v813
        %v1007 = vpop.f32.mrb[0].mxu0
        %v1008 = vadd.f32 0.0, %v1007
        %v1009 = vpop.f32.mrb[0].mxu0
        %v1010 = vpop.f32.mrb[0].mxu0
        %v1011 = vadd.f32 0.0, %v1010
        %v1012 = vpop.f32.mrb[0].mxu0
        %1013 = vmatprep.mubr.bf16.mxu0 0
        %1014 = vmatmul.mubr.bf16.gmra.mrb[0].mxu0 %v816
        %v1015 = vpop.f32.mrb[0].mxu0
        %v1016 = vadd.f32 0.0, %v1015
        %v1017 = vpop.f32.mrb[0].mxu0
        %v1018 = vpop.f32.mrb[0].mxu0
        %v1019 = vadd.f32 0.0, %v1018
        %v1020 = vpop.f32.mrb[0].mxu0
        %1021 = vmatprep.mubr.bf16.mxu0 0
        %1022 = vmatmul.mubr.bf16.gmra.mrb[0].mxu0 %v819
        %v1023 = vpop.f32.mrb[0].mxu0
        %v1024 = vadd.f32 0.0, %v1023
        %v1025 = vpop.f32.mrb[0].mxu0
        %v1026 = vpop.f32.mrb[0].mxu0
        %v1027 = vadd.f32 0.0, %v1026
        %v1028 = vpop.f32.mrb[0].mxu0
        %1029 = vmatprep.mubr.bf16.mxu0 0
        %1030 = vmatmul.mubr.bf16.gmra.mrb[0].mxu0 %v822
        %v1031 = vpop.f32.mrb[0].mxu0
        %v1032 = vadd.f32 0.0, %v1031
        %v1033 = vpop.f32.mrb[0].mxu0
        %v1034 = vpop.f32.mrb[0].mxu0
        %v1035 = vadd.f32 0.0, %v1034
        %v1036 = vpop.f32.mrb[0].mxu0
        %1037 = vmatprep.mubr.bf16.mxu0 0
        %1038 = vmatmul.mubr.bf16.gmra.mrb[0].mxu0 %v825
        %v1039 = vpop.f32.mrb[0].mxu0
        %v1040 = vadd.f32 0.0, %v1039
        %v1041 = vpop.f32.mrb[0].mxu0
        %v1042 = vpop.f32.mrb[0].mxu0
        %v1043 = vadd.f32 0.0, %v1042
        %v1044 = vpop.f32.mrb[0].mxu0
        %1045 = vmatprep.mubr.bf16.mxu0 0
        %1046 = vmatmul.mubr.bf16.gmra.mrb[0].mxu0 %v828
        %v1047 = vpop.f32.mrb[0].mxu0
        %v1048 = vadd.f32 0.0, %v1047
        %v1049 = vpop.f32.mrb[0].mxu0
        %v1050 = vpop.f32.mrb[0].mxu0
        %v1051 = vadd.f32 0.0, %v1050
        %v1052 = vpop.f32.mrb[0].mxu0
        %1053 = vmatprep.mubr.bf16.mxu0 0
        %1054 = vmatmul.mubr.bf16.gmra.mrb[0].mxu0 %v831
        %v1055 = vpop.f32.mrb[0].mxu0
        %v1056 = vadd.f32 0.0, %v1055
        %v1057 = vpop.f32.mrb[0].mxu0
        %v1058 = vpop.f32.mrb[0].mxu0
        %v1059 = vadd.f32 0.0, %v1058
        %v1060 = vpop.f32.mrb[0].mxu0
        %1061 = vmatprep.mubr.bf16.mxu0 0
        %1062 = vmatmul.mubr.bf16.gmra.mrb[0].mxu0 %v834
        %v1063 = vpop.f32.mrb[0].mxu0
        %v1064 = vadd.f32 0.0, %v1063
        %v1065 = vpop.f32.mrb[0].mxu0
        %v1066 = vpop.f32.mrb[0].mxu0
        %v1067 = vadd.f32 0.0, %v1066
        %v1068 = vpop.f32.mrb[0].mxu0
        %1069 = vmatprep.mubr.bf16.mxu0 0
        %1070 = vmatmul.mubr.bf16.gmra.mrb[0].mxu0 %v837
        %v1071 = vpop.f32.mrb[0].mxu0
        %v1072 = vadd.f32 0.0, %v1071
        %v1073 = vpop.f32.mrb[0].mxu0
        %v1074 = vpop.f32.mrb[0].mxu0
        %v1075 = vadd.f32 0.0, %v1074
        %v1076 = vpop.f32.mrb[0].mxu0
        %1077 = vmatprep.mubr.bf16.mxu0 0
        %1078 = vmatmul.mubr.bf16.gmra.mrb[0].mxu0 %v840
        %v1079 = vpop.f32.mrb[0].mxu0
        %v1080 = vadd.f32 0.0, %v1079
        %v1081 = vpop.f32.mrb[0].mxu0
        %v1082 = vpop.f32.mrb[0].mxu0
        %v1083 = vadd.f32 0.0, %v1082
        %v1084 = vpop.f32.mrb[0].mxu0
        %1085 = vmatprep.mubr.bf16.mxu0 0
        %1086 = vmatmul.mubr.bf16.gmra.mrb[0].mxu0 %v843
        %v1087 = vpop.f32.mrb[0].mxu0
        %v1088 = vadd.f32 0.0, %v1087
        %v1089 = vpop.f32.mrb[0].mxu0
        %v1090 = vpop.f32.mrb[0].mxu0
        %v1091 = vadd.f32 0.0, %v1090
        %v1092 = vpop.f32.mrb[0].mxu0
        %1093 = vmatprep.mubr.bf16.mxu0 0
        %1094 = vmatmul.mubr.bf16.gmra.mrb[0].mxu0 %v846
        %v1095 = vpop.f32.mrb[0].mxu0
        %v1096 = vadd.f32 0.0, %v1095
        %v1097 = vpop.f32.mrb[0].mxu0
        %v1098 = vpop.f32.mrb[0].mxu0
        %v1099 = vadd.f32 0.0, %v1098
        %v1100 = vpop.f32.mrb[0].mxu0
        %1101 = vmatprep.mubr.bf16.mxu0 0
        %1102 = vmatmul.mubr.bf16.gmra.mrb[0].mxu0 %v849
        %v1103 = vpop.f32.mrb[0].mxu0
        %v1104 = vadd.f32 0.0, %v1103
        %v1105 = vpop.f32.mrb[0].mxu0
        %v1106 = vpop.f32.mrb[0].mxu0
        %v1107 = vadd.f32 0.0, %v1106
        %v1108 = vpop.f32.mrb[0].mxu0
        %1109 = vmatprep.mubr.bf16.mxu0 0
        %1110 = vmatmul.mubr.bf16.gmra.mrb[0].mxu0 %v852
        %v1111 = vpop.f32.mrb[0].mxu0
        %v1112 = vadd.f32 0.0, %v1111
        %v1113 = vpop.f32.mrb[0].mxu0
        %v1114 = vpop.f32.mrb[0].mxu0
        %v1115 = vadd.f32 0.0, %v1114
        %v1116 = vpop.f32.mrb[0].mxu0
        %1117 = vmatprep.mubr.bf16.mxu0 0
        %1118 = vmatmul.mubr.bf16.gmra.mrb[0].mxu0 %v855
        %v1119 = vpop.f32.mrb[0].mxu0
        %v1120 = vadd.f32 0.0, %v1119
        %v1121 = vpop.f32.mrb[0].mxu0
        %v1122 = vpop.f32.mrb[0].mxu0
        %v1123 = vadd.f32 0.0, %v1122
        %v1124 = vpop.f32.mrb[0].mxu0
        %1125 = vmatprep.mubr.bf16.mxu0 0
        %1126 = vmatmul.mubr.bf16.gmra.mrb[0].mxu0 %v858
        %v1127 = vpop.f32.mrb[0].mxu0
        %v1128 = vadd.f32 0.0, %v1127
        %v1129 = vpop.f32.mrb[0].mxu0
        %v1130 = vpop.f32.mrb[0].mxu0
        %v1131 = vadd.f32 0.0, %v1130
        %v1132 = vpop.f32.mrb[0].mxu0
        %1133 = vmatprep.mubr.bf16.mxu0 0
        %1134 = vmatmul.mubr.bf16.gmra.mrb[0].mxu0 %v861
        %v1135 = vpop.f32.mrb[0].mxu0
        %v1136 = vadd.f32 0.0, %v1135
        %v1137 = vpop.f32.mrb[0].mxu0
        %v1138 = vpop.f32.mrb[0].mxu0
        %v1139 = vadd.f32 0.0, %v1138
        %v1140 = vpop.f32.mrb[0].mxu0
        %1141 = vmatprep.mubr.bf16.mxu0 0
        %1142 = vmatmul.mubr.bf16.gmra.mrb[0].mxu0 %v864
        %v1143 = vpop.f32.mrb[0].mxu0
        %v1144 = vadd.f32 0.0, %v1143
        %v1145 = vpop.f32.mrb[0].mxu0
        %v1146 = vpop.f32.mrb[0].mxu0
        %v1147 = vadd.f32 0.0, %v1146
        %v1148 = vpop.f32.mrb[0].mxu0
        %1149 = vmatprep.mubr.bf16.mxu0 0
        %1150 = vmatmul.mubr.bf16.gmra.mrb[0].mxu0 %v867
        %v1151 = vpop.f32.mrb[0].mxu0
        %v1152 = vadd.f32 0.0, %v1151
        %v1153 = vpop.f32.mrb[0].mxu0
        %v1154 = vpop.f32.mrb[0].mxu0
        %v1155 = vadd.f32 0.0, %v1154
        %v1156 = vpop.f32.mrb[0].mxu0
        %1157 = vdwg.mxu0
        %v1158 = vld [vmem:[#allocation5] sm:$0xff]
        %v1159 = vld [vmem:[#allocation5 + $0x8] sm:$0xff]
        %v1160 = vld [vmem:[#allocation5 + $0x10] sm:$0xff]
        %v1161 = vld [vmem:[#allocation5 + $0x18] sm:$0xff]
        %v1162 = vld [vmem:[#allocation5 + $0x20] sm:$0xff]
        %v1163 = vld [vmem:[#allocation5 + $0x28] sm:$0xff]
        %v1164 = vld [vmem:[#allocation5 + $0x30] sm:$0xff]
        %v1165 = vld [vmem:[#allocation5 + $0x38] sm:$0xff]
        %v1166 = vadd.f32 %v904, %v1158
        %v1167 = vadd.f32 %v907, %v1159
        %v1168 = vadd.f32 %v912, %v1160
        %v1169 = vadd.f32 %v915, %v1161
        %v1170 = vadd.f32 %v920, %v1162
        %v1171 = vadd.f32 %v923, %v1163
        %v1172 = vadd.f32 %v928, %v1164
        %v1173 = vadd.f32 %v931, %v1165
        %v1174 = vadd.f32 %v936, %v1158
        %v1175 = vadd.f32 %v939, %v1159
        %v1176 = vadd.f32 %v944, %v1160
        %v1177 = vadd.f32 %v947, %v1161
        %v1178 = vadd.f32 %v952, %v1162
        %v1179 = vadd.f32 %v955, %v1163
        %v1180 = vadd.f32 %v960, %v1164
        %v1181 = vadd.f32 %v963, %v1165
        %v1182 = vadd.f32 %v968, %v1158
        %v1183 = vadd.f32 %v971, %v1159
        %v1184 = vadd.f32 %v976, %v1160
        %v1185 = vadd.f32 %v979, %v1161
        %v1186 = vadd.f32 %v984, %v1162
        %v1187 = vadd.f32 %v987, %v1163
        %v1188 = vadd.f32 %v992, %v1164
        %v1189 = vadd.f32 %v995, %v1165
        %v1190 = vadd.f32 %v1000, %v1158
        %v1191 = vadd.f32 %v1003, %v1159
        %v1192 = vadd.f32 %v1008, %v1160
        %v1193 = vadd.f32 %v1011, %v1161
        %v1194 = vadd.f32 %v1016, %v1162
        %v1195 = vadd.f32 %v1019, %v1163
        %v1196 = vadd.f32 %v1024, %v1164
        %v1197 = vadd.f32 %v1027, %v1165
        %v1198 = vadd.f32 %v1032, %v1158
        %v1199 = vadd.f32 %v1035, %v1159
        %v1200 = vadd.f32 %v1040, %v1160
        %v1201 = vadd.f32 %v1043, %v1161
        %v1202 = vadd.f32 %v1048, %v1162
        %v1203 = vadd.f32 %v1051, %v1163
        %v1204 = vadd.f32 %v1056, %v1164
        %v1205 = vadd.f32 %v1059, %v1165
        %v1206 = vadd.f32 %v1064, %v1158
        %v1207 = vadd.f32 %v1067, %v1159
        %v1208 = vadd.f32 %v1072, %v1160
        %v1209 = vadd.f32 %v1075, %v1161
        %v1210 = vadd.f32 %v1080, %v1162
        %v1211 = vadd.f32 %v1083, %v1163
        %v1212 = vadd.f32 %v1088, %v1164
        %v1213 = vadd.f32 %v1091, %v1165
        %v1214 = vadd.f32 %v1096, %v1158
        %v1215 = vadd.f32 %v1099, %v1159
        %v1216 = vadd.f32 %v1104, %v1160
        %v1217 = vadd.f32 %v1107, %v1161
        %v1218 = vadd.f32 %v1112, %v1162
        %v1219 = vadd.f32 %v1115, %v1163
        %v1220 = vadd.f32 %v1120, %v1164
        %v1221 = vadd.f32 %v1123, %v1165
        %v1222 = vadd.f32 %v1128, %v1158
        %v1223 = vadd.f32 %v1131, %v1159
        %v1224 = vadd.f32 %v1136, %v1160
        %v1225 = vadd.f32 %v1139, %v1161
        %v1226 = vadd.f32 %v1144, %v1162
        %v1227 = vadd.f32 %v1147, %v1163
        %v1228 = vadd.f32 %v1152, %v1164
        %v1229 = vadd.f32 %v1155, %v1165
        %v1231 = vcombine.high %v740, %v740
        %v1233 = vunpack.c.l.s4 1966171168
        %v1234 = vunpack.c.0.s8 %v1233
        %v1235 = vlaneseq
        %v1236 = vshrl.u32 %v1235, 7
        %v1237 = vsub.s32 %v1234, %v1236
        %v1238 = vrot.slane %v740, %v1237
        %v1240 = vunpack.c.l.s4 1966171168
        %v1241 = vunpack.c.0.s8 %v1240
        %v1242 = vlaneseq
        %v1243 = vshrl.u32 %v1242, 7
        %v1244 = vsub.s32 %v1241, %v1243
        %v1245 = vrot.slane %v1231, %v1244
        %v1246 = vcombine.high %v1238, %v1238
        %v1247 = vcombine.high %v1245, %v1245
        %v1249 = vunpack.c.l.s4 1966171168
        %v1250 = vunpack.c.0.s8 %v1249
        %v1251 = vlaneseq
        %v1252 = vshrl.u32 %v1251, 7
        %v1253 = vsub.s32 %v1250, %v1252
        %v1254 = vrot.slane %v1238, %v1253
        %v1256 = vunpack.c.l.s4 1966171168
        %v1257 = vunpack.c.0.s8 %v1256
        %v1258 = vlaneseq
        %v1259 = vshrl.u32 %v1258, 7
        %v1260 = vsub.s32 %v1257, %v1259
        %v1261 = vrot.slane %v1245, %v1260
        %v1263 = vunpack.c.l.s4 1966171168
        %v1264 = vunpack.c.0.s8 %v1263
        %v1265 = vlaneseq
        %v1266 = vshrl.u32 %v1265, 7
        %v1267 = vsub.s32 %v1264, %v1266
        %v1268 = vrot.slane %v1246, %v1267
        %v1270 = vunpack.c.l.s4 1966171168
        %v1271 = vunpack.c.0.s8 %v1270
        %v1272 = vlaneseq
        %v1273 = vshrl.u32 %v1272, 7
        %v1274 = vsub.s32 %v1271, %v1273
        %v1275 = vrot.slane %v1247, %v1274
        %v1276 = vcombine.high %v1254, %v1254
        %v1277 = vcombine.high %v1261, %v1261
        %v1278 = vcombine.high %v1268, %v1268
        %v1279 = vcombine.high %v1275, %v1275
        %v1280 = vlaneseq
        %v1281 = vshrl.u32 %v1280, 7
        %v1282 = vsub.s32 0, %v1281
        %v1283 = vrot.slane %v1254, %v1282
        %v1284 = vlaneseq
        %v1285 = vshrl.u32 %v1284, 7
        %v1286 = vsub.s32 0, %v1285
        %v1287 = vrot.slane %v1268, %v1286
        %v1288 = vlaneseq
        %v1289 = vshrl.u32 %v1288, 7
        %v1290 = vsub.s32 0, %v1289
        %v1291 = vrot.slane %v1276, %v1290
        %v1292 = vlaneseq
        %v1293 = vshrl.u32 %v1292, 7
        %v1294 = vsub.s32 0, %v1293
        %v1295 = vrot.slane %v1278, %v1294
        %v1296 = vlaneseq
        %v1297 = vshrl.u32 %v1296, 7
        %v1298 = vsub.s32 0, %v1297
        %v1299 = vrot.slane %v1261, %v1298
        %v1300 = vlaneseq
        %v1301 = vshrl.u32 %v1300, 7
        %v1302 = vsub.s32 0, %v1301
        %v1303 = vrot.slane %v1275, %v1302
        %v1304 = vlaneseq
        %v1305 = vshrl.u32 %v1304, 7
        %v1306 = vsub.s32 0, %v1305
        %v1307 = vrot.slane %v1277, %v1306
        %v1308 = vlaneseq
        %v1309 = vshrl.u32 %v1308, 7
        %v1310 = vsub.s32 0, %v1309
        %v1311 = vrot.slane %v1279, %v1310
        %v1320 = vmul.f32 %v1166, %v1283
        %v1321 = vmul.f32 %v1167, %v1283
        %v1322 = vmul.f32 %v1168, %v1283
        %v1323 = vmul.f32 %v1169, %v1283
        %v1324 = vmul.f32 %v1170, %v1283
        %v1325 = vmul.f32 %v1171, %v1283
        %v1326 = vmul.f32 %v1172, %v1283
        %v1327 = vmul.f32 %v1173, %v1283
        %v1328 = vmul.f32 %v1174, %v1287
        %v1329 = vmul.f32 %v1175, %v1287
        %v1330 = vmul.f32 %v1176, %v1287
        %v1331 = vmul.f32 %v1177, %v1287
        %v1332 = vmul.f32 %v1178, %v1287
        %v1333 = vmul.f32 %v1179, %v1287
        %v1334 = vmul.f32 %v1180, %v1287
        %v1335 = vmul.f32 %v1181, %v1287
        %v1336 = vmul.f32 %v1182, %v1291
        %v1337 = vmul.f32 %v1183, %v1291
        %v1338 = vmul.f32 %v1184, %v1291
        %v1339 = vmul.f32 %v1185, %v1291
        %v1340 = vmul.f32 %v1186, %v1291
        %v1341 = vmul.f32 %v1187, %v1291
        %v1342 = vmul.f32 %v1188, %v1291
        %v1343 = vmul.f32 %v1189, %v1291
        %v1344 = vmul.f32 %v1190, %v1295
        %v1345 = vmul.f32 %v1191, %v1295
        %v1346 = vmul.f32 %v1192, %v1295
        %v1347 = vmul.f32 %v1193, %v1295
        %v1348 = vmul.f32 %v1194, %v1295
        %v1349 = vmul.f32 %v1195, %v1295
        %v1350 = vmul.f32 %v1196, %v1295
        %v1351 = vmul.f32 %v1197, %v1295
        %v1352 = vmul.f32 %v1198, %v1299
        %v1353 = vmul.f32 %v1199, %v1299
        %v1354 = vmul.f32 %v1200, %v1299
        %v1355 = vmul.f32 %v1201, %v1299
        %v1356 = vmul.f32 %v1202, %v1299
        %v1357 = vmul.f32 %v1203, %v1299
        %v1358 = vmul.f32 %v1204, %v1299
        %v1359 = vmul.f32 %v1205, %v1299
        %v1360 = vmul.f32 %v1206, %v1303
        %v1361 = vmul.f32 %v1207, %v1303
        %v1362 = vmul.f32 %v1208, %v1303
        %v1363 = vmul.f32 %v1209, %v1303
        %v1364 = vmul.f32 %v1210, %v1303
        %v1365 = vmul.f32 %v1211, %v1303
        %v1366 = vmul.f32 %v1212, %v1303
        %v1367 = vmul.f32 %v1213, %v1303
        %v1368 = vmul.f32 %v1214, %v1307
        %v1369 = vmul.f32 %v1215, %v1307
        %v1370 = vmul.f32 %v1216, %v1307
        %v1371 = vmul.f32 %v1217, %v1307
        %v1372 = vmul.f32 %v1218, %v1307
        %v1373 = vmul.f32 %v1219, %v1307
        %v1374 = vmul.f32 %v1220, %v1307
        %v1375 = vmul.f32 %v1221, %v1307
        %v1376 = vmul.f32 %v1222, %v1311
        %v1377 = vmul.f32 %v1223, %v1311
        %v1378 = vmul.f32 %v1224, %v1311
        %v1379 = vmul.f32 %v1225, %v1311
        %v1380 = vmul.f32 %v1226, %v1311
        %v1381 = vmul.f32 %v1227, %v1311
        %v1382 = vmul.f32 %v1228, %v1311
        %v1383 = vmul.f32 %v1229, %v1311
        %v1384 = vpack.c.bf16 %v1321, %v1320
        %v1385 = vpack.c.bf16 %v1323, %v1322
        %v1386 = vpack.c.bf16 %v1325, %v1324
        %v1387 = vpack.c.bf16 %v1327, %v1326
        %v1388 = vpack.c.bf16 %v1329, %v1328
        %v1389 = vpack.c.bf16 %v1331, %v1330
        %v1390 = vpack.c.bf16 %v1333, %v1332
        %v1391 = vpack.c.bf16 %v1335, %v1334
        %v1392 = vpack.c.bf16 %v1337, %v1336
        %v1393 = vpack.c.bf16 %v1339, %v1338
        %v1394 = vpack.c.bf16 %v1341, %v1340
        %v1395 = vpack.c.bf16 %v1343, %v1342
        %v1396 = vpack.c.bf16 %v1345, %v1344
        %v1397 = vpack.c.bf16 %v1347, %v1346
        %v1398 = vpack.c.bf16 %v1349, %v1348
        %v1399 = vpack.c.bf16 %v1351, %v1350
        %v1400 = vpack.c.bf16 %v1353, %v1352
        %v1401 = vpack.c.bf16 %v1355, %v1354
        %v1402 = vpack.c.bf16 %v1357, %v1356
        %v1403 = vpack.c.bf16 %v1359, %v1358
        %v1404 = vpack.c.bf16 %v1361, %v1360
        %v1405 = vpack.c.bf16 %v1363, %v1362
        %v1406 = vpack.c.bf16 %v1365, %v1364
        %v1407 = vpack.c.bf16 %v1367, %v1366
        %v1408 = vpack.c.bf16 %v1369, %v1368
        %v1409 = vpack.c.bf16 %v1371, %v1370
        %v1410 = vpack.c.bf16 %v1373, %v1372
        %v1411 = vpack.c.bf16 %v1375, %v1374
        %v1412 = vpack.c.bf16 %v1377, %v1376
        %v1413 = vpack.c.bf16 %v1379, %v1378
        %v1414 = vpack.c.bf16 %v1381, %v1380
        %v1415 = vpack.c.bf16 %v1383, %v1382
        %v1416 = vld [vmem:[%s6] sm:$0xf]
        %v1417 = vld [vmem:[%s6 + $0x4] sm:$0xf]
        %v1418 = vld [vmem:[%s6 + $0x8] sm:$0xf]
        %v1419 = vld [vmem:[%s6 + $0xc] sm:$0xf]
        %v1420 = vld [vmem:[%s6 + $0x10] sm:$0xf]
        %v1421 = vld [vmem:[%s6 + $0x14] sm:$0xf]
        %v1422 = vld [vmem:[%s6 + $0x18] sm:$0xf]
        %v1423 = vld [vmem:[%s6 + $0x1c] sm:$0xf]
        %v1432 = vunpack.c.l.b16 %v1416
        %v1433 = vunpack.c.l.b16 %v1417
        %v1434 = vunpack.c.l.b16 %v1418
        %v1435 = vunpack.c.l.b16 %v1419
        %v1436 = vunpack.c.l.b16 %v1420
        %v1437 = vunpack.c.l.b16 %v1421
        %v1438 = vunpack.c.l.b16 %v1422
        %v1439 = vunpack.c.l.b16 %v1423
        %v1440 = vpack.c.b16 %v1433, %v1432
        %v1441 = vpack.c.b16 %v1435, %v1434
        %v1442 = vpack.c.b16 %v1437, %v1436
        %v1443 = vpack.c.b16 %v1439, %v1438
        %v1449 = vsel %vm420, %v1384, 0
        %v1452 = vsel %vm420, %v1385, 0
        %v1455 = vsel %vm420, %v1386, 0
        %v1458 = vsel %vm420, %v1387, 0
        %v1461 = vsel %vm420, %v1388, 0
        %v1464 = vsel %vm420, %v1389, 0
        %v1467 = vsel %vm420, %v1390, 0
        %v1470 = vsel %vm420, %v1391, 0
        %v1473 = vsel %vm420, %v1392, 0
        %v1476 = vsel %vm420, %v1393, 0
        %v1479 = vsel %vm420, %v1394, 0
        %v1482 = vsel %vm420, %v1395, 0
        %v1485 = vsel %vm420, %v1396, 0
        %v1488 = vsel %vm420, %v1397, 0
        %v1491 = vsel %vm420, %v1398, 0
        %v1494 = vsel %vm420, %v1399, 0
        %v1497 = vsel %vm420, %v1400, 0
        %v1500 = vsel %vm420, %v1401, 0
        %v1503 = vsel %vm420, %v1402, 0
        %v1506 = vsel %vm420, %v1403, 0
        %v1509 = vsel %vm420, %v1404, 0
        %v1512 = vsel %vm420, %v1405, 0
        %v1515 = vsel %vm420, %v1406, 0
        %v1518 = vsel %vm420, %v1407, 0
        %v1521 = vsel %vm420, %v1408, 0
        %v1524 = vsel %vm420, %v1409, 0
        %v1527 = vsel %vm420, %v1410, 0
        %v1530 = vsel %vm420, %v1411, 0
        %v1533 = vsel %vm420, %v1412, 0
        %v1536 = vsel %vm420, %v1413, 0
        %v1539 = vsel %vm420, %v1414, 0
        %v1542 = vsel %vm420, %v1415, 0
        %1544 = vmatprep.subr.bf16.mxu0 0
        %1545 = vmatpush1.bf16.msra.mxu0 %v1440
        %1546 = vmatprep.subr.bf16.mxu0 0
        %1547 = vmatpush1.bf16.msra.mxu0 %v1441
        %1548 = vmatprep.subr.bf16.mxu0 0
        %1549 = vmatpush1.bf16.msra.mxu0 %v1442
        %1550 = vmatprep.subr.bf16.mxu0 0
        %1551 = vmatpush1.bf16.msra.mxu0 %v1443
        %1552 = vmatprep.subr.bf16.mxu0 0
        %1553 = vmatpush1.bf16.msra.mxu0 0
        %1554 = vmatprep.subr.bf16.mxu0 0
        %1555 = vmatpush1.bf16.msra.mxu0 0
        %1556 = vmatprep.subr.bf16.mxu0 0
        %1557 = vmatpush1.bf16.msra.mxu0 0
        %1558 = vmatprep.subr.bf16.mxu0 0
        %1559 = vmatpush1.bf16.msra.mxu0 0
        %1560 = vmatprep.subr.bf16.mxu0 0
        %1561 = vmatpush1.bf16.msra.mxu0 0
        %1562 = vmatprep.subr.bf16.mxu0 0
        %1563 = vmatpush1.bf16.msra.mxu0 0
        %1564 = vmatprep.subr.bf16.mxu0 0
        %1565 = vmatpush1.bf16.msra.mxu0 0
        %1566 = vmatprep.subr.bf16.mxu0 0
        %1567 = vmatpush1.bf16.msra.mxu0 0
        %1568 = vmatprep.subr.bf16.mxu0 0
        %1569 = vmatpush1.bf16.msra.mxu0 0
        %1570 = vmatprep.subr.bf16.mxu0 0
        %1571 = vmatpush1.bf16.msra.mxu0 0
        %1572 = vmatprep.subr.bf16.mxu0 0
        %1573 = vmatpush1.bf16.msra.mxu0 0
        %1574 = vmatprep.subr.bf16.mxu0 0
        %1575 = vmatpush1.bf16.msra.mxu0 0
        %1576 = vmatprep.mubr.bf16.mxu0 0
        %1577 = vmatmul.mubr.bf16.gmra.mrb[0].mxu0 %v1449
        %v1578 = vpop.f32.mrb[0].mxu0
        %v1579 = vadd.f32 0.0, %v1578
        %v1580 = vpop.f32.mrb[0].mxu0
        %v1581 = vpop.f32.mrb[0].mxu0
        %v1582 = vadd.f32 0.0, %v1581
        %v1583 = vpop.f32.mrb[0].mxu0
        %1584 = vmatprep.mubr.bf16.mxu0 0
        %1585 = vmatmul.mubr.bf16.gmra.mrb[0].mxu0 %v1452
        %v1586 = vpop.f32.mrb[0].mxu0
        %v1587 = vadd.f32 0.0, %v1586
        %v1588 = vpop.f32.mrb[0].mxu0
        %v1589 = vpop.f32.mrb[0].mxu0
        %v1590 = vadd.f32 0.0, %v1589
        %v1591 = vpop.f32.mrb[0].mxu0
        %1592 = vmatprep.mubr.bf16.mxu0 0
        %1593 = vmatmul.mubr.bf16.gmra.mrb[0].mxu0 %v1455
        %v1594 = vpop.f32.mrb[0].mxu0
        %v1595 = vadd.f32 0.0, %v1594
        %v1596 = vpop.f32.mrb[0].mxu0
        %v1597 = vpop.f32.mrb[0].mxu0
        %v1598 = vadd.f32 0.0, %v1597
        %v1599 = vpop.f32.mrb[0].mxu0
        %1600 = vmatprep.mubr.bf16.mxu0 0
        %1601 = vmatmul.mubr.bf16.gmra.mrb[0].mxu0 %v1458
        %v1602 = vpop.f32.mrb[0].mxu0
        %v1603 = vadd.f32 0.0, %v1602
        %v1604 = vpop.f32.mrb[0].mxu0
        %v1605 = vpop.f32.mrb[0].mxu0
        %v1606 = vadd.f32 0.0, %v1605
        %v1607 = vpop.f32.mrb[0].mxu0
        %1608 = vmatprep.mubr.bf16.mxu0 0
        %1609 = vmatmul.mubr.bf16.gmra.mrb[0].mxu0 %v1461
        %v1610 = vpop.f32.mrb[0].mxu0
        %v1611 = vadd.f32 0.0, %v1610
        %v1612 = vpop.f32.mrb[0].mxu0
        %v1613 = vpop.f32.mrb[0].mxu0
        %v1614 = vadd.f32 0.0, %v1613
        %v1615 = vpop.f32.mrb[0].mxu0
        %1616 = vmatprep.mubr.bf16.mxu0 0
        %1617 = vmatmul.mubr.bf16.gmra.mrb[0].mxu0 %v1464
        %v1618 = vpop.f32.mrb[0].mxu0
        %v1619 = vadd.f32 0.0, %v1618
        %v1620 = vpop.f32.mrb[0].mxu0
        %v1621 = vpop.f32.mrb[0].mxu0
        %v1622 = vadd.f32 0.0, %v1621
        %v1623 = vpop.f32.mrb[0].mxu0
        %1624 = vmatprep.mubr.bf16.mxu0 0
        %1625 = vmatmul.mubr.bf16.gmra.mrb[0].mxu0 %v1467
        %v1626 = vpop.f32.mrb[0].mxu0
        %v1627 = vadd.f32 0.0, %v1626
        %v1628 = vpop.f32.mrb[0].mxu0
        %v1629 = vpop.f32.mrb[0].mxu0
        %v1630 = vadd.f32 0.0, %v1629
        %v1631 = vpop.f32.mrb[0].mxu0
        %1632 = vmatprep.mubr.bf16.mxu0 0
        %1633 = vmatmul.mubr.bf16.gmra.mrb[0].mxu0 %v1470
        %v1634 = vpop.f32.mrb[0].mxu0
        %v1635 = vadd.f32 0.0, %v1634
        %v1636 = vpop.f32.mrb[0].mxu0
        %v1637 = vpop.f32.mrb[0].mxu0
        %v1638 = vadd.f32 0.0, %v1637
        %v1639 = vpop.f32.mrb[0].mxu0
        %1640 = vmatprep.mubr.bf16.mxu0 0
        %1641 = vmatmul.mubr.bf16.gmra.mrb[0].mxu0 %v1473
        %v1642 = vpop.f32.mrb[0].mxu0
        %v1643 = vadd.f32 0.0, %v1642
        %v1644 = vpop.f32.mrb[0].mxu0
        %v1645 = vpop.f32.mrb[0].mxu0
        %v1646 = vadd.f32 0.0, %v1645
        %v1647 = vpop.f32.mrb[0].mxu0
        %1648 = vmatprep.mubr.bf16.mxu0 0
        %1649 = vmatmul.mubr.bf16.gmra.mrb[0].mxu0 %v1476
        %v1650 = vpop.f32.mrb[0].mxu0
        %v1651 = vadd.f32 0.0, %v1650
        %v1652 = vpop.f32.mrb[0].mxu0
        %v1653 = vpop.f32.mrb[0].mxu0
        %v1654 = vadd.f32 0.0, %v1653
        %v1655 = vpop.f32.mrb[0].mxu0
        %1656 = vmatprep.mubr.bf16.mxu0 0
        %1657 = vmatmul.mubr.bf16.gmra.mrb[0].mxu0 %v1479
        %v1658 = vpop.f32.mrb[0].mxu0
        %v1659 = vadd.f32 0.0, %v1658
        %v1660 = vpop.f32.mrb[0].mxu0
        %v1661 = vpop.f32.mrb[0].mxu0
        %v1662 = vadd.f32 0.0, %v1661
        %v1663 = vpop.f32.mrb[0].mxu0
        %1664 = vmatprep.mubr.bf16.mxu0 0
        %1665 = vmatmul.mubr.bf16.gmra.mrb[0].mxu0 %v1482
        %v1666 = vpop.f32.mrb[0].mxu0
        %v1667 = vadd.f32 0.0, %v1666
        %v1668 = vpop.f32.mrb[0].mxu0
        %v1669 = vpop.f32.mrb[0].mxu0
        %v1670 = vadd.f32 0.0, %v1669
        %v1671 = vpop.f32.mrb[0].mxu0
        %1672 = vmatprep.mubr.bf16.mxu0 0
        %1673 = vmatmul.mubr.bf16.gmra.mrb[0].mxu0 %v1485
        %v1674 = vpop.f32.mrb[0].mxu0
        %v1675 = vadd.f32 0.0, %v1674
        %v1676 = vpop.f32.mrb[0].mxu0
        %v1677 = vpop.f32.mrb[0].mxu0
        %v1678 = vadd.f32 0.0, %v1677
        %v1679 = vpop.f32.mrb[0].mxu0
        %1680 = vmatprep.mubr.bf16.mxu0 0
        %1681 = vmatmul.mubr.bf16.gmra.mrb[0].mxu0 %v1488
        %v1682 = vpop.f32.mrb[0].mxu0
        %v1683 = vadd.f32 0.0, %v1682
        %v1684 = vpop.f32.mrb[0].mxu0
        %v1685 = vpop.f32.mrb[0].mxu0
        %v1686 = vadd.f32 0.0, %v1685
        %v1687 = vpop.f32.mrb[0].mxu0
        %1688 = vmatprep.mubr.bf16.mxu0 0
        %1689 = vmatmul.mubr.bf16.gmra.mrb[0].mxu0 %v1491
        %v1690 = vpop.f32.mrb[0].mxu0
        %v1691 = vadd.f32 0.0, %v1690
        %v1692 = vpop.f32.mrb[0].mxu0
        %v1693 = vpop.f32.mrb[0].mxu0
        %v1694 = vadd.f32 0.0, %v1693
        %v1695 = vpop.f32.mrb[0].mxu0
        %1696 = vmatprep.mubr.bf16.mxu0 0
        %1697 = vmatmul.mubr.bf16.gmra.mrb[0].mxu0 %v1494
        %v1698 = vpop.f32.mrb[0].mxu0
        %v1699 = vadd.f32 0.0, %v1698
        %v1700 = vpop.f32.mrb[0].mxu0
        %v1701 = vpop.f32.mrb[0].mxu0
        %v1702 = vadd.f32 0.0, %v1701
        %v1703 = vpop.f32.mrb[0].mxu0
        %1704 = vmatprep.mubr.bf16.mxu0 0
        %1705 = vmatmul.mubr.bf16.gmra.mrb[0].mxu0 %v1497
        %v1706 = vpop.f32.mrb[0].mxu0
        %v1707 = vadd.f32 0.0, %v1706
        %v1708 = vpop.f32.mrb[0].mxu0
        %v1709 = vpop.f32.mrb[0].mxu0
        %v1710 = vadd.f32 0.0, %v1709
        %v1711 = vpop.f32.mrb[0].mxu0
        %1712 = vmatprep.mubr.bf16.mxu0 0
        %1713 = vmatmul.mubr.bf16.gmra.mrb[0].mxu0 %v1500
        %v1714 = vpop.f32.mrb[0].mxu0
        %v1715 = vadd.f32 0.0, %v1714
        %v1716 = vpop.f32.mrb[0].mxu0
        %v1717 = vpop.f32.mrb[0].mxu0
        %v1718 = vadd.f32 0.0, %v1717
        %v1719 = vpop.f32.mrb[0].mxu0
        %1720 = vmatprep.mubr.bf16.mxu0 0
        %1721 = vmatmul.mubr.bf16.gmra.mrb[0].mxu0 %v1503
        %v1722 = vpop.f32.mrb[0].mxu0
        %v1723 = vadd.f32 0.0, %v1722
        %v1724 = vpop.f32.mrb[0].mxu0
        %v1725 = vpop.f32.mrb[0].mxu0
        %v1726 = vadd.f32 0.0, %v1725
        %v1727 = vpop.f32.mrb[0].mxu0
        %1728 = vmatprep.mubr.bf16.mxu0 0
        %1729 = vmatmul.mubr.bf16.gmra.mrb[0].mxu0 %v1506
        %v1730 = vpop.f32.mrb[0].mxu0
        %v1731 = vadd.f32 0.0, %v1730
        %v1732 = vpop.f32.mrb[0].mxu0
        %v1733 = vpop.f32.mrb[0].mxu0
        %v1734 = vadd.f32 0.0, %v1733
        %v1735 = vpop.f32.mrb[0].mxu0
        %1736 = vmatprep.mubr.bf16.mxu0 0
        %1737 = vmatmul.mubr.bf16.gmra.mrb[0].mxu0 %v1509
        %v1738 = vpop.f32.mrb[0].mxu0
        %v1739 = vadd.f32 0.0, %v1738
        %v1740 = vpop.f32.mrb[0].mxu0
        %v1741 = vpop.f32.mrb[0].mxu0
        %v1742 = vadd.f32 0.0, %v1741
        %v1743 = vpop.f32.mrb[0].mxu0
        %1744 = vmatprep.mubr.bf16.mxu0 0
        %1745 = vmatmul.mubr.bf16.gmra.mrb[0].mxu0 %v1512
        %v1746 = vpop.f32.mrb[0].mxu0
        %v1747 = vadd.f32 0.0, %v1746
        %v1748 = vpop.f32.mrb[0].mxu0
        %v1749 = vpop.f32.mrb[0].mxu0
        %v1750 = vadd.f32 0.0, %v1749
        %v1751 = vpop.f32.mrb[0].mxu0
        %1752 = vmatprep.mubr.bf16.mxu0 0
        %1753 = vmatmul.mubr.bf16.gmra.mrb[0].mxu0 %v1515
        %v1754 = vpop.f32.mrb[0].mxu0
        %v1755 = vadd.f32 0.0, %v1754
        %v1756 = vpop.f32.mrb[0].mxu0
        %v1757 = vpop.f32.mrb[0].mxu0
        %v1758 = vadd.f32 0.0, %v1757
        %v1759 = vpop.f32.mrb[0].mxu0
        %1760 = vmatprep.mubr.bf16.mxu0 0
        %1761 = vmatmul.mubr.bf16.gmra.mrb[0].mxu0 %v1518
        %v1762 = vpop.f32.mrb[0].mxu0
        %v1763 = vadd.f32 0.0, %v1762
        %v1764 = vpop.f32.mrb[0].mxu0
        %v1765 = vpop.f32.mrb[0].mxu0
        %v1766 = vadd.f32 0.0, %v1765
        %v1767 = vpop.f32.mrb[0].mxu0
        %1768 = vmatprep.mubr.bf16.mxu0 0
        %1769 = vmatmul.mubr.bf16.gmra.mrb[0].mxu0 %v1521
        %v1770 = vpop.f32.mrb[0].mxu0
        %v1771 = vadd.f32 0.0, %v1770
        %v1772 = vpop.f32.mrb[0].mxu0
        %v1773 = vpop.f32.mrb[0].mxu0
        %v1774 = vadd.f32 0.0, %v1773
        %v1775 = vpop.f32.mrb[0].mxu0
        %1776 = vmatprep.mubr.bf16.mxu0 0
        %1777 = vmatmul.mubr.bf16.gmra.mrb[0].mxu0 %v1524
        %v1778 = vpop.f32.mrb[0].mxu0
        %v1779 = vadd.f32 0.0, %v1778
        %v1780 = vpop.f32.mrb[0].mxu0
        %v1781 = vpop.f32.mrb[0].mxu0
        %v1782 = vadd.f32 0.0, %v1781
        %v1783 = vpop.f32.mrb[0].mxu0
        %1784 = vmatprep.mubr.bf16.mxu0 0
        %1785 = vmatmul.mubr.bf16.gmra.mrb[0].mxu0 %v1527
        %v1786 = vpop.f32.mrb[0].mxu0
        %v1787 = vadd.f32 0.0, %v1786
        %v1788 = vpop.f32.mrb[0].mxu0
        %v1789 = vpop.f32.mrb[0].mxu0
        %v1790 = vadd.f32 0.0, %v1789
        %v1791 = vpop.f32.mrb[0].mxu0
        %1792 = vmatprep.mubr.bf16.mxu0 0
        %1793 = vmatmul.mubr.bf16.gmra.mrb[0].mxu0 %v1530
        %v1794 = vpop.f32.mrb[0].mxu0
        %v1795 = vadd.f32 0.0, %v1794
        %v1796 = vpop.f32.mrb[0].mxu0
        %v1797 = vpop.f32.mrb[0].mxu0
        %v1798 = vadd.f32 0.0, %v1797
        %v1799 = vpop.f32.mrb[0].mxu0
        %1800 = vmatprep.mubr.bf16.mxu0 0
        %1801 = vmatmul.mubr.bf16.gmra.mrb[0].mxu0 %v1533
        %v1802 = vpop.f32.mrb[0].mxu0
        %v1803 = vadd.f32 0.0, %v1802
        %v1804 = vpop.f32.mrb[0].mxu0
        %v1805 = vpop.f32.mrb[0].mxu0
        %v1806 = vadd.f32 0.0, %v1805
        %v1807 = vpop.f32.mrb[0].mxu0
        %1808 = vmatprep.mubr.bf16.mxu0 0
        %1809 = vmatmul.mubr.bf16.gmra.mrb[0].mxu0 %v1536
        %v1810 = vpop.f32.mrb[0].mxu0
        %v1811 = vadd.f32 0.0, %v1810
        %v1812 = vpop.f32.mrb[0].mxu0
        %v1813 = vpop.f32.mrb[0].mxu0
        %v1814 = vadd.f32 0.0, %v1813
        %v1815 = vpop.f32.mrb[0].mxu0
        %1816 = vmatprep.mubr.bf16.mxu0 0
        %1817 = vmatmul.mubr.bf16.gmra.mrb[0].mxu0 %v1539
        %v1818 = vpop.f32.mrb[0].mxu0
        %v1819 = vadd.f32 0.0, %v1818
        %v1820 = vpop.f32.mrb[0].mxu0
        %v1821 = vpop.f32.mrb[0].mxu0
        %v1822 = vadd.f32 0.0, %v1821
        %v1823 = vpop.f32.mrb[0].mxu0
        %1824 = vmatprep.mubr.bf16.mxu0 0
        %1825 = vmatmul.mubr.bf16.gmra.mrb[0].mxu0 %v1542
        %v1826 = vpop.f32.mrb[0].mxu0
        %v1827 = vadd.f32 0.0, %v1826
        %v1828 = vpop.f32.mrb[0].mxu0
        %v1829 = vpop.f32.mrb[0].mxu0
        %v1830 = vadd.f32 0.0, %v1829
        %v1831 = vpop.f32.mrb[0].mxu0
        %1832 = vdwg.mxu0
        %v1833 = vmul.f32 %v734, %v740
        %v1834 = vpack.c.bf16 %v1833, %v1833
        %v1836 = vsel %vm420, %v1834, 0
        %1838 = vmatprep.subr.bf16.mxu0 0
        %1839 = vmatpush1.bf16.msra.mxu0 %v1440
        %1840 = vmatprep.subr.bf16.mxu0 0
        %1841 = vmatpush1.bf16.msra.mxu0 %v1441
        %1842 = vmatprep.subr.bf16.mxu0 0
        %1843 = vmatpush1.bf16.msra.mxu0 %v1442
        %1844 = vmatprep.subr.bf16.mxu0 0
        %1845 = vmatpush1.bf16.msra.mxu0 %v1443
        %1846 = vmatprep.subr.bf16.mxu0 0
        %1847 = vmatpush1.bf16.msra.mxu0 0
        %1848 = vmatprep.subr.bf16.mxu0 0
        %1849 = vmatpush1.bf16.msra.mxu0 0
        %1850 = vmatprep.subr.bf16.mxu0 0
        %1851 = vmatpush1.bf16.msra.mxu0 0
        %1852 = vmatprep.subr.bf16.mxu0 0
        %1853 = vmatpush1.bf16.msra.mxu0 0
        %1854 = vmatprep.subr.bf16.mxu0 0
        %1855 = vmatpush1.bf16.msra.mxu0 0
        %1856 = vmatprep.subr.bf16.mxu0 0
        %1857 = vmatpush1.bf16.msra.mxu0 0
        %1858 = vmatprep.subr.bf16.mxu0 0
        %1859 = vmatpush1.bf16.msra.mxu0 0
        %1860 = vmatprep.subr.bf16.mxu0 0
        %1861 = vmatpush1.bf16.msra.mxu0 0
        %1862 = vmatprep.subr.bf16.mxu0 0
        %1863 = vmatpush1.bf16.msra.mxu0 0
        %1864 = vmatprep.subr.bf16.mxu0 0
        %1865 = vmatpush1.bf16.msra.mxu0 0
        %1866 = vmatprep.subr.bf16.mxu0 0
        %1867 = vmatpush1.bf16.msra.mxu0 0
        %1868 = vmatprep.subr.bf16.mxu0 0
        %1869 = vmatpush1.bf16.msra.mxu0 0
        %1870 = vmatprep.mubr.bf16.mxu0 0
        %1871 = vmatmul.mubr.bf16.gmra.mrb[0].mxu0 %v1836
        %v1872 = vpop.f32.mrb[0].mxu0
        %v1873 = vadd.f32 0.0, %v1872
        %v1874 = vpop.f32.mrb[0].mxu0
        %v1875 = vpop.f32.mrb[0].mxu0
        %v1876 = vpop.f32.mrb[0].mxu0
        %1877 = vdwg.mxu0
        %vm1878 = vcmask 31744
        %v1879 = vsel %vm1878, %v1579, -inf
        %v1880 = vsel %vm1878, %v1582, -inf
        %v1881 = vmax.f32 %v1879, %v1880
        %v1882 = vsel %vm1878, %v1587, -inf
        %v1883 = vmax.f32 %v1881, %v1882
        %v1884 = vsel %vm1878, %v1590, -inf
        %v1885 = vmax.f32 %v1883, %v1884
        %v1886 = vsel %vm1878, %v1595, -inf
        %v1887 = vmax.f32 %v1885, %v1886
        %v1888 = vsel %vm1878, %v1598, -inf
        %v1889 = vmax.f32 %v1887, %v1888
        %v1890 = vsel %vm1878, %v1603, -inf
        %v1891 = vmax.f32 %v1889, %v1890
        %v1892 = vsel %vm1878, %v1606, -inf
        %v1893 = vmax.f32 %v1891, %v1892
        %v1894 = vrot.slane %v1893, 4
        %v1895 = vmax.f32 %v1893, %v1894
        %v1896 = vrot.slane %v1895, 2
        %v1897 = vmax.f32 %v1895, %v1896
        %v1898 = vrot.slane %v1897, 1
        %v1899 = vmax.f32 %v1897, %v1898
        %v1900 = vsel %vm1878, %v1611, -inf
        %v1901 = vsel %vm1878, %v1614, -inf
        %v1902 = vmax.f32 %v1900, %v1901
        %v1903 = vsel %vm1878, %v1619, -inf
        %v1904 = vmax.f32 %v1902, %v1903
        %v1905 = vsel %vm1878, %v1622, -inf
        %v1906 = vmax.f32 %v1904, %v1905
        %v1907 = vsel %vm1878, %v1627, -inf
        %v1908 = vmax.f32 %v1906, %v1907
        %v1909 = vsel %vm1878, %v1630, -inf
        %v1910 = vmax.f32 %v1908, %v1909
        %v1911 = vsel %vm1878, %v1635, -inf
        %v1912 = vmax.f32 %v1910, %v1911
        %v1913 = vsel %vm1878, %v1638, -inf
        %v1914 = vmax.f32 %v1912, %v1913
        %v1915 = vrot.slane %v1914, 4
        %v1916 = vmax.f32 %v1914, %v1915
        %v1917 = vrot.slane %v1916, 2
        %v1918 = vmax.f32 %v1916, %v1917
        %v1919 = vrot.slane %v1918, 1
        %v1920 = vmax.f32 %v1918, %v1919
        %v1921 = vsel %vm1878, %v1643, -inf
        %v1922 = vsel %vm1878, %v1646, -inf
        %v1923 = vmax.f32 %v1921, %v1922
        %v1924 = vsel %vm1878, %v1651, -inf
        %v1925 = vmax.f32 %v1923, %v1924
        %v1926 = vsel %vm1878, %v1654, -inf
        %v1927 = vmax.f32 %v1925, %v1926
        %v1928 = vsel %vm1878, %v1659, -inf
        %v1929 = vmax.f32 %v1927, %v1928
        %v1930 = vsel %vm1878, %v1662, -inf
        %v1931 = vmax.f32 %v1929, %v1930
        %v1932 = vsel %vm1878, %v1667, -inf
        %v1933 = vmax.f32 %v1931, %v1932
        %v1934 = vsel %vm1878, %v1670, -inf
        %v1935 = vmax.f32 %v1933, %v1934
        %v1936 = vrot.slane %v1935, 4
        %v1937 = vmax.f32 %v1935, %v1936
        %v1938 = vrot.slane %v1937, 2
        %v1939 = vmax.f32 %v1937, %v1938
        %v1940 = vrot.slane %v1939, 1
        %v1941 = vmax.f32 %v1939, %v1940
        %v1942 = vsel %vm1878, %v1675, -inf
        %v1943 = vsel %vm1878, %v1678, -inf
        %v1944 = vmax.f32 %v1942, %v1943
        %v1945 = vsel %vm1878, %v1683, -inf
        %v1946 = vmax.f32 %v1944, %v1945
        %v1947 = vsel %vm1878, %v1686, -inf
        %v1948 = vmax.f32 %v1946, %v1947
        %v1949 = vsel %vm1878, %v1691, -inf
        %v1950 = vmax.f32 %v1948, %v1949
        %v1951 = vsel %vm1878, %v1694, -inf
        %v1952 = vmax.f32 %v1950, %v1951
        %v1953 = vsel %vm1878, %v1699, -inf
        %v1954 = vmax.f32 %v1952, %v1953
        %v1955 = vsel %vm1878, %v1702, -inf
        %v1956 = vmax.f32 %v1954, %v1955
        %v1957 = vrot.slane %v1956, 4
        %v1958 = vmax.f32 %v1956, %v1957
        %v1959 = vrot.slane %v1958, 2
        %v1960 = vmax.f32 %v1958, %v1959
        %v1961 = vrot.slane %v1960, 1
        %v1962 = vmax.f32 %v1960, %v1961
        %v1963 = vsel %vm1878, %v1707, -inf
        %v1964 = vsel %vm1878, %v1710, -inf
        %v1965 = vmax.f32 %v1963, %v1964
        %v1966 = vsel %vm1878, %v1715, -inf
        %v1967 = vmax.f32 %v1965, %v1966
        %v1968 = vsel %vm1878, %v1718, -inf
        %v1969 = vmax.f32 %v1967, %v1968
        %v1970 = vsel %vm1878, %v1723, -inf
        %v1971 = vmax.f32 %v1969, %v1970
        %v1972 = vsel %vm1878, %v1726, -inf
        %v1973 = vmax.f32 %v1971, %v1972
        %v1974 = vsel %vm1878, %v1731, -inf
        %v1975 = vmax.f32 %v1973, %v1974
        %v1976 = vsel %vm1878, %v1734, -inf
        %v1977 = vmax.f32 %v1975, %v1976
        %v1978 = vrot.slane %v1977, 4
        %v1979 = vmax.f32 %v1977, %v1978
        %v1980 = vrot.slane %v1979, 2
        %v1981 = vmax.f32 %v1979, %v1980
        %v1982 = vrot.slane %v1981, 1
        %v1983 = vmax.f32 %v1981, %v1982
        %v1984 = vsel %vm1878, %v1739, -inf
        %v1985 = vsel %vm1878, %v1742, -inf
        %v1986 = vmax.f32 %v1984, %v1985
        %v1987 = vsel %vm1878, %v1747, -inf
        %v1988 = vmax.f32 %v1986, %v1987
        %v1989 = vsel %vm1878, %v1750, -inf
        %v1990 = vmax.f32 %v1988, %v1989
        %v1991 = vsel %vm1878, %v1755, -inf
        %v1992 = vmax.f32 %v1990, %v1991
        %v1993 = vsel %vm1878, %v1758, -inf
        %v1994 = vmax.f32 %v1992, %v1993
        %v1995 = vsel %vm1878, %v1763, -inf
        %v1996 = vmax.f32 %v1994, %v1995
        %v1997 = vsel %vm1878, %v1766, -inf
        %v1998 = vmax.f32 %v1996, %v1997
        %v1999 = vrot.slane %v1998, 4
        %v2000 = vmax.f32 %v1998, %v1999
        %v2001 = vrot.slane %v2000, 2
        %v2002 = vmax.f32 %v2000, %v2001
        %v2003 = vrot.slane %v2002, 1
        %v2004 = vmax.f32 %v2002, %v2003
        %v2005 = vsel %vm1878, %v1771, -inf
        %v2006 = vsel %vm1878, %v1774, -inf
        %v2007 = vmax.f32 %v2005, %v2006
        %v2008 = vsel %vm1878, %v1779, -inf
        %v2009 = vmax.f32 %v2007, %v2008
        %v2010 = vsel %vm1878, %v1782, -inf
        %v2011 = vmax.f32 %v2009, %v2010
        %v2012 = vsel %vm1878, %v1787, -inf
        %v2013 = vmax.f32 %v2011, %v2012
        %v2014 = vsel %vm1878, %v1790, -inf
        %v2015 = vmax.f32 %v2013, %v2014
        %v2016 = vsel %vm1878, %v1795, -inf
        %v2017 = vmax.f32 %v2015, %v2016
        %v2018 = vsel %vm1878, %v1798, -inf
        %v2019 = vmax.f32 %v2017, %v2018
        %v2020 = vrot.slane %v2019, 4
        %v2021 = vmax.f32 %v2019, %v2020
        %v2022 = vrot.slane %v2021, 2
        %v2023 = vmax.f32 %v2021, %v2022
        %v2024 = vrot.slane %v2023, 1
        %v2025 = vmax.f32 %v2023, %v2024
        %v2026 = vsel %vm1878, %v1803, -inf
        %v2027 = vsel %vm1878, %v1806, -inf
        %v2028 = vmax.f32 %v2026, %v2027
        %v2029 = vsel %vm1878, %v1811, -inf
        %v2030 = vmax.f32 %v2028, %v2029
        %v2031 = vsel %vm1878, %v1814, -inf
        %v2032 = vmax.f32 %v2030, %v2031
        %v2033 = vsel %vm1878, %v1819, -inf
        %v2034 = vmax.f32 %v2032, %v2033
        %v2035 = vsel %vm1878, %v1822, -inf
        %v2036 = vmax.f32 %v2034, %v2035
        %v2037 = vsel %vm1878, %v1827, -inf
        %v2038 = vmax.f32 %v2036, %v2037
        %v2039 = vsel %vm1878, %v1830, -inf
        %v2040 = vmax.f32 %v2038, %v2039
        %v2041 = vrot.slane %v2040, 4
        %v2042 = vmax.f32 %v2040, %v2041
        %v2043 = vrot.slane %v2042, 2
        %v2044 = vmax.f32 %v2042, %v2043
        %v2045 = vrot.slane %v2044, 1
        %v2046 = vmax.f32 %v2044, %v2045
        %v2048 = vrot.slane %v1873, 1
        %v2049 = vrot.slane %v1873, 2
        %v2050 = vrot.slane %v1873, 3
        %v2051 = vrot.slane %v1873, 4
        %v2052 = vrot.slane %v1873, 5
        %v2053 = vrot.slane %v1873, 6
        %v2054 = vrot.slane %v1873, 7
        %v2063 = vmax.f32 %v1899, %v1873
        %v2064 = vmax.f32 %v1920, %v2048
        %v2065 = vmax.f32 %v1941, %v2049
        %v2066 = vmax.f32 %v1962, %v2050
        %v2067 = vmax.f32 %v1983, %v2051
        %v2068 = vmax.f32 %v2004, %v2052
        %v2069 = vmax.f32 %v2025, %v2053
        %v2070 = vmax.f32 %v2046, %v2054
        %v2071 = vlaneseq
        %v2072 = vshrl.u32 %v2071, 7
        %v2073 = vsub.s32 0, %v2072
        %v2074 = vrot.slane %v2063, %v2073
        %v2075 = vlaneseq
        %v2076 = vshrl.u32 %v2075, 7
        %v2077 = vsub.s32 0, %v2076
        %v2078 = vrot.slane %v2064, %v2077
        %v2079 = vlaneseq
        %v2080 = vshrl.u32 %v2079, 7
        %v2081 = vsub.s32 0, %v2080
        %v2082 = vrot.slane %v2065, %v2081
        %v2083 = vlaneseq
        %v2084 = vshrl.u32 %v2083, 7
        %v2085 = vsub.s32 0, %v2084
        %v2086 = vrot.slane %v2066, %v2085
        %v2087 = vlaneseq
        %v2088 = vshrl.u32 %v2087, 7
        %v2089 = vsub.s32 0, %v2088
        %v2090 = vrot.slane %v2067, %v2089
        %v2091 = vlaneseq
        %v2092 = vshrl.u32 %v2091, 7
        %v2093 = vsub.s32 0, %v2092
        %v2094 = vrot.slane %v2068, %v2093
        %v2095 = vlaneseq
        %v2096 = vshrl.u32 %v2095, 7
        %v2097 = vsub.s32 0, %v2096
        %v2098 = vrot.slane %v2069, %v2097
        %v2099 = vlaneseq
        %v2100 = vshrl.u32 %v2099, 7
        %v2101 = vsub.s32 0, %v2100
        %v2102 = vrot.slane %v2070, %v2101
        %v2103 = vsub.f32 %v1579, %v2074
        %v2104 = vsub.f32 %v1582, %v2074
        %v2105 = vsub.f32 %v1587, %v2074
        %v2106 = vsub.f32 %v1590, %v2074
        %v2107 = vsub.f32 %v1595, %v2074
        %v2108 = vsub.f32 %v1598, %v2074
        %v2109 = vsub.f32 %v1603, %v2074
        %v2110 = vsub.f32 %v1606, %v2074
        %v2111 = vsub.f32 %v1611, %v2078
        %v2112 = vsub.f32 %v1614, %v2078
        %v2113 = vsub.f32 %v1619, %v2078
        %v2114 = vsub.f32 %v1622, %v2078
        %v2115 = vsub.f32 %v1627, %v2078
        %v2116 = vsub.f32 %v1630, %v2078
        %v2117 = vsub.f32 %v1635, %v2078
        %v2118 = vsub.f32 %v1638, %v2078
        %v2119 = vsub.f32 %v1643, %v2082
        %v2120 = vsub.f32 %v1646, %v2082
        %v2121 = vsub.f32 %v1651, %v2082
        %v2122 = vsub.f32 %v1654, %v2082
        %v2123 = vsub.f32 %v1659, %v2082
        %v2124 = vsub.f32 %v1662, %v2082
        %v2125 = vsub.f32 %v1667, %v2082
        %v2126 = vsub.f32 %v1670, %v2082
        %v2127 = vsub.f32 %v1675, %v2086
        %v2128 = vsub.f32 %v1678, %v2086
        %v2129 = vsub.f32 %v1683, %v2086
        %v2130 = vsub.f32 %v1686, %v2086
        %v2131 = vsub.f32 %v1691, %v2086
        %v2132 = vsub.f32 %v1694, %v2086
        %v2133 = vsub.f32 %v1699, %v2086
        %v2134 = vsub.f32 %v1702, %v2086
        %v2135 = vsub.f32 %v1707, %v2090
        %v2136 = vsub.f32 %v1710, %v2090
        %v2137 = vsub.f32 %v1715, %v2090
        %v2138 = vsub.f32 %v1718, %v2090
        %v2139 = vsub.f32 %v1723, %v2090
        %v2140 = vsub.f32 %v1726, %v2090
        %v2141 = vsub.f32 %v1731, %v2090
        %v2142 = vsub.f32 %v1734, %v2090
        %v2143 = vsub.f32 %v1739, %v2094
        %v2144 = vsub.f32 %v1742, %v2094
        %v2145 = vsub.f32 %v1747, %v2094
        %v2146 = vsub.f32 %v1750, %v2094
        %v2147 = vsub.f32 %v1755, %v2094
        %v2148 = vsub.f32 %v1758, %v2094
        %v2149 = vsub.f32 %v1763, %v2094
        %v2150 = vsub.f32 %v1766, %v2094
        %v2151 = vsub.f32 %v1771, %v2098
        %v2152 = vsub.f32 %v1774, %v2098
        %v2153 = vsub.f32 %v1779, %v2098
        %v2154 = vsub.f32 %v1782, %v2098
        %v2155 = vsub.f32 %v1787, %v2098
        %v2156 = vsub.f32 %v1790, %v2098
        %v2157 = vsub.f32 %v1795, %v2098
        %v2158 = vsub.f32 %v1798, %v2098
        %v2159 = vsub.f32 %v1803, %v2102
        %v2160 = vsub.f32 %v1806, %v2102
        %v2161 = vsub.f32 %v1811, %v2102
        %v2162 = vsub.f32 %v1814, %v2102
        %v2163 = vsub.f32 %v1819, %v2102
        %v2164 = vsub.f32 %v1822, %v2102
        %v2165 = vsub.f32 %v1827, %v2102
        %v2166 = vsub.f32 %v1830, %v2102
        %v2167 = vmul.f32 %v2103, 1.442695
        %v2168 = vpow.pop %v2167
        %v2169 = vmul.f32 %v2104, 1.442695
        %v2170 = vpow.pop %v2169
        %v2171 = vmul.f32 %v2105, 1.442695
        %v2172 = vpow.pop %v2171
        %v2173 = vmul.f32 %v2106, 1.442695
        %v2174 = vpow.pop %v2173
        %v2175 = vmul.f32 %v2107, 1.442695
        %v2176 = vpow.pop %v2175
        %v2177 = vmul.f32 %v2108, 1.442695
        %v2178 = vpow.pop %v2177
        %v2179 = vmul.f32 %v2109, 1.442695
        %v2180 = vpow.pop %v2179
        %v2181 = vmul.f32 %v2110, 1.442695
        %v2182 = vpow.pop %v2181
        %v2183 = vmul.f32 %v2111, 1.442695
        %v2184 = vpow.pop %v2183
        %v2185 = vmul.f32 %v2112, 1.442695
        %v2186 = vpow.pop %v2185
        %v2187 = vmul.f32 %v2113, 1.442695
        %v2188 = vpow.pop %v2187
        %v2189 = vmul.f32 %v2114, 1.442695
        %v2190 = vpow.pop %v2189
        %v2191 = vmul.f32 %v2115, 1.442695
        %v2192 = vpow.pop %v2191
        %v2193 = vmul.f32 %v2116, 1.442695
        %v2194 = vpow.pop %v2193
        %v2195 = vmul.f32 %v2117, 1.442695
        %v2196 = vpow.pop %v2195
        %v2197 = vmul.f32 %v2118, 1.442695
        %v2198 = vpow.pop %v2197
        %v2199 = vmul.f32 %v2119, 1.442695
        %v2200 = vpow.pop %v2199
        %v2201 = vmul.f32 %v2120, 1.442695
        %v2202 = vpow.pop %v2201
        %v2203 = vmul.f32 %v2121, 1.442695
        %v2204 = vpow.pop %v2203
        %v2205 = vmul.f32 %v2122, 1.442695
        %v2206 = vpow.pop %v2205
        %v2207 = vmul.f32 %v2123, 1.442695
        %v2208 = vpow.pop %v2207
        %v2209 = vmul.f32 %v2124, 1.442695
        %v2210 = vpow.pop %v2209
        %v2211 = vmul.f32 %v2125, 1.442695
        %v2212 = vpow.pop %v2211
        %v2213 = vmul.f32 %v2126, 1.442695
        %v2214 = vpow.pop %v2213
        %v2215 = vmul.f32 %v2127, 1.442695
        %v2216 = vpow.pop %v2215
        %v2217 = vmul.f32 %v2128, 1.442695
        %v2218 = vpow.pop %v2217
        %v2219 = vmul.f32 %v2129, 1.442695
        %v2220 = vpow.pop %v2219
        %v2221 = vmul.f32 %v2130, 1.442695
        %v2222 = vpow.pop %v2221
        %v2223 = vmul.f32 %v2131, 1.442695
        %v2224 = vpow.pop %v2223
        %v2225 = vmul.f32 %v2132, 1.442695
        %v2226 = vpow.pop %v2225
        %v2227 = vmul.f32 %v2133, 1.442695
        %v2228 = vpow.pop %v2227
        %v2229 = vmul.f32 %v2134, 1.442695
        %v2230 = vpow.pop %v2229
        %v2231 = vmul.f32 %v2135, 1.442695
        %v2232 = vpow.pop %v2231
        %v2233 = vmul.f32 %v2136, 1.442695
        %v2234 = vpow.pop %v2233
        %v2235 = vmul.f32 %v2137, 1.442695
        %v2236 = vpow.pop %v2235
        %v2237 = vmul.f32 %v2138, 1.442695
        %v2238 = vpow.pop %v2237
        %v2239 = vmul.f32 %v2139, 1.442695
        %v2240 = vpow.pop %v2239
        %v2241 = vmul.f32 %v2140, 1.442695
        %v2242 = vpow.pop %v2241
        %v2243 = vmul.f32 %v2141, 1.442695
        %v2244 = vpow.pop %v2243
        %v2245 = vmul.f32 %v2142, 1.442695
        %v2246 = vpow.pop %v2245
        %v2247 = vmul.f32 %v2143, 1.442695
        %v2248 = vpow.pop %v2247
        %v2249 = vmul.f32 %v2144, 1.442695
        %v2250 = vpow.pop %v2249
        %v2251 = vmul.f32 %v2145, 1.442695
        %v2252 = vpow.pop %v2251
        %v2253 = vmul.f32 %v2146, 1.442695
        %v2254 = vpow.pop %v2253
        %v2255 = vmul.f32 %v2147, 1.442695
        %v2256 = vpow.pop %v2255
        %v2257 = vmul.f32 %v2148, 1.442695
        %v2258 = vpow.pop %v2257
        %v2259 = vmul.f32 %v2149, 1.442695
        %v2260 = vpow.pop %v2259
        %v2261 = vmul.f32 %v2150, 1.442695
        %v2262 = vpow.pop %v2261
        %v2263 = vmul.f32 %v2151, 1.442695
        %v2264 = vpow.pop %v2263
        %v2265 = vmul.f32 %v2152, 1.442695
        %v2266 = vpow.pop %v2265
        %v2267 = vmul.f32 %v2153, 1.442695
        %v2268 = vpow.pop %v2267
        %v2269 = vmul.f32 %v2154, 1.442695
        %v2270 = vpow.pop %v2269
        %v2271 = vmul.f32 %v2155, 1.442695
        %v2272 = vpow.pop %v2271
        %v2273 = vmul.f32 %v2156, 1.442695
        %v2274 = vpow.pop %v2273
        %v2275 = vmul.f32 %v2157, 1.442695
        %v2276 = vpow.pop %v2275
        %v2277 = vmul.f32 %v2158, 1.442695
        %v2278 = vpow.pop %v2277
        %v2279 = vmul.f32 %v2159, 1.442695
        %v2280 = vpow.pop %v2279
        %v2281 = vmul.f32 %v2160, 1.442695
        %v2282 = vpow.pop %v2281
        %v2283 = vmul.f32 %v2161, 1.442695
        %v2284 = vpow.pop %v2283
        %v2285 = vmul.f32 %v2162, 1.442695
        %v2286 = vpow.pop %v2285
        %v2287 = vmul.f32 %v2163, 1.442695
        %v2288 = vpow.pop %v2287
        %v2289 = vmul.f32 %v2164, 1.442695
        %v2290 = vpow.pop %v2289
        %v2291 = vmul.f32 %v2165, 1.442695
        %v2292 = vpow.pop %v2291
        %v2293 = vmul.f32 %v2166, 1.442695
        %v2294 = vpow.pop %v2293
        %v2303 = vrot.slane %v2064, 7
        %v2304 = vsel %vm641, %v2303, %v2063
        %v2305 = vrot.slane %v2065, 6
        %v2306 = vsel %vm643, %v2305, %v2304
        %v2307 = vrot.slane %v2066, 5
        %v2308 = vsel %vm645, %v2307, %v2306
        %v2309 = vrot.slane %v2067, 4
        %v2310 = vsel %vm647, %v2309, %v2308
        %v2311 = vrot.slane %v2068, 3
        %v2312 = vsel %vm649, %v2311, %v2310
        %v2313 = vrot.slane %v2069, 2
        %v2314 = vsel %vm651, %v2313, %v2312
        %v2315 = vrot.slane %v2070, 1
        %v2316 = vsel %vm653, %v2315, %v2314
        %v2318 = vsub.f32 %v1873, %v2316
        %v2319 = vmul.f32 %v2318, 1.442695
        %v2320 = vpow.pop %v2319
        %v2321 = vsel %vm1878, %v2168, 0.0
        %v2322 = vsel %vm1878, %v2170, 0.0
        %v2323 = vadd.f32 %v2321, %v2322
        %v2324 = vsel %vm1878, %v2172, 0.0
        %v2325 = vadd.f32 %v2323, %v2324
        %v2326 = vsel %vm1878, %v2174, 0.0
        %v2327 = vadd.f32 %v2325, %v2326
        %v2328 = vsel %vm1878, %v2176, 0.0
        %v2329 = vadd.f32 %v2327, %v2328
        %v2330 = vsel %vm1878, %v2178, 0.0
        %v2331 = vadd.f32 %v2329, %v2330
        %v2332 = vsel %vm1878, %v2180, 0.0
        %v2333 = vadd.f32 %v2331, %v2332
        %v2334 = vsel %vm1878, %v2182, 0.0
        %v2335 = vadd.f32 %v2333, %v2334
        %v2336 = vrot.slane %v2335, 4
        %v2337 = vadd.f32 %v2335, %v2336
        %v2338 = vrot.slane %v2337, 2
        %v2339 = vadd.f32 %v2337, %v2338
        %v2340 = vrot.slane %v2339, 1
        %v2341 = vadd.f32 %v2339, %v2340
        %v2342 = vsel %vm1878, %v2184, 0.0
        %v2343 = vsel %vm1878, %v2186, 0.0
        %v2344 = vadd.f32 %v2342, %v2343
        %v2345 = vsel %vm1878, %v2188, 0.0
        %v2346 = vadd.f32 %v2344, %v2345
        %v2347 = vsel %vm1878, %v2190, 0.0
        %v2348 = vadd.f32 %v2346, %v2347
        %v2349 = vsel %vm1878, %v2192, 0.0
        %v2350 = vadd.f32 %v2348, %v2349
        %v2351 = vsel %vm1878, %v2194, 0.0
        %v2352 = vadd.f32 %v2350, %v2351
        %v2353 = vsel %vm1878, %v2196, 0.0
        %v2354 = vadd.f32 %v2352, %v2353
        %v2355 = vsel %vm1878, %v2198, 0.0
        %v2356 = vadd.f32 %v2354, %v2355
        %v2357 = vrot.slane %v2356, 4
        %v2358 = vadd.f32 %v2356, %v2357
        %v2359 = vrot.slane %v2358, 2
        %v2360 = vadd.f32 %v2358, %v2359
        %v2361 = vrot.slane %v2360, 1
        %v2362 = vadd.f32 %v2360, %v2361
        %v2363 = vsel %vm1878, %v2200, 0.0
        %v2364 = vsel %vm1878, %v2202, 0.0
        %v2365 = vadd.f32 %v2363, %v2364
        %v2366 = vsel %vm1878, %v2204, 0.0
        %v2367 = vadd.f32 %v2365, %v2366
        %v2368 = vsel %vm1878, %v2206, 0.0
        %v2369 = vadd.f32 %v2367, %v2368
        %v2370 = vsel %vm1878, %v2208, 0.0
        %v2371 = vadd.f32 %v2369, %v2370
        %v2372 = vsel %vm1878, %v2210, 0.0
        %v2373 = vadd.f32 %v2371, %v2372
        %v2374 = vsel %vm1878, %v2212, 0.0
        %v2375 = vadd.f32 %v2373, %v2374
        %v2376 = vsel %vm1878, %v2214, 0.0
        %v2377 = vadd.f32 %v2375, %v2376
        %v2378 = vrot.slane %v2377, 4
        %v2379 = vadd.f32 %v2377, %v2378
        %v2380 = vrot.slane %v2379, 2
        %v2381 = vadd.f32 %v2379, %v2380
        %v2382 = vrot.slane %v2381, 1
        %v2383 = vadd.f32 %v2381, %v2382
        %v2384 = vsel %vm1878, %v2216, 0.0
        %v2385 = vsel %vm1878, %v2218, 0.0
        %v2386 = vadd.f32 %v2384, %v2385
        %v2387 = vsel %vm1878, %v2220, 0.0
        %v2388 = vadd.f32 %v2386, %v2387
        %v2389 = vsel %vm1878, %v2222, 0.0
        %v2390 = vadd.f32 %v2388, %v2389
        %v2391 = vsel %vm1878, %v2224, 0.0
        %v2392 = vadd.f32 %v2390, %v2391
        %v2393 = vsel %vm1878, %v2226, 0.0
        %v2394 = vadd.f32 %v2392, %v2393
        %v2395 = vsel %vm1878, %v2228, 0.0
        %v2396 = vadd.f32 %v2394, %v2395
        %v2397 = vsel %vm1878, %v2230, 0.0
        %v2398 = vadd.f32 %v2396, %v2397
        %v2399 = vrot.slane %v2398, 4
        %v2400 = vadd.f32 %v2398, %v2399
        %v2401 = vrot.slane %v2400, 2
        %v2402 = vadd.f32 %v2400, %v2401
        %v2403 = vrot.slane %v2402, 1
        %v2404 = vadd.f32 %v2402, %v2403
        %v2405 = vsel %vm1878, %v2232, 0.0
        %v2406 = vsel %vm1878, %v2234, 0.0
        %v2407 = vadd.f32 %v2405, %v2406
        %v2408 = vsel %vm1878, %v2236, 0.0
        %v2409 = vadd.f32 %v2407, %v2408
        %v2410 = vsel %vm1878, %v2238, 0.0
        %v2411 = vadd.f32 %v2409, %v2410
        %v2412 = vsel %vm1878, %v2240, 0.0
        %v2413 = vadd.f32 %v2411, %v2412
        %v2414 = vsel %vm1878, %v2242, 0.0
        %v2415 = vadd.f32 %v2413, %v2414
        %v2416 = vsel %vm1878, %v2244, 0.0
        %v2417 = vadd.f32 %v2415, %v2416
        %v2418 = vsel %vm1878, %v2246, 0.0
        %v2419 = vadd.f32 %v2417, %v2418
        %v2420 = vrot.slane %v2419, 4
        %v2421 = vadd.f32 %v2419, %v2420
        %v2422 = vrot.slane %v2421, 2
        %v2423 = vadd.f32 %v2421, %v2422
        %v2424 = vrot.slane %v2423, 1
        %v2425 = vadd.f32 %v2423, %v2424
        %v2426 = vsel %vm1878, %v2248, 0.0
        %v2427 = vsel %vm1878, %v2250, 0.0
        %v2428 = vadd.f32 %v2426, %v2427
        %v2429 = vsel %vm1878, %v2252, 0.0
        %v2430 = vadd.f32 %v2428, %v2429
        %v2431 = vsel %vm1878, %v2254, 0.0
        %v2432 = vadd.f32 %v2430, %v2431
        %v2433 = vsel %vm1878, %v2256, 0.0
        %v2434 = vadd.f32 %v2432, %v2433
        %v2435 = vsel %vm1878, %v2258, 0.0
        %v2436 = vadd.f32 %v2434, %v2435
        %v2437 = vsel %vm1878, %v2260, 0.0
        %v2438 = vadd.f32 %v2436, %v2437
        %v2439 = vsel %vm1878, %v2262, 0.0
        %v2440 = vadd.f32 %v2438, %v2439
        %v2441 = vrot.slane %v2440, 4
        %v2442 = vadd.f32 %v2440, %v2441
        %v2443 = vrot.slane %v2442, 2
        %v2444 = vadd.f32 %v2442, %v2443
        %v2445 = vrot.slane %v2444, 1
        %v2446 = vadd.f32 %v2444, %v2445
        %v2447 = vsel %vm1878, %v2264, 0.0
        %v2448 = vsel %vm1878, %v2266, 0.0
        %v2449 = vadd.f32 %v2447, %v2448
        %v2450 = vsel %vm1878, %v2268, 0.0
        %v2451 = vadd.f32 %v2449, %v2450
        %v2452 = vsel %vm1878, %v2270, 0.0
        %v2453 = vadd.f32 %v2451, %v2452
        %v2454 = vsel %vm1878, %v2272, 0.0
        %v2455 = vadd.f32 %v2453, %v2454
        %v2456 = vsel %vm1878, %v2274, 0.0
        %v2457 = vadd.f32 %v2455, %v2456
        %v2458 = vsel %vm1878, %v2276, 0.0
        %v2459 = vadd.f32 %v2457, %v2458
        %v2460 = vsel %vm1878, %v2278, 0.0
        %v2461 = vadd.f32 %v2459, %v2460
        %v2462 = vrot.slane %v2461, 4
        %v2463 = vadd.f32 %v2461, %v2462
        %v2464 = vrot.slane %v2463, 2
        %v2465 = vadd.f32 %v2463, %v2464
        %v2466 = vrot.slane %v2465, 1
        %v2467 = vadd.f32 %v2465, %v2466
        %v2468 = vsel %vm1878, %v2280, 0.0
        %v2469 = vsel %vm1878, %v2282, 0.0
        %v2470 = vadd.f32 %v2468, %v2469
        %v2471 = vsel %vm1878, %v2284, 0.0
        %v2472 = vadd.f32 %v2470, %v2471
        %v2473 = vsel %vm1878, %v2286, 0.0
        %v2474 = vadd.f32 %v2472, %v2473
        %v2475 = vsel %vm1878, %v2288, 0.0
        %v2476 = vadd.f32 %v2474, %v2475
        %v2477 = vsel %vm1878, %v2290, 0.0
        %v2478 = vadd.f32 %v2476, %v2477
        %v2479 = vsel %vm1878, %v2292, 0.0
        %v2480 = vadd.f32 %v2478, %v2479
        %v2481 = vsel %vm1878, %v2294, 0.0
        %v2482 = vadd.f32 %v2480, %v2481
        %v2483 = vrot.slane %v2482, 4
        %v2484 = vadd.f32 %v2482, %v2483
        %v2485 = vrot.slane %v2484, 2
        %v2486 = vadd.f32 %v2484, %v2485
        %v2487 = vrot.slane %v2486, 1
        %v2488 = vadd.f32 %v2486, %v2487
        %v2490 = vrot.slane %v2320, 1
        %v2491 = vrot.slane %v2320, 2
        %v2492 = vrot.slane %v2320, 3
        %v2493 = vrot.slane %v2320, 4
        %v2494 = vrot.slane %v2320, 5
        %v2495 = vrot.slane %v2320, 6
        %v2496 = vrot.slane %v2320, 7
        %v2505 = vadd.f32 %v2341, %v2320
        %v2506 = vadd.f32 %v2362, %v2490
        %v2507 = vadd.f32 %v2383, %v2491
        %v2508 = vadd.f32 %v2404, %v2492
        %v2509 = vadd.f32 %v2425, %v2493
        %v2510 = vadd.f32 %v2446, %v2494
        %v2511 = vadd.f32 %v2467, %v2495
        %v2512 = vadd.f32 %v2488, %v2496
        %v2513 = vrcp.pop %v2505
        %v2514 = vmul.f32 1.0, %v2513
        %v2515 = vrcp.pop %v2506
        %v2516 = vmul.f32 1.0, %v2515
        %v2517 = vrcp.pop %v2507
        %v2518 = vmul.f32 1.0, %v2517
        %v2519 = vrcp.pop %v2508
        %v2520 = vmul.f32 1.0, %v2519
        %v2521 = vrcp.pop %v2509
        %v2522 = vmul.f32 1.0, %v2521
        %v2523 = vrcp.pop %v2510
        %v2524 = vmul.f32 1.0, %v2523
        %v2525 = vrcp.pop %v2511
        %v2526 = vmul.f32 1.0, %v2525
        %v2527 = vrcp.pop %v2512
        %v2528 = vmul.f32 1.0, %v2527
        %v2529 = vlaneseq
        %v2530 = vshrl.u32 %v2529, 7
        %v2531 = vsub.s32 0, %v2530
        %v2532 = vrot.slane %v2514, %v2531
        %v2533 = vlaneseq
        %v2534 = vshrl.u32 %v2533, 7
        %v2535 = vsub.s32 0, %v2534
        %v2536 = vrot.slane %v2516, %v2535
        %v2537 = vlaneseq
        %v2538 = vshrl.u32 %v2537, 7
        %v2539 = vsub.s32 0, %v2538
        %v2540 = vrot.slane %v2518, %v2539
        %v2541 = vlaneseq
        %v2542 = vshrl.u32 %v2541, 7
        %v2543 = vsub.s32 0, %v2542
        %v2544 = vrot.slane %v2520, %v2543
        %v2545 = vlaneseq
        %v2546 = vshrl.u32 %v2545, 7
        %v2547 = vsub.s32 0, %v2546
        %v2548 = vrot.slane %v2522, %v2547
        %v2549 = vlaneseq
        %v2550 = vshrl.u32 %v2549, 7
        %v2551 = vsub.s32 0, %v2550
        %v2552 = vrot.slane %v2524, %v2551
        %v2553 = vlaneseq
        %v2554 = vshrl.u32 %v2553, 7
        %v2555 = vsub.s32 0, %v2554
        %v2556 = vrot.slane %v2526, %v2555
        %v2557 = vlaneseq
        %v2558 = vshrl.u32 %v2557, 7
        %v2559 = vsub.s32 0, %v2558
        %v2560 = vrot.slane %v2528, %v2559
        %v2561 = vmul.f32 %v2168, %v2532
        %v2562 = vmul.f32 %v2170, %v2532
        %v2563 = vmul.f32 %v2172, %v2532
        %v2564 = vmul.f32 %v2174, %v2532
        %v2565 = vmul.f32 %v2176, %v2532
        %v2566 = vmul.f32 %v2178, %v2532
        %v2567 = vmul.f32 %v2180, %v2532
        %v2568 = vmul.f32 %v2182, %v2532
        %v2569 = vmul.f32 %v2184, %v2536
        %v2570 = vmul.f32 %v2186, %v2536
        %v2571 = vmul.f32 %v2188, %v2536
        %v2572 = vmul.f32 %v2190, %v2536
        %v2573 = vmul.f32 %v2192, %v2536
        %v2574 = vmul.f32 %v2194, %v2536
        %v2575 = vmul.f32 %v2196, %v2536
        %v2576 = vmul.f32 %v2198, %v2536
        %v2577 = vmul.f32 %v2200, %v2540
        %v2578 = vmul.f32 %v2202, %v2540
        %v2579 = vmul.f32 %v2204, %v2540
        %v2580 = vmul.f32 %v2206, %v2540
        %v2581 = vmul.f32 %v2208, %v2540
        %v2582 = vmul.f32 %v2210, %v2540
        %v2583 = vmul.f32 %v2212, %v2540
        %v2584 = vmul.f32 %v2214, %v2540
        %v2585 = vmul.f32 %v2216, %v2544
        %v2586 = vmul.f32 %v2218, %v2544
        %v2587 = vmul.f32 %v2220, %v2544
        %v2588 = vmul.f32 %v2222, %v2544
        %v2589 = vmul.f32 %v2224, %v2544
        %v2590 = vmul.f32 %v2226, %v2544
        %v2591 = vmul.f32 %v2228, %v2544
        %v2592 = vmul.f32 %v2230, %v2544
        %v2593 = vmul.f32 %v2232, %v2548
        %v2594 = vmul.f32 %v2234, %v2548
        %v2595 = vmul.f32 %v2236, %v2548
        %v2596 = vmul.f32 %v2238, %v2548
        %v2597 = vmul.f32 %v2240, %v2548
        %v2598 = vmul.f32 %v2242, %v2548
        %v2599 = vmul.f32 %v2244, %v2548
        %v2600 = vmul.f32 %v2246, %v2548
        %v2601 = vmul.f32 %v2248, %v2552
        %v2602 = vmul.f32 %v2250, %v2552
        %v2603 = vmul.f32 %v2252, %v2552
        %v2604 = vmul.f32 %v2254, %v2552
        %v2605 = vmul.f32 %v2256, %v2552
        %v2606 = vmul.f32 %v2258, %v2552
        %v2607 = vmul.f32 %v2260, %v2552
        %v2608 = vmul.f32 %v2262, %v2552
        %v2609 = vmul.f32 %v2264, %v2556
        %v2610 = vmul.f32 %v2266, %v2556
        %v2611 = vmul.f32 %v2268, %v2556
        %v2612 = vmul.f32 %v2270, %v2556
        %v2613 = vmul.f32 %v2272, %v2556
        %v2614 = vmul.f32 %v2274, %v2556
        %v2615 = vmul.f32 %v2276, %v2556
        %v2616 = vmul.f32 %v2278, %v2556
        %v2617 = vmul.f32 %v2280, %v2560
        %v2618 = vmul.f32 %v2282, %v2560
        %v2619 = vmul.f32 %v2284, %v2560
        %v2620 = vmul.f32 %v2286, %v2560
        %v2621 = vmul.f32 %v2288, %v2560
        %v2622 = vmul.f32 %v2290, %v2560
        %v2623 = vmul.f32 %v2292, %v2560
        %v2624 = vmul.f32 %v2294, %v2560
        %v2633 = vrot.slane %v2516, 7
        %v2634 = vsel %vm641, %v2633, %v2514
        %v2635 = vrot.slane %v2518, 6
        %v2636 = vsel %vm643, %v2635, %v2634
        %v2637 = vrot.slane %v2520, 5
        %v2638 = vsel %vm645, %v2637, %v2636
        %v2639 = vrot.slane %v2522, 4
        %v2640 = vsel %vm647, %v2639, %v2638
        %v2641 = vrot.slane %v2524, 3
        %v2642 = vsel %vm649, %v2641, %v2640
        %v2643 = vrot.slane %v2526, 2
        %v2644 = vsel %vm651, %v2643, %v2642
        %v2645 = vrot.slane %v2528, 1
        %v2646 = vsel %vm653, %v2645, %v2644
        %v2648 = vmul.f32 %v2320, %v2646
        %v2649 = vpack.c.bf16 %v2562, %v2561
        %v2650 = vpack.c.bf16 %v2564, %v2563
        %v2651 = vpack.c.bf16 %v2566, %v2565
        %v2652 = vpack.c.bf16 %v2568, %v2567
        %v2653 = vpack.c.bf16 %v2570, %v2569
        %v2654 = vpack.c.bf16 %v2572, %v2571
        %v2655 = vpack.c.bf16 %v2574, %v2573
        %v2656 = vpack.c.bf16 %v2576, %v2575
        %v2657 = vpack.c.bf16 %v2578, %v2577
        %v2658 = vpack.c.bf16 %v2580, %v2579
        %v2659 = vpack.c.bf16 %v2582, %v2581
        %v2660 = vpack.c.bf16 %v2584, %v2583
        %v2661 = vpack.c.bf16 %v2586, %v2585
        %v2662 = vpack.c.bf16 %v2588, %v2587
        %v2663 = vpack.c.bf16 %v2590, %v2589
        %v2664 = vpack.c.bf16 %v2592, %v2591
        %v2665 = vpack.c.bf16 %v2594, %v2593
        %v2666 = vpack.c.bf16 %v2596, %v2595
        %v2667 = vpack.c.bf16 %v2598, %v2597
        %v2668 = vpack.c.bf16 %v2600, %v2599
        %v2669 = vpack.c.bf16 %v2602, %v2601
        %v2670 = vpack.c.bf16 %v2604, %v2603
        %v2671 = vpack.c.bf16 %v2606, %v2605
        %v2672 = vpack.c.bf16 %v2608, %v2607
        %v2673 = vpack.c.bf16 %v2610, %v2609
        %v2674 = vpack.c.bf16 %v2612, %v2611
        %v2675 = vpack.c.bf16 %v2614, %v2613
        %v2676 = vpack.c.bf16 %v2616, %v2615
        %v2677 = vpack.c.bf16 %v2618, %v2617
        %v2678 = vpack.c.bf16 %v2620, %v2619
        %v2679 = vpack.c.bf16 %v2622, %v2621
        %v2680 = vpack.c.bf16 %v2624, %v2623
        %v2681 = vld [vmem:[%s7] sm:$0x3]
        %v2683 = vsel %vm1878, %v2649, 0
        %v2686 = vsel %vm1878, %v2650, 0
        %v2689 = vsel %vm1878, %v2651, 0
        %v2692 = vsel %vm1878, %v2652, 0
        %v2695 = vsel %vm1878, %v2653, 0
        %v2698 = vsel %vm1878, %v2654, 0
        %v2701 = vsel %vm1878, %v2655, 0
        %v2704 = vsel %vm1878, %v2656, 0
        %v2707 = vsel %vm1878, %v2657, 0
        %v2710 = vsel %vm1878, %v2658, 0
        %v2713 = vsel %vm1878, %v2659, 0
        %v2716 = vsel %vm1878, %v2660, 0
        %v2719 = vsel %vm1878, %v2661, 0
        %v2722 = vsel %vm1878, %v2662, 0
        %v2725 = vsel %vm1878, %v2663, 0
        %v2728 = vsel %vm1878, %v2664, 0
        %v2731 = vsel %vm1878, %v2665, 0
        %v2734 = vsel %vm1878, %v2666, 0
        %v2737 = vsel %vm1878, %v2667, 0
        %v2740 = vsel %vm1878, %v2668, 0
        %v2743 = vsel %vm1878, %v2669, 0
        %v2746 = vsel %vm1878, %v2670, 0
        %v2749 = vsel %vm1878, %v2671, 0
        %v2752 = vsel %vm1878, %v2672, 0
        %v2755 = vsel %vm1878, %v2673, 0
        %v2758 = vsel %vm1878, %v2674, 0
        %v2761 = vsel %vm1878, %v2675, 0
        %v2764 = vsel %vm1878, %v2676, 0
        %v2767 = vsel %vm1878, %v2677, 0
        %v2770 = vsel %vm1878, %v2678, 0
        %v2773 = vsel %vm1878, %v2679, 0
        %v2776 = vsel %vm1878, %v2680, 0
        %vm2778 = vcmask 1041408
        %v2780 = vsel %vm2778, %v2681, 0
        %2782 = vmatprep.subr.bf16.mxu0 0
        %2783 = vmatpush1.bf16.msra.mxu0 %v2780
        %2784 = vmatprep.subr.bf16.mxu0 0
        %2785 = vmatpush1.bf16.msra.mxu0 0
        %2786 = vmatprep.subr.bf16.mxu0 0
        %2787 = vmatpush1.bf16.msra.mxu0 0
        %2788 = vmatprep.subr.bf16.mxu0 0
        %2789 = vmatpush1.bf16.msra.mxu0 0
        %2790 = vmatprep.subr.bf16.mxu0 0
        %2791 = vmatpush1.bf16.msra.mxu0 0
        %2792 = vmatprep.subr.bf16.mxu0 0
        %2793 = vmatpush1.bf16.msra.mxu0 0
        %2794 = vmatprep.subr.bf16.mxu0 0
        %2795 = vmatpush1.bf16.msra.mxu0 0
        %2796 = vmatprep.subr.bf16.mxu0 0
        %2797 = vmatpush1.bf16.msra.mxu0 0
        %2798 = vmatprep.subr.bf16.mxu0 0
        %2799 = vmatpush1.bf16.msra.mxu0 0
        %2800 = vmatprep.subr.bf16.mxu0 0
        %2801 = vmatpush1.bf16.msra.mxu0 0
        %2802 = vmatprep.subr.bf16.mxu0 0
        %2803 = vmatpush1.bf16.msra.mxu0 0
        %2804 = vmatprep.subr.bf16.mxu0 0
        %2805 = vmatpush1.bf16.msra.mxu0 0
        %2806 = vmatprep.subr.bf16.mxu0 0
        %2807 = vmatpush1.bf16.msra.mxu0 0
        %2808 = vmatprep.subr.bf16.mxu0 0
        %2809 = vmatpush1.bf16.msra.mxu0 0
        %2810 = vmatprep.subr.bf16.mxu0 0
        %2811 = vmatpush1.bf16.msra.mxu0 0
        %2812 = vmatprep.subr.bf16.mxu0 0
        %2813 = vmatpush1.bf16.msra.mxu0 0
        %2814 = vmatprep.mubr.bf16.mxu0 0
        %2815 = vmatmul.mubr.bf16.gmra.mrb[0].mxu0 %v2683
        %v2816 = vpop.f32.mrb[0].mxu0
        %v2817 = vadd.f32 0.0, %v2816
        %v2818 = vpop.f32.mrb[0].mxu0
        %v2819 = vpop.f32.mrb[0].mxu0
        %v2820 = vadd.f32 0.0, %v2819
        %v2821 = vpop.f32.mrb[0].mxu0
        %2822 = vmatprep.mubr.bf16.mxu0 0
        %2823 = vmatmul.mubr.bf16.gmra.mrb[0].mxu0 %v2686
        %v2824 = vpop.f32.mrb[0].mxu0
        %v2825 = vadd.f32 0.0, %v2824
        %v2826 = vpop.f32.mrb[0].mxu0
        %v2827 = vpop.f32.mrb[0].mxu0
        %v2828 = vadd.f32 0.0, %v2827
        %v2829 = vpop.f32.mrb[0].mxu0
        %2830 = vmatprep.mubr.bf16.mxu0 0
        %2831 = vmatmul.mubr.bf16.gmra.mrb[0].mxu0 %v2689
        %v2832 = vpop.f32.mrb[0].mxu0
        %v2833 = vadd.f32 0.0, %v2832
        %v2834 = vpop.f32.mrb[0].mxu0
        %v2835 = vpop.f32.mrb[0].mxu0
        %v2836 = vadd.f32 0.0, %v2835
        %v2837 = vpop.f32.mrb[0].mxu0
        %2838 = vmatprep.mubr.bf16.mxu0 0
        %2839 = vmatmul.mubr.bf16.gmra.mrb[0].mxu0 %v2692
        %v2840 = vpop.f32.mrb[0].mxu0
        %v2841 = vadd.f32 0.0, %v2840
        %v2842 = vpop.f32.mrb[0].mxu0
        %v2843 = vpop.f32.mrb[0].mxu0
        %v2844 = vadd.f32 0.0, %v2843
        %v2845 = vpop.f32.mrb[0].mxu0
        %2846 = vmatprep.mubr.bf16.mxu0 0
        %2847 = vmatmul.mubr.bf16.gmra.mrb[0].mxu0 %v2695
        %v2848 = vpop.f32.mrb[0].mxu0
        %v2849 = vadd.f32 0.0, %v2848
        %v2850 = vpop.f32.mrb[0].mxu0
        %v2851 = vpop.f32.mrb[0].mxu0
        %v2852 = vadd.f32 0.0, %v2851
        %v2853 = vpop.f32.mrb[0].mxu0
        %2854 = vmatprep.mubr.bf16.mxu0 0
        %2855 = vmatmul.mubr.bf16.gmra.mrb[0].mxu0 %v2698
        %v2856 = vpop.f32.mrb[0].mxu0
        %v2857 = vadd.f32 0.0, %v2856
        %v2858 = vpop.f32.mrb[0].mxu0
        %v2859 = vpop.f32.mrb[0].mxu0
        %v2860 = vadd.f32 0.0, %v2859
        %v2861 = vpop.f32.mrb[0].mxu0
        %2862 = vmatprep.mubr.bf16.mxu0 0
        %2863 = vmatmul.mubr.bf16.gmra.mrb[0].mxu0 %v2701
        %v2864 = vpop.f32.mrb[0].mxu0
        %v2865 = vadd.f32 0.0, %v2864
        %v2866 = vpop.f32.mrb[0].mxu0
        %v2867 = vpop.f32.mrb[0].mxu0
        %v2868 = vadd.f32 0.0, %v2867
        %v2869 = vpop.f32.mrb[0].mxu0
        %2870 = vmatprep.mubr.bf16.mxu0 0
        %2871 = vmatmul.mubr.bf16.gmra.mrb[0].mxu0 %v2704
        %v2872 = vpop.f32.mrb[0].mxu0
        %v2873 = vadd.f32 0.0, %v2872
        %v2874 = vpop.f32.mrb[0].mxu0
        %v2875 = vpop.f32.mrb[0].mxu0
        %v2876 = vadd.f32 0.0, %v2875
        %v2877 = vpop.f32.mrb[0].mxu0
        %2878 = vmatprep.mubr.bf16.mxu0 0
        %2879 = vmatmul.mubr.bf16.gmra.mrb[0].mxu0 %v2707
        %v2880 = vpop.f32.mrb[0].mxu0
        %v2881 = vadd.f32 0.0, %v2880
        %v2882 = vpop.f32.mrb[0].mxu0
        %v2883 = vpop.f32.mrb[0].mxu0
        %v2884 = vadd.f32 0.0, %v2883
        %v2885 = vpop.f32.mrb[0].mxu0
        %2886 = vmatprep.mubr.bf16.mxu0 0
        %2887 = vmatmul.mubr.bf16.gmra.mrb[0].mxu0 %v2710
        %v2888 = vpop.f32.mrb[0].mxu0
        %v2889 = vadd.f32 0.0, %v2888
        %v2890 = vpop.f32.mrb[0].mxu0
        %v2891 = vpop.f32.mrb[0].mxu0
        %v2892 = vadd.f32 0.0, %v2891
        %v2893 = vpop.f32.mrb[0].mxu0
        %2894 = vmatprep.mubr.bf16.mxu0 0
        %2895 = vmatmul.mubr.bf16.gmra.mrb[0].mxu0 %v2713
        %v2896 = vpop.f32.mrb[0].mxu0
        %v2897 = vadd.f32 0.0, %v2896
        %v2898 = vpop.f32.mrb[0].mxu0
        %v2899 = vpop.f32.mrb[0].mxu0
        %v2900 = vadd.f32 0.0, %v2899
        %v2901 = vpop.f32.mrb[0].mxu0
        %2902 = vmatprep.mubr.bf16.mxu0 0
        %2903 = vmatmul.mubr.bf16.gmra.mrb[0].mxu0 %v2716
        %v2904 = vpop.f32.mrb[0].mxu0
        %v2905 = vadd.f32 0.0, %v2904
        %v2906 = vpop.f32.mrb[0].mxu0
        %v2907 = vpop.f32.mrb[0].mxu0
        %v2908 = vadd.f32 0.0, %v2907
        %v2909 = vpop.f32.mrb[0].mxu0
        %2910 = vmatprep.mubr.bf16.mxu0 0
        %2911 = vmatmul.mubr.bf16.gmra.mrb[0].mxu0 %v2719
        %v2912 = vpop.f32.mrb[0].mxu0
        %v2913 = vadd.f32 0.0, %v2912
        %v2914 = vpop.f32.mrb[0].mxu0
        %v2915 = vpop.f32.mrb[0].mxu0
        %v2916 = vadd.f32 0.0, %v2915
        %v2917 = vpop.f32.mrb[0].mxu0
        %2918 = vmatprep.mubr.bf16.mxu0 0
        %2919 = vmatmul.mubr.bf16.gmra.mrb[0].mxu0 %v2722
        %v2920 = vpop.f32.mrb[0].mxu0
        %v2921 = vadd.f32 0.0, %v2920
        %v2922 = vpop.f32.mrb[0].mxu0
        %v2923 = vpop.f32.mrb[0].mxu0
        %v2924 = vadd.f32 0.0, %v2923
        %v2925 = vpop.f32.mrb[0].mxu0
        %2926 = vmatprep.mubr.bf16.mxu0 0
        %2927 = vmatmul.mubr.bf16.gmra.mrb[0].mxu0 %v2725
        %v2928 = vpop.f32.mrb[0].mxu0
        %v2929 = vadd.f32 0.0, %v2928
        %v2930 = vpop.f32.mrb[0].mxu0
        %v2931 = vpop.f32.mrb[0].mxu0
        %v2932 = vadd.f32 0.0, %v2931
        %v2933 = vpop.f32.mrb[0].mxu0
        %2934 = vmatprep.mubr.bf16.mxu0 0
        %2935 = vmatmul.mubr.bf16.gmra.mrb[0].mxu0 %v2728
        %v2936 = vpop.f32.mrb[0].mxu0
        %v2937 = vadd.f32 0.0, %v2936
        %v2938 = vpop.f32.mrb[0].mxu0
        %v2939 = vpop.f32.mrb[0].mxu0
        %v2940 = vadd.f32 0.0, %v2939
        %v2941 = vpop.f32.mrb[0].mxu0
        %2942 = vmatprep.mubr.bf16.mxu0 0
        %2943 = vmatmul.mubr.bf16.gmra.mrb[0].mxu0 %v2731
        %v2944 = vpop.f32.mrb[0].mxu0
        %v2945 = vadd.f32 0.0, %v2944
        %v2946 = vpop.f32.mrb[0].mxu0
        %v2947 = vpop.f32.mrb[0].mxu0
        %v2948 = vadd.f32 0.0, %v2947
        %v2949 = vpop.f32.mrb[0].mxu0
        %2950 = vmatprep.mubr.bf16.mxu0 0
        %2951 = vmatmul.mubr.bf16.gmra.mrb[0].mxu0 %v2734
        %v2952 = vpop.f32.mrb[0].mxu0
        %v2953 = vadd.f32 0.0, %v2952
        %v2954 = vpop.f32.mrb[0].mxu0
        %v2955 = vpop.f32.mrb[0].mxu0
        %v2956 = vadd.f32 0.0, %v2955
        %v2957 = vpop.f32.mrb[0].mxu0
        %2958 = vmatprep.mubr.bf16.mxu0 0
        %2959 = vmatmul.mubr.bf16.gmra.mrb[0].mxu0 %v2737
        %v2960 = vpop.f32.mrb[0].mxu0
        %v2961 = vadd.f32 0.0, %v2960
        %v2962 = vpop.f32.mrb[0].mxu0
        %v2963 = vpop.f32.mrb[0].mxu0
        %v2964 = vadd.f32 0.0, %v2963
        %v2965 = vpop.f32.mrb[0].mxu0
        %2966 = vmatprep.mubr.bf16.mxu0 0
        %2967 = vmatmul.mubr.bf16.gmra.mrb[0].mxu0 %v2740
        %v2968 = vpop.f32.mrb[0].mxu0
        %v2969 = vadd.f32 0.0, %v2968
        %v2970 = vpop.f32.mrb[0].mxu0
        %v2971 = vpop.f32.mrb[0].mxu0
        %v2972 = vadd.f32 0.0, %v2971
        %v2973 = vpop.f32.mrb[0].mxu0
        %2974 = vmatprep.mubr.bf16.mxu0 0
        %2975 = vmatmul.mubr.bf16.gmra.mrb[0].mxu0 %v2743
        %v2976 = vpop.f32.mrb[0].mxu0
        %v2977 = vadd.f32 0.0, %v2976
        %v2978 = vpop.f32.mrb[0].mxu0
        %v2979 = vpop.f32.mrb[0].mxu0
        %v2980 = vadd.f32 0.0, %v2979
        %v2981 = vpop.f32.mrb[0].mxu0
        %2982 = vmatprep.mubr.bf16.mxu0 0
        %2983 = vmatmul.mubr.bf16.gmra.mrb[0].mxu0 %v2746
        %v2984 = vpop.f32.mrb[0].mxu0
        %v2985 = vadd.f32 0.0, %v2984
        %v2986 = vpop.f32.mrb[0].mxu0
        %v2987 = vpop.f32.mrb[0].mxu0
        %v2988 = vadd.f32 0.0, %v2987
        %v2989 = vpop.f32.mrb[0].mxu0
        %2990 = vmatprep.mubr.bf16.mxu0 0
        %2991 = vmatmul.mubr.bf16.gmra.mrb[0].mxu0 %v2749
        %v2992 = vpop.f32.mrb[0].mxu0
        %v2993 = vadd.f32 0.0, %v2992
        %v2994 = vpop.f32.mrb[0].mxu0
        %v2995 = vpop.f32.mrb[0].mxu0
        %v2996 = vadd.f32 0.0, %v2995
        %v2997 = vpop.f32.mrb[0].mxu0
        %2998 = vmatprep.mubr.bf16.mxu0 0
        %2999 = vmatmul.mubr.bf16.gmra.mrb[0].mxu0 %v2752
        %v3000 = vpop.f32.mrb[0].mxu0
        %v3001 = vadd.f32 0.0, %v3000
        %v3002 = vpop.f32.mrb[0].mxu0
        %v3003 = vpop.f32.mrb[0].mxu0
        %v3004 = vadd.f32 0.0, %v3003
        %v3005 = vpop.f32.mrb[0].mxu0
        %3006 = vmatprep.mubr.bf16.mxu0 0
        %3007 = vmatmul.mubr.bf16.gmra.mrb[0].mxu0 %v2755
        %v3008 = vpop.f32.mrb[0].mxu0
        %v3009 = vadd.f32 0.0, %v3008
        %v3010 = vpop.f32.mrb[0].mxu0
        %v3011 = vpop.f32.mrb[0].mxu0
        %v3012 = vadd.f32 0.0, %v3011
        %v3013 = vpop.f32.mrb[0].mxu0
        %3014 = vmatprep.mubr.bf16.mxu0 0
        %3015 = vmatmul.mubr.bf16.gmra.mrb[0].mxu0 %v2758
        %v3016 = vpop.f32.mrb[0].mxu0
        %v3017 = vadd.f32 0.0, %v3016
        %v3018 = vpop.f32.mrb[0].mxu0
        %v3019 = vpop.f32.mrb[0].mxu0
        %v3020 = vadd.f32 0.0, %v3019
        %v3021 = vpop.f32.mrb[0].mxu0
        %3022 = vmatprep.mubr.bf16.mxu0 0
        %3023 = vmatmul.mubr.bf16.gmra.mrb[0].mxu0 %v2761
        %v3024 = vpop.f32.mrb[0].mxu0
        %v3025 = vadd.f32 0.0, %v3024
        %v3026 = vpop.f32.mrb[0].mxu0
        %v3027 = vpop.f32.mrb[0].mxu0
        %v3028 = vadd.f32 0.0, %v3027
        %v3029 = vpop.f32.mrb[0].mxu0
        %3030 = vmatprep.mubr.bf16.mxu0 0
        %3031 = vmatmul.mubr.bf16.gmra.mrb[0].mxu0 %v2764
        %v3032 = vpop.f32.mrb[0].mxu0
        %v3033 = vadd.f32 0.0, %v3032
        %v3034 = vpop.f32.mrb[0].mxu0
        %v3035 = vpop.f32.mrb[0].mxu0
        %v3036 = vadd.f32 0.0, %v3035
        %v3037 = vpop.f32.mrb[0].mxu0
        %3038 = vmatprep.mubr.bf16.mxu0 0
        %3039 = vmatmul.mubr.bf16.gmra.mrb[0].mxu0 %v2767
        %v3040 = vpop.f32.mrb[0].mxu0
        %v3041 = vadd.f32 0.0, %v3040
        %v3042 = vpop.f32.mrb[0].mxu0
        %v3043 = vpop.f32.mrb[0].mxu0
        %v3044 = vadd.f32 0.0, %v3043
        %v3045 = vpop.f32.mrb[0].mxu0
        %3046 = vmatprep.mubr.bf16.mxu0 0
        %3047 = vmatmul.mubr.bf16.gmra.mrb[0].mxu0 %v2770
        %v3048 = vpop.f32.mrb[0].mxu0
        %v3049 = vadd.f32 0.0, %v3048
        %v3050 = vpop.f32.mrb[0].mxu0
        %v3051 = vpop.f32.mrb[0].mxu0
        %v3052 = vadd.f32 0.0, %v3051
        %v3053 = vpop.f32.mrb[0].mxu0
        %3054 = vmatprep.mubr.bf16.mxu0 0
        %3055 = vmatmul.mubr.bf16.gmra.mrb[0].mxu0 %v2773
        %v3056 = vpop.f32.mrb[0].mxu0
        %v3057 = vadd.f32 0.0, %v3056
        %v3058 = vpop.f32.mrb[0].mxu0
        %v3059 = vpop.f32.mrb[0].mxu0
        %v3060 = vadd.f32 0.0, %v3059
        %v3061 = vpop.f32.mrb[0].mxu0
        %3062 = vmatprep.mubr.bf16.mxu0 0
        %3063 = vmatmul.mubr.bf16.gmra.mrb[0].mxu0 %v2776
        %v3064 = vpop.f32.mrb[0].mxu0
        %v3065 = vadd.f32 0.0, %v3064
        %v3066 = vpop.f32.mrb[0].mxu0
        %v3067 = vpop.f32.mrb[0].mxu0
        %v3068 = vadd.f32 0.0, %v3067
        %v3069 = vpop.f32.mrb[0].mxu0
        %3070 = vdwg.mxu0
        %v3071 = vpack.c.bf16 %v2648, %v2648
        %v3073 = vsel %vm1878, %v3071, 0
        %3075 = vmatprep.subr.bf16.mxu0 0
        %3076 = vmatpush1.bf16.msra.mxu0 %v2780
        %3077 = vmatprep.subr.bf16.mxu0 0
        %3078 = vmatpush1.bf16.msra.mxu0 0
        %3079 = vmatprep.subr.bf16.mxu0 0
        %3080 = vmatpush1.bf16.msra.mxu0 0
        %3081 = vmatprep.subr.bf16.mxu0 0
        %3082 = vmatpush1.bf16.msra.mxu0 0
        %3083 = vmatprep.subr.bf16.mxu0 0
        %3084 = vmatpush1.bf16.msra.mxu0 0
        %3085 = vmatprep.subr.bf16.mxu0 0
        %3086 = vmatpush1.bf16.msra.mxu0 0
        %3087 = vmatprep.subr.bf16.mxu0 0
        %3088 = vmatpush1.bf16.msra.mxu0 0
        %3089 = vmatprep.subr.bf16.mxu0 0
        %3090 = vmatpush1.bf16.msra.mxu0 0
        %3091 = vmatprep.subr.bf16.mxu0 0
        %3092 = vmatpush1.bf16.msra.mxu0 0
        %3093 = vmatprep.subr.bf16.mxu0 0
        %3094 = vmatpush1.bf16.msra.mxu0 0
        %3095 = vmatprep.subr.bf16.mxu0 0
        %3096 = vmatpush1.bf16.msra.mxu0 0
        %3097 = vmatprep.subr.bf16.mxu0 0
        %3098 = vmatpush1.bf16.msra.mxu0 0
        %3099 = vmatprep.subr.bf16.mxu0 0
        %3100 = vmatpush1.bf16.msra.mxu0 0
        %3101 = vmatprep.subr.bf16.mxu0 0
        %3102 = vmatpush1.bf16.msra.mxu0 0
        %3103 = vmatprep.subr.bf16.mxu0 0
        %3104 = vmatpush1.bf16.msra.mxu0 0
        %3105 = vmatprep.subr.bf16.mxu0 0
        %3106 = vmatpush1.bf16.msra.mxu0 0
        %3107 = vmatprep.mubr.bf16.mxu0 0
        %3108 = vmatmul.mubr.bf16.gmra.mrb[0].mxu0 %v3073
        %v3109 = vpop.f32.mrb[0].mxu0
        %v3110 = vadd.f32 0.0, %v3109
        %v3111 = vpop.f32.mrb[0].mxu0
        %v3112 = vpop.f32.mrb[0].mxu0
        %v3113 = vpop.f32.mrb[0].mxu0
        %3114 = vdwg.mxu0
        %3179 = vrot.lane.b32.xlu0 %v1166, 64
        %v3180 = vpop.permute.xlu0 %3179
        %3181 = vrot.lane.b32.xlu0 %v1167, 64
        %v3182 = vpop.permute.xlu0 %3181
        %3183 = vrot.lane.b32.xlu0 %v1168, 64
        %v3184 = vpop.permute.xlu0 %3183
        %3185 = vrot.lane.b32.xlu0 %v1169, 64
        %v3186 = vpop.permute.xlu0 %3185
        %3187 = vrot.lane.b32.xlu0 %v1170, 64
        %v3188 = vpop.permute.xlu0 %3187
        %3189 = vrot.lane.b32.xlu0 %v1171, 64
        %v3190 = vpop.permute.xlu0 %3189
        %3191 = vrot.lane.b32.xlu0 %v1172, 64
        %v3192 = vpop.permute.xlu0 %3191
        %3193 = vrot.lane.b32.xlu0 %v1173, 64
        %v3194 = vpop.permute.xlu0 %3193
        %3195 = vrot.lane.b32.xlu0 %v1174, 64
        %v3196 = vpop.permute.xlu0 %3195
        %3197 = vrot.lane.b32.xlu0 %v1175, 64
        %v3198 = vpop.permute.xlu0 %3197
        %3199 = vrot.lane.b32.xlu0 %v1176, 64
        %v3200 = vpop.permute.xlu0 %3199
        %3201 = vrot.lane.b32.xlu0 %v1177, 64
        %v3202 = vpop.permute.xlu0 %3201
        %3203 = vrot.lane.b32.xlu0 %v1178, 64
        %v3204 = vpop.permute.xlu0 %3203
        %3205 = vrot.lane.b32.xlu0 %v1179, 64
        %v3206 = vpop.permute.xlu0 %3205
        %3207 = vrot.lane.b32.xlu0 %v1180, 64
        %v3208 = vpop.permute.xlu0 %3207
        %3209 = vrot.lane.b32.xlu0 %v1181, 64
        %v3210 = vpop.permute.xlu0 %3209
        %3211 = vrot.lane.b32.xlu0 %v1182, 64
        %v3212 = vpop.permute.xlu0 %3211
        %3213 = vrot.lane.b32.xlu0 %v1183, 64
        %v3214 = vpop.permute.xlu0 %3213
        %3215 = vrot.lane.b32.xlu0 %v1184, 64
        %v3216 = vpop.permute.xlu0 %3215
        %3217 = vrot.lane.b32.xlu0 %v1185, 64
        %v3218 = vpop.permute.xlu0 %3217
        %3219 = vrot.lane.b32.xlu0 %v1186, 64
        %v3220 = vpop.permute.xlu0 %3219
        %3221 = vrot.lane.b32.xlu0 %v1187, 64
        %v3222 = vpop.permute.xlu0 %3221
        %3223 = vrot.lane.b32.xlu0 %v1188, 64
        %v3224 = vpop.permute.xlu0 %3223
        %3225 = vrot.lane.b32.xlu0 %v1189, 64
        %v3226 = vpop.permute.xlu0 %3225
        %3227 = vrot.lane.b32.xlu0 %v1190, 64
        %v3228 = vpop.permute.xlu0 %3227
        %3229 = vrot.lane.b32.xlu0 %v1191, 64
        %v3230 = vpop.permute.xlu0 %3229
        %3231 = vrot.lane.b32.xlu0 %v1192, 64
        %v3232 = vpop.permute.xlu0 %3231
        %3233 = vrot.lane.b32.xlu0 %v1193, 64
        %v3234 = vpop.permute.xlu0 %3233
        %3235 = vrot.lane.b32.xlu0 %v1194, 64
        %v3236 = vpop.permute.xlu0 %3235
        %3237 = vrot.lane.b32.xlu0 %v1195, 64
        %v3238 = vpop.permute.xlu0 %3237
        %3239 = vrot.lane.b32.xlu0 %v1196, 64
        %v3240 = vpop.permute.xlu0 %3239
        %3241 = vrot.lane.b32.xlu0 %v1197, 64
        %v3242 = vpop.permute.xlu0 %3241
        %3243 = vrot.lane.b32.xlu0 %v1198, 64
        %v3244 = vpop.permute.xlu0 %3243
        %3245 = vrot.lane.b32.xlu0 %v1199, 64
        %v3246 = vpop.permute.xlu0 %3245
        %3247 = vrot.lane.b32.xlu0 %v1200, 64
        %v3248 = vpop.permute.xlu0 %3247
        %3249 = vrot.lane.b32.xlu0 %v1201, 64
        %v3250 = vpop.permute.xlu0 %3249
        %3251 = vrot.lane.b32.xlu0 %v1202, 64
        %v3252 = vpop.permute.xlu0 %3251
        %3253 = vrot.lane.b32.xlu0 %v1203, 64
        %v3254 = vpop.permute.xlu0 %3253
        %3255 = vrot.lane.b32.xlu0 %v1204, 64
        %v3256 = vpop.permute.xlu0 %3255
        %3257 = vrot.lane.b32.xlu0 %v1205, 64
        %v3258 = vpop.permute.xlu0 %3257
        %3259 = vrot.lane.b32.xlu0 %v1206, 64
        %v3260 = vpop.permute.xlu0 %3259
        %3261 = vrot.lane.b32.xlu0 %v1207, 64
        %v3262 = vpop.permute.xlu0 %3261
        %3263 = vrot.lane.b32.xlu0 %v1208, 64
        %v3264 = vpop.permute.xlu0 %3263
        %3265 = vrot.lane.b32.xlu0 %v1209, 64
        %v3266 = vpop.permute.xlu0 %3265
        %3267 = vrot.lane.b32.xlu0 %v1210, 64
        %v3268 = vpop.permute.xlu0 %3267
        %3269 = vrot.lane.b32.xlu0 %v1211, 64
        %v3270 = vpop.permute.xlu0 %3269
        %3271 = vrot.lane.b32.xlu0 %v1212, 64
        %v3272 = vpop.permute.xlu0 %3271
        %3273 = vrot.lane.b32.xlu0 %v1213, 64
        %v3274 = vpop.permute.xlu0 %3273
        %3275 = vrot.lane.b32.xlu0 %v1214, 64
        %v3276 = vpop.permute.xlu0 %3275
        %3277 = vrot.lane.b32.xlu0 %v1215, 64
        %v3278 = vpop.permute.xlu0 %3277
        %3279 = vrot.lane.b32.xlu0 %v1216, 64
        %v3280 = vpop.permute.xlu0 %3279
        %3281 = vrot.lane.b32.xlu0 %v1217, 64
        %v3282 = vpop.permute.xlu0 %3281
        %3283 = vrot.lane.b32.xlu0 %v1218, 64
        %v3284 = vpop.permute.xlu0 %3283
        %3285 = vrot.lane.b32.xlu0 %v1219, 64
        %v3286 = vpop.permute.xlu0 %3285
        %3287 = vrot.lane.b32.xlu0 %v1220, 64
        %v3288 = vpop.permute.xlu0 %3287
        %3289 = vrot.lane.b32.xlu0 %v1221, 64
        %v3290 = vpop.permute.xlu0 %3289
        %3291 = vrot.lane.b32.xlu0 %v1222, 64
        %v3292 = vpop.permute.xlu0 %3291
        %3293 = vrot.lane.b32.xlu0 %v1223, 64
        %v3294 = vpop.permute.xlu0 %3293
        %3295 = vrot.lane.b32.xlu0 %v1224, 64
        %v3296 = vpop.permute.xlu0 %3295
        %3297 = vrot.lane.b32.xlu0 %v1225, 64
        %v3298 = vpop.permute.xlu0 %3297
        %3299 = vrot.lane.b32.xlu0 %v1226, 64
        %v3300 = vpop.permute.xlu0 %3299
        %3301 = vrot.lane.b32.xlu0 %v1227, 64
        %v3302 = vpop.permute.xlu0 %3301
        %3303 = vrot.lane.b32.xlu0 %v1228, 64
        %v3304 = vpop.permute.xlu0 %3303
        %3305 = vrot.lane.b32.xlu0 %v1229, 64
        %v3306 = vpop.permute.xlu0 %3305
        %v3371 = vmul.f32 %v2817, %v3180
        %v3372 = vmul.f32 %v2820, %v3182
        %v3373 = vmul.f32 %v2825, %v3184
        %v3374 = vmul.f32 %v2828, %v3186
        %v3375 = vmul.f32 %v2833, %v3188
        %v3376 = vmul.f32 %v2836, %v3190
        %v3377 = vmul.f32 %v2841, %v3192
        %v3378 = vmul.f32 %v2844, %v3194
        %v3379 = vmul.f32 %v2849, %v3196
        %v3380 = vmul.f32 %v2852, %v3198
        %v3381 = vmul.f32 %v2857, %v3200
        %v3382 = vmul.f32 %v2860, %v3202
        %v3383 = vmul.f32 %v2865, %v3204
        %v3384 = vmul.f32 %v2868, %v3206
        %v3385 = vmul.f32 %v2873, %v3208
        %v3386 = vmul.f32 %v2876, %v3210
        %v3387 = vmul.f32 %v2881, %v3212
        %v3388 = vmul.f32 %v2884, %v3214
        %v3389 = vmul.f32 %v2889, %v3216
        %v3390 = vmul.f32 %v2892, %v3218
        %v3391 = vmul.f32 %v2897, %v3220
        %v3392 = vmul.f32 %v2900, %v3222
        %v3393 = vmul.f32 %v2905, %v3224
        %v3394 = vmul.f32 %v2908, %v3226
        %v3395 = vmul.f32 %v2913, %v3228
        %v3396 = vmul.f32 %v2916, %v3230
        %v3397 = vmul.f32 %v2921, %v3232
        %v3398 = vmul.f32 %v2924, %v3234
        %v3399 = vmul.f32 %v2929, %v3236
        %v3400 = vmul.f32 %v2932, %v3238
        %v3401 = vmul.f32 %v2937, %v3240
        %v3402 = vmul.f32 %v2940, %v3242
        %v3403 = vmul.f32 %v2945, %v3244
        %v3404 = vmul.f32 %v2948, %v3246
        %v3405 = vmul.f32 %v2953, %v3248
        %v3406 = vmul.f32 %v2956, %v3250
        %v3407 = vmul.f32 %v2961, %v3252
        %v3408 = vmul.f32 %v2964, %v3254
        %v3409 = vmul.f32 %v2969, %v3256
        %v3410 = vmul.f32 %v2972, %v3258
        %v3411 = vmul.f32 %v2977, %v3260
        %v3412 = vmul.f32 %v2980, %v3262
        %v3413 = vmul.f32 %v2985, %v3264
        %v3414 = vmul.f32 %v2988, %v3266
        %v3415 = vmul.f32 %v2993, %v3268
        %v3416 = vmul.f32 %v2996, %v3270
        %v3417 = vmul.f32 %v3001, %v3272
        %v3418 = vmul.f32 %v3004, %v3274
        %v3419 = vmul.f32 %v3009, %v3276
        %v3420 = vmul.f32 %v3012, %v3278
        %v3421 = vmul.f32 %v3017, %v3280
        %v3422 = vmul.f32 %v3020, %v3282
        %v3423 = vmul.f32 %v3025, %v3284
        %v3424 = vmul.f32 %v3028, %v3286
        %v3425 = vmul.f32 %v3033, %v3288
        %v3426 = vmul.f32 %v3036, %v3290
        %v3427 = vmul.f32 %v3041, %v3292
        %v3428 = vmul.f32 %v3044, %v3294
        %v3429 = vmul.f32 %v3049, %v3296
        %v3430 = vmul.f32 %v3052, %v3298
        %v3431 = vmul.f32 %v3057, %v3300
        %v3432 = vmul.f32 %v3060, %v3302
        %v3433 = vmul.f32 %v3065, %v3304
        %v3434 = vmul.f32 %v3068, %v3306
        %v3435 = vsel %vm420, %v3371, 0.0
        %v3436 = vsel %vm420, %v3372, 0.0
        %v3437 = vadd.f32 %v3435, %v3436
        %v3438 = vsel %vm420, %v3373, 0.0
        %v3439 = vadd.f32 %v3437, %v3438
        %v3440 = vsel %vm420, %v3374, 0.0
        %v3441 = vadd.f32 %v3439, %v3440
        %v3442 = vsel %vm420, %v3375, 0.0
        %v3443 = vadd.f32 %v3441, %v3442
        %v3444 = vsel %vm420, %v3376, 0.0
        %v3445 = vadd.f32 %v3443, %v3444
        %v3446 = vsel %vm420, %v3377, 0.0
        %v3447 = vadd.f32 %v3445, %v3446
        %v3448 = vsel %vm420, %v3378, 0.0
        %v3449 = vadd.f32 %v3447, %v3448
        %v3450 = vrot.slane %v3449, 4
        %v3451 = vadd.f32 %v3449, %v3450
        %v3452 = vrot.slane %v3451, 2
        %v3453 = vadd.f32 %v3451, %v3452
        %v3454 = vrot.slane %v3453, 1
        %v3455 = vadd.f32 %v3453, %v3454
        %v3456 = vsel %vm420, %v3379, 0.0
        %v3457 = vsel %vm420, %v3380, 0.0
        %v3458 = vadd.f32 %v3456, %v3457
        %v3459 = vsel %vm420, %v3381, 0.0
        %v3460 = vadd.f32 %v3458, %v3459
        %v3461 = vsel %vm420, %v3382, 0.0
        %v3462 = vadd.f32 %v3460, %v3461
        %v3463 = vsel %vm420, %v3383, 0.0
        %v3464 = vadd.f32 %v3462, %v3463
        %v3465 = vsel %vm420, %v3384, 0.0
        %v3466 = vadd.f32 %v3464, %v3465
        %v3467 = vsel %vm420, %v3385, 0.0
        %v3468 = vadd.f32 %v3466, %v3467
        %v3469 = vsel %vm420, %v3386, 0.0
        %v3470 = vadd.f32 %v3468, %v3469
        %v3471 = vrot.slane %v3470, 4
        %v3472 = vadd.f32 %v3470, %v3471
        %v3473 = vrot.slane %v3472, 2
        %v3474 = vadd.f32 %v3472, %v3473
        %v3475 = vrot.slane %v3474, 1
        %v3476 = vadd.f32 %v3474, %v3475
        %v3477 = vsel %vm420, %v3387, 0.0
        %v3478 = vsel %vm420, %v3388, 0.0
        %v3479 = vadd.f32 %v3477, %v3478
        %v3480 = vsel %vm420, %v3389, 0.0
        %v3481 = vadd.f32 %v3479, %v3480
        %v3482 = vsel %vm420, %v3390, 0.0
        %v3483 = vadd.f32 %v3481, %v3482
        %v3484 = vsel %vm420, %v3391, 0.0
        %v3485 = vadd.f32 %v3483, %v3484
        %v3486 = vsel %vm420, %v3392, 0.0
        %v3487 = vadd.f32 %v3485, %v3486
        %v3488 = vsel %vm420, %v3393, 0.0
        %v3489 = vadd.f32 %v3487, %v3488
        %v3490 = vsel %vm420, %v3394, 0.0
        %v3491 = vadd.f32 %v3489, %v3490
        %v3492 = vrot.slane %v3491, 4
        %v3493 = vadd.f32 %v3491, %v3492
        %v3494 = vrot.slane %v3493, 2
        %v3495 = vadd.f32 %v3493, %v3494
        %v3496 = vrot.slane %v3495, 1
        %v3497 = vadd.f32 %v3495, %v3496
        %v3498 = vsel %vm420, %v3395, 0.0
        %v3499 = vsel %vm420, %v3396, 0.0
        %v3500 = vadd.f32 %v3498, %v3499
        %v3501 = vsel %vm420, %v3397, 0.0
        %v3502 = vadd.f32 %v3500, %v3501
        %v3503 = vsel %vm420, %v3398, 0.0
        %v3504 = vadd.f32 %v3502, %v3503
        %v3505 = vsel %vm420, %v3399, 0.0
        %v3506 = vadd.f32 %v3504, %v3505
        %v3507 = vsel %vm420, %v3400, 0.0
        %v3508 = vadd.f32 %v3506, %v3507
        %v3509 = vsel %vm420, %v3401, 0.0
        %v3510 = vadd.f32 %v3508, %v3509
        %v3511 = vsel %vm420, %v3402, 0.0
        %v3512 = vadd.f32 %v3510, %v3511
        %v3513 = vrot.slane %v3512, 4
        %v3514 = vadd.f32 %v3512, %v3513
        %v3515 = vrot.slane %v3514, 2
        %v3516 = vadd.f32 %v3514, %v3515
        %v3517 = vrot.slane %v3516, 1
        %v3518 = vadd.f32 %v3516, %v3517
        %v3519 = vsel %vm420, %v3403, 0.0
        %v3520 = vsel %vm420, %v3404, 0.0
        %v3521 = vadd.f32 %v3519, %v3520
        %v3522 = vsel %vm420, %v3405, 0.0
        %v3523 = vadd.f32 %v3521, %v3522
        %v3524 = vsel %vm420, %v3406, 0.0
        %v3525 = vadd.f32 %v3523, %v3524
        %v3526 = vsel %vm420, %v3407, 0.0
        %v3527 = vadd.f32 %v3525, %v3526
        %v3528 = vsel %vm420, %v3408, 0.0
        %v3529 = vadd.f32 %v3527, %v3528
        %v3530 = vsel %vm420, %v3409, 0.0
        %v3531 = vadd.f32 %v3529, %v3530
        %v3532 = vsel %vm420, %v3410, 0.0
        %v3533 = vadd.f32 %v3531, %v3532
        %v3534 = vrot.slane %v3533, 4
        %v3535 = vadd.f32 %v3533, %v3534
        %v3536 = vrot.slane %v3535, 2
        %v3537 = vadd.f32 %v3535, %v3536
        %v3538 = vrot.slane %v3537, 1
        %v3539 = vadd.f32 %v3537, %v3538
        %v3540 = vsel %vm420, %v3411, 0.0
        %v3541 = vsel %vm420, %v3412, 0.0
        %v3542 = vadd.f32 %v3540, %v3541
        %v3543 = vsel %vm420, %v3413, 0.0
        %v3544 = vadd.f32 %v3542, %v3543
        %v3545 = vsel %vm420, %v3414, 0.0
        %v3546 = vadd.f32 %v3544, %v3545
        %v3547 = vsel %vm420, %v3415, 0.0
        %v3548 = vadd.f32 %v3546, %v3547
        %v3549 = vsel %vm420, %v3416, 0.0
        %v3550 = vadd.f32 %v3548, %v3549
        %v3551 = vsel %vm420, %v3417, 0.0
        %v3552 = vadd.f32 %v3550, %v3551
        %v3553 = vsel %vm420, %v3418, 0.0
        %v3554 = vadd.f32 %v3552, %v3553
        %v3555 = vrot.slane %v3554, 4
        %v3556 = vadd.f32 %v3554, %v3555
        %v3557 = vrot.slane %v3556, 2
        %v3558 = vadd.f32 %v3556, %v3557
        %v3559 = vrot.slane %v3558, 1
        %v3560 = vadd.f32 %v3558, %v3559
        %v3561 = vsel %vm420, %v3419, 0.0
        %v3562 = vsel %vm420, %v3420, 0.0
        %v3563 = vadd.f32 %v3561, %v3562
        %v3564 = vsel %vm420, %v3421, 0.0
        %v3565 = vadd.f32 %v3563, %v3564
        %v3566 = vsel %vm420, %v3422, 0.0
        %v3567 = vadd.f32 %v3565, %v3566
        %v3568 = vsel %vm420, %v3423, 0.0
        %v3569 = vadd.f32 %v3567, %v3568
        %v3570 = vsel %vm420, %v3424, 0.0
        %v3571 = vadd.f32 %v3569, %v3570
        %v3572 = vsel %vm420, %v3425, 0.0
        %v3573 = vadd.f32 %v3571, %v3572
        %v3574 = vsel %vm420, %v3426, 0.0
        %v3575 = vadd.f32 %v3573, %v3574
        %v3576 = vrot.slane %v3575, 4
        %v3577 = vadd.f32 %v3575, %v3576
        %v3578 = vrot.slane %v3577, 2
        %v3579 = vadd.f32 %v3577, %v3578
        %v3580 = vrot.slane %v3579, 1
        %v3581 = vadd.f32 %v3579, %v3580
        %v3582 = vsel %vm420, %v3427, 0.0
        %v3583 = vsel %vm420, %v3428, 0.0
        %v3584 = vadd.f32 %v3582, %v3583
        %v3585 = vsel %vm420, %v3429, 0.0
        %v3586 = vadd.f32 %v3584, %v3585
        %v3587 = vsel %vm420, %v3430, 0.0
        %v3588 = vadd.f32 %v3586, %v3587
        %v3589 = vsel %vm420, %v3431, 0.0
        %v3590 = vadd.f32 %v3588, %v3589
        %v3591 = vsel %vm420, %v3432, 0.0
        %v3592 = vadd.f32 %v3590, %v3591
        %v3593 = vsel %vm420, %v3433, 0.0
        %v3594 = vadd.f32 %v3592, %v3593
        %v3595 = vsel %vm420, %v3434, 0.0
        %v3596 = vadd.f32 %v3594, %v3595
        %v3597 = vrot.slane %v3596, 4
        %v3598 = vadd.f32 %v3596, %v3597
        %v3599 = vrot.slane %v3598, 2
        %v3600 = vadd.f32 %v3598, %v3599
        %v3601 = vrot.slane %v3600, 1
        %v3602 = vadd.f32 %v3600, %v3601
        %3604 = vrot.lane.b32.xlu0 %v734, 64
        %v3605 = vpop.permute.xlu0 %3604
        %v3607 = vmul.f32 %v3110, %v3605
        %v3609 = vrot.slane %v3607, 1
        %v3610 = vrot.slane %v3607, 2
        %v3611 = vrot.slane %v3607, 3
        %v3612 = vrot.slane %v3607, 4
        %v3613 = vrot.slane %v3607, 5
        %v3614 = vrot.slane %v3607, 6
        %v3615 = vrot.slane %v3607, 7
        %v3624 = vadd.f32 %v3455, %v3607
        %v3625 = vadd.f32 %v3476, %v3609
        %v3626 = vadd.f32 %v3497, %v3610
        %v3627 = vadd.f32 %v3518, %v3611
        %v3628 = vadd.f32 %v3539, %v3612
        %v3629 = vadd.f32 %v3560, %v3613
        %v3630 = vadd.f32 %v3581, %v3614
        %v3631 = vadd.f32 %v3602, %v3615
        %v3632 = vpack.c.bf16 %v3624, %v3624
        %v3633 = vpack.c.bf16 %v3625, %v3625
        %v3634 = vpack.c.bf16 %v3626, %v3626
        %v3635 = vpack.c.bf16 %v3627, %v3627
        %v3636 = vpack.c.bf16 %v3628, %v3628
        %v3637 = vpack.c.bf16 %v3629, %v3629
        %v3638 = vpack.c.bf16 %v3630, %v3630
        %v3639 = vpack.c.bf16 %v3631, %v3631
        %v3640 = vld [vmem:[%s4] sm:$0xf]
        %v3641 = vld [vmem:[%s4 + $0x4] sm:$0xf]
        %v3642 = vld [vmem:[%s4 + $0x8] sm:$0xf]
        %v3643 = vld [vmem:[%s4 + $0xc] sm:$0xf]
        %v3644 = vld [vmem:[%s4 + $0x10] sm:$0xf]
        %v3645 = vld [vmem:[%s4 + $0x14] sm:$0xf]
        %v3646 = vld [vmem:[%s4 + $0x18] sm:$0xf]
        %v3647 = vld [vmem:[%s4 + $0x1c] sm:$0xf]
        %v3648 = vld [vmem:[%s5] sm:$0x1]
        %v3650 = vlaneseq
        %v3651 = vshrl.u32 %v3650, 7
        %v3652 = vsub.s32 0, %v3651
        %v3653 = vrot.slane %v3648, %v3652
        %v3663 = vunpack.c.l.b16 %v3632
        %v3664 = vunpack.c.l.b16 %v3633
        %v3665 = vunpack.c.l.b16 %v3634
        %v3666 = vunpack.c.l.b16 %v3635
        %v3667 = vunpack.c.l.b16 %v3636
        %v3668 = vunpack.c.l.b16 %v3637
        %v3669 = vunpack.c.l.b16 %v3638
        %v3670 = vunpack.c.l.b16 %v3639
        %v3671 = vrot.slane %v3664, 7
        %v3672 = vsel %vm641, %v3671, %v3663
        %v3673 = vrot.slane %v3665, 6
        %v3674 = vsel %vm643, %v3673, %v3672
        %v3675 = vrot.slane %v3666, 5
        %v3676 = vsel %vm645, %v3675, %v3674
        %v3677 = vrot.slane %v3667, 4
        %v3678 = vsel %vm647, %v3677, %v3676
        %v3679 = vrot.slane %v3668, 3
        %v3680 = vsel %vm649, %v3679, %v3678
        %v3681 = vrot.slane %v3669, 2
        %v3682 = vsel %vm651, %v3681, %v3680
        %v3683 = vrot.slane %v3670, 1
        %v3684 = vsel %vm653, %v3683, %v3682
        %v3685 = vpack.c.b16 %v3684, %v3684
        %v3694 = vunpack.c.l.b16 %v3640
        %v3695 = vunpack.c.l.b16 %v3641
        %v3696 = vunpack.c.l.b16 %v3642
        %v3697 = vunpack.c.l.b16 %v3643
        %v3698 = vunpack.c.l.b16 %v3644
        %v3699 = vunpack.c.l.b16 %v3645
        %v3700 = vunpack.c.l.b16 %v3646
        %v3701 = vunpack.c.l.b16 %v3647
        %v3702 = vpack.c.b16 %v3695, %v3694
        %v3703 = vpack.c.b16 %v3697, %v3696
        %v3704 = vpack.c.b16 %v3699, %v3698
        %v3705 = vpack.c.b16 %v3701, %v3700
        %v3711 = vsel %vm420, %v3685, 0
        %3713 = vmatprep.subr.bf16.mxu0 0
        %3714 = vmatpush1.bf16.msra.mxu0 %v3702
        %3715 = vmatprep.subr.bf16.mxu0 0
        %3716 = vmatpush1.bf16.msra.mxu0 %v3703
        %3717 = vmatprep.subr.bf16.mxu0 0
        %3718 = vmatpush1.bf16.msra.mxu0 %v3704
        %3719 = vmatprep.subr.bf16.mxu0 0
        %3720 = vmatpush1.bf16.msra.mxu0 %v3705
        %3721 = vmatprep.subr.bf16.mxu0 0
        %3722 = vmatpush1.bf16.msra.mxu0 0
        %3723 = vmatprep.subr.bf16.mxu0 0
        %3724 = vmatpush1.bf16.msra.mxu0 0
        %3725 = vmatprep.subr.bf16.mxu0 0
        %3726 = vmatpush1.bf16.msra.mxu0 0
        %3727 = vmatprep.subr.bf16.mxu0 0
        %3728 = vmatpush1.bf16.msra.mxu0 0
        %3729 = vmatprep.subr.bf16.mxu0 0
        %3730 = vmatpush1.bf16.msra.mxu0 0
        %3731 = vmatprep.subr.bf16.mxu0 0
        %3732 = vmatpush1.bf16.msra.mxu0 0
        %3733 = vmatprep.subr.bf16.mxu0 0
        %3734 = vmatpush1.bf16.msra.mxu0 0
        %3735 = vmatprep.subr.bf16.mxu0 0
        %3736 = vmatpush1.bf16.msra.mxu0 0
        %3737 = vmatprep.subr.bf16.mxu0 0
        %3738 = vmatpush1.bf16.msra.mxu0 0
        %3739 = vmatprep.subr.bf16.mxu0 0
        %3740 = vmatpush1.bf16.msra.mxu0 0
        %3741 = vmatprep.subr.bf16.mxu0 0
        %3742 = vmatpush1.bf16.msra.mxu0 0
        %3743 = vmatprep.subr.bf16.mxu0 0
        %3744 = vmatpush1.bf16.msra.mxu0 0
        %3745 = vmatprep.mubr.bf16.mxu0 0
        %3746 = vmatmul.mubr.bf16.gmra.mrb[0].mxu0 %v3711
        %v3747 = vpop.f32.mrb[0].mxu0
        %v3748 = vadd.f32 %v3653, %v3747
        %v3749 = vpop.f32.mrb[0].mxu0
        %v3750 = vpop.f32.mrb[0].mxu0
        %v3751 = vpop.f32.mrb[0].mxu0
        %3752 = vdwg.mxu0
        %3753 = vst [vmem:[%s353] sm:$0xff] %v3748
        %s3754 = sand.u32 %s207, 1
        %s3755 = scalar_lea.sflag [#allocation4], %s3754
        %s3756 = sand.u32 %s207, 1
        %s3757 = smul.addr %s3756, 8
        %s3758 = scalar_lea.vmem [#allocation8], %s3757
        // Predicated region
        $region65: #{tpu_custom_call.1} parent=51 // pred_check
          %p3759 = pneg %p217
        $region66: #{tpu_custom_call.1} parent=51 // pred_check_branch
          %3761 = sbr.rel (%p3759) target = $region68
        $region67: #{tpu_custom_call.1} parent=51 // pred_region
          %s3763 = ssub.s32 128, 128
          %3764 = vsyncadd %s3755, %s3763
          %s3765 = smul.addr %s26, 128
          %s3766 = scalar_lea.hbm %s8, %s3765
          %s3768 = sshll.u32 %s3758, 4
          %s3769 = int_to_ptr.vmem [resolvable:$true] %s3768
          %3771 = dma.vmem_to_hbm [thread:$0]  %s3769, 128, %s3766, %s3755
        $region68: #{tpu_custom_call.1} parent=51 // pred_fallthru
          _
      $region52: #{tpu_custom_call.1} parent=5 // pred_fallthru
        _
      %p3772 = scmp.le.s32.totalorder 2, %s21
      // Predicated region
      $region69: #{tpu_custom_call.1} parent=5 // pred_check
        %p3773 = pneg %p3772
      $region70: #{tpu_custom_call.1} parent=5 // pred_check_branch
        %3775 = sbr.rel (%p3773) target = $region72
      $region71: #{tpu_custom_call.1} parent=5 // pred_region
        %s3776 = ssub.s32 %s21, 2
        // Predicated region
        $region73: #{tpu_custom_call.1} parent=71 // pred_check
          %p3777 = pneg %p223
        $region74: #{tpu_custom_call.1} parent=71 // pred_check_branch
          %3779 = sbr.rel (%p3777) target = $region76
        $region75: #{tpu_custom_call.1} parent=71 // pred_region
          %s3780 = sand.u32 %s208, 1
          %s3781 = scalar_lea.sflag [#allocation4], %s3780
          %s3782 = sand.u32 %s208, 1
          %s3783 = smul.addr %s3782, 8
          %s3784 = scalar_lea.vmem [#allocation8], %s3783
          %3785 = dma.done %s3781, 128
        $region76: #{tpu_custom_call.1} parent=71 // pred_fallthru
          _
      $region72: #{tpu_custom_call.1} parent=5 // pred_fallthru
        _
    $region6: #{tpu_custom_call.1} parent=1 // loop_footer
      %s25 = sadd.s32 1, %s21
    $region7: #{tpu_custom_call.1} parent=1 // loop_footer_branch
      %20 = sbr.rel target = $region3
    $region8: #{tpu_custom_call.1} parent=1 // loop_exit
      _
    %3786 = vsyncpa [#allocation3], 1
    %s3787 = scalar_lea.sflag [#allocation3], 1
    %3788 = vsyncpa %s3787, 1
    %3789 = vsyncpa [#allocation6], 1
    %3790 = vsyncpa [#allocation4], 1
    %s3791 = scalar_lea.sflag [#allocation4], 1
    %3792 = vsyncpa %s3791, 1

</llo_original>
